<compile_context>
chip_gen: v6e
topology: v6e:2x2x1
jax: 0.10.0
libtpu: 0.0.40
codegen_flags: <defaults>
</compile_context>

<pallas_src>
import jax
import jax.numpy as jnp
from jax.experimental import pallas as pl
from jax.experimental.pallas import tpu as pltpu


# ----------------------------------------------------------------------------
# Fused kernel: multi-layer GRU -> last hidden -> Linear -> log_softmax
# ----------------------------------------------------------------------------
def _make_fused_kernel(num_layers, batch, seq_len, hidden):
    """Builds the fused GRU-stack + head kernel for static (L, B, S, H)."""
    B, S, H = batch, seq_len, hidden

    def kernel(*refs):
        # refs layout: [x, (w_ih, w_hh, bias) * L, w_out, b_out, out, seq_scratch]
        x_ref = refs[0]
        w_out_ref = refs[1 + 3 * num_layers]
        b_out_ref = refs[2 + 3 * num_layers]
        out_ref = refs[3 + 3 * num_layers]
        seq_scr = refs[4 + 3 * num_layers]          # (S, B, H) f32 VMEM scratch

        h_last = None
        for layer in range(num_layers):
            w_ih_ref = refs[1 + 3 * layer]          # (3, in_f, H) bf16
            w_hh_ref = refs[2 + 3 * layer]          # (3, H, H)    bf16
            b_ref = refs[3 + 3 * layer]             # (4, 1, H)    f32

            # ---- hoisted input-side projection: one tall matmul per gate ----
            if layer == 0:
                x_val = x_ref[...]                  # (B, S, I), batch-major
                x2d = x_val.reshape(B * S, x_val.shape[-1]).astype(jnp.bfloat16)
            else:
                x_val = seq_scr[...]                # (S, B, H), time-major
                x2d = x_val.reshape(S * B, H).astype(jnp.bfloat16)

            pre_r = jnp.dot(x2d, w_ih_ref[0],
                            preferred_element_type=jnp.float32) + b_ref[0]
            pre_z = jnp.dot(x2d, w_ih_ref[1],
                            preferred_element_type=jnp.float32) + b_ref[1]
            pre_n = jnp.dot(x2d, w_ih_ref[2],
                            preferred_element_type=jnp.float32) + b_ref[2]

            if layer == 0:
                pre_r = pre_r.reshape(B, S, H)
                pre_z = pre_z.reshape(B, S, H)
                pre_n = pre_n.reshape(B, S, H)
                step = lambda p, t: p[:, t, :]
            else:
                pre_r = pre_r.reshape(S, B, H)
                pre_z = pre_z.reshape(S, B, H)
                pre_n = pre_n.reshape(S, B, H)
                step = lambda p, t: p[t]

            u_r = w_hh_ref[0]
            u_z = w_hh_ref[1]
            u_n = w_hh_ref[2]
            b_hn = jnp.broadcast_to(b_ref[3], (B, H))    # hoisted broadcast

            last_layer = layer == num_layers - 1
            h = jnp.zeros((B, H), jnp.float32)
            # Static, fully unrolled time loop (S is small): only the three
            # (B,H)@(H,H) matmuls + gate math sit on the serial chain.
            for t in range(S):
                hb = h.astype(jnp.bfloat16)
                g_r = jnp.dot(hb, u_r, preferred_element_type=jnp.float32)
                g_z = jnp.dot(hb, u_z, preferred_element_type=jnp.float32)
                g_n = jnp.dot(hb, u_n, preferred_element_type=jnp.float32)
                r = jax.nn.sigmoid(step(pre_r, t) + g_r)
                z = jax.nn.sigmoid(step(pre_z, t) + g_z)
                n = jnp.tanh(step(pre_n, t) + r * (g_n + b_hn))
                h = (1.0 - z) * n + z * h
                if not last_layer:
                    seq_scr[t] = h                  # feed next layer (VMEM only)
            h_last = h

        # ---- head: Linear + log_softmax on the final hidden state ----
        logits = jnp.dot(h_last.astype(jnp.bfloat16), w_out_ref[...],
                         preferred_element_type=jnp.float32) + b_out_ref[...]
        m = jnp.max(logits, axis=-1, keepdims=True)
        e = logits - m
        lse = jnp.log(jnp.sum(jnp.exp(e), axis=-1, keepdims=True))
        out_ref[...] = (e - lse).astype(out_ref.dtype)

    return kernel


@jax.jit
def mnist_classifier_forward(params, x_bsi):
    """x_bsi: (batch, seq, input_size) -> (batch, output_size) log-probs."""
    B, S, _ = x_bsi.shape
    gru_layers = params["gru"]
    H = gru_layers[0]["w_hh"].shape[-1]
    w_out = params["linear"]["w"]
    O = w_out.shape[-1]

    args = [x_bsi.astype(jnp.float32)]
    for lp in gru_layers:
        bias = jnp.stack(
            [lp["b_ih"][0] + lp["b_hh"][0],   # r: both biases fold into pre_r
             lp["b_ih"][1] + lp["b_hh"][1],   # z: both biases fold into pre_z
             lp["b_ih"][2],                   # n: input-side bias
             lp["b_hh"][2]],                  # n: hidden-side bias (inside r*)
            axis=0)[:, None, :]               # (4, 1, H)
        args += [lp["w_ih"].astype(jnp.bfloat16),
                 lp["w_hh"].astype(jnp.bfloat16),
                 bias.astype(jnp.float32)]
    args += [w_out.astype(jnp.bfloat16),
             params["linear"]["b"].reshape(1, O).astype(jnp.float32)]

    kernel = _make_fused_kernel(num_layers=len(gru_layers), batch=B,
                                seq_len=S, hidden=H)
    return pl.pallas_call(
        kernel,
        out_shape=jax.ShapeDtypeStruct((B, O), jnp.float32),
        in_specs=[pl.BlockSpec(memory_space=pltpu.MemorySpace.VMEM)] * len(args),
        out_specs=pl.BlockSpec(memory_space=pltpu.MemorySpace.VMEM),
        scratch_shapes=[pltpu.VMEM((S, B, H), jnp.float32)],
    )(*args)


# ----------------------------------------------------------------------------
# Parameters (PyTorch-equivalent init, gate order [r, z, n], pre-transposed
# to (in_features, H) per gate so MXU matmuls are plain x @ W).
# ----------------------------------------------------------------------------
def init_params(key, input_size, hidden_size, output_size, num_layers):
    params = {"gru": [], "linear": None}
    k = 1.0 / float(hidden_size) ** 0.5
    for layer in range(num_layers):
        in_f = input_size if layer == 0 else hidden_size
        key, k1, k2, k3, k4 = jax.random.split(key, 5)
        params["gru"].append({
            "w_ih": jax.random.uniform(k1, (3, in_f, hidden_size),
                                       jnp.float32, -k, k),
            "w_hh": jax.random.uniform(k2, (3, hidden_size, hidden_size),
                                       jnp.float32, -k, k),
            "b_ih": jax.random.uniform(k3, (3, hidden_size), jnp.float32, -k, k),
            "b_hh": jax.random.uniform(k4, (3, hidden_size), jnp.float32, -k, k),
        })
    key, k1, k2 = jax.random.split(key, 3)
    params["linear"] = {
        "w": jax.random.uniform(k1, (hidden_size, output_size),
                                jnp.float32, -k, k),
        "b": jax.random.uniform(k2, (output_size,), jnp.float32, -k, k),
    }
    return params


# ----------------------------------------------------------------------------
# Pure-JAX reference (same bf16-operand / f32-accumulate matmul convention)
# ----------------------------------------------------------------------------
@jax.jit
def reference_forward(params, x_bsi):
    B, S, _ = x_bsi.shape
    h_seq = x_bsi.astype(jnp.float32)
    for lp in params["gru"]:
        H = lp["w_hh"].shape[-1]
        wih = lp["w_ih"].astype(jnp.bfloat16)
        whh = lp["w_hh"].astype(jnp.bfloat16)
        h = jnp.zeros((B, H), jnp.float32)
        outs = []
        for t in range(S):
            xt = h_seq[:, t, :].astype(jnp.bfloat16)
            hb = h.astype(jnp.bfloat16)
            gx = [jnp.dot(xt, wih[g], preferred_element_type=jnp.float32)
                  + lp["b_ih"][g] for g in range(3)]
            gh = [jnp.dot(hb, whh[g], preferred_element_type=jnp.float32)
                  + lp["b_hh"][g] for g in range(3)]
            r = jax.nn.sigmoid(gx[0] + gh[0])
            z = jax.nn.sigmoid(gx[1] + gh[1])
            n = jnp.tanh(gx[2] + r * gh[2])
            h = (1.0 - z) * n + z * h
            outs.append(h)
        h_seq = jnp.stack(outs, axis=1)
    logits = jnp.dot(h_seq[:, -1, :].astype(jnp.bfloat16),
                     params["linear"]["w"].astype(jnp.bfloat16),
                     preferred_element_type=jnp.float32) + params["linear"]["b"]
    return jax.nn.log_softmax(logits, axis=1)


if __name__ == "__main__":
    # small shapes consistent with the module's forward
    batch, seq, input_size = 4, 8, 16
    hidden_size, output_size, num_layers = 32, 10, 2

    key = jax.random.PRNGKey(0)
    key, pkey, xkey = jax.random.split(key, 3)
    params = init_params(pkey, input_size, hidden_size, output_size, num_layers)
    x = jax.random.normal(xkey, (batch, seq, input_size), jnp.float32)

    out = mnist_classifier_forward(params, x)
    jax.block_until_ready(out)

    assert out.shape == (batch, output_size)
    # rows of exp(log_softmax) must sum to ~1
    assert jnp.allclose(jnp.sum(jnp.exp(out), axis=1), 1.0, atol=1e-4)
    # cross-check against a pure-JAX reference using the same matmul precision
    ref = reference_forward(params, x)
    assert jnp.allclose(out, ref, atol=2e-2), float(jnp.max(jnp.abs(out - ref)))
    print("KERNEL_OK")
</pallas_src>

<mosaic_0001>
module attributes {stable_mosaic.version = 11 : i64} {
  func.func @kernel(%arg0: memref<4x8x16xf32, #tpu.memory_space<vmem>>, %arg1: memref<3x16x32xbf16, #tpu.memory_space<vmem>>, %arg2: memref<3x32x32xbf16, #tpu.memory_space<vmem>>, %arg3: memref<4x1x32xf32, #tpu.memory_space<vmem>>, %arg4: memref<3x32x32xbf16, #tpu.memory_space<vmem>>, %arg5: memref<3x32x32xbf16, #tpu.memory_space<vmem>>, %arg6: memref<4x1x32xf32, #tpu.memory_space<vmem>>, %arg7: memref<32x10xbf16, #tpu.memory_space<vmem>>, %arg8: memref<1x10xf32, #tpu.memory_space<vmem>>, %arg9: memref<4x10xf32, #tpu.memory_space<vmem>>, %arg10: memref<8x4x32xf32, #tpu.memory_space<vmem>>) attributes {dimension_semantics = [], scalar_prefetch = 0 : i64, scratch_operands = 1 : i64, tpu.core_type = #tpu.core_type<tc>} {
    %c0 = arith.constant 0 : index
    %c0_0 = arith.constant 0 : index
    %c0_1 = arith.constant 0 : index
    %0 = vector.load %arg0[%c0, %c0_0, %c0_1] : memref<4x8x16xf32, #tpu.memory_space<vmem>>, vector<4x8x16xf32>
    %1 = vector.shape_cast %0 : vector<4x8x16xf32> to vector<32x16xf32>
    %2 = arith.truncf %1 : vector<32x16xf32> to vector<32x16xbf16>
    %c0_2 = arith.constant 0 : index
    %c0_3 = arith.constant 0 : index
    %c0_4 = arith.constant 0 : index
    %3 = vector.load %arg1[%c0_2, %c0_3, %c0_4] : memref<3x16x32xbf16, #tpu.memory_space<vmem>>, vector<1x16x32xbf16>
    %4 = vector.shape_cast %3 : vector<1x16x32xbf16> to vector<16x32xbf16>
    %cst = arith.constant dense<0.000000e+00> : vector<32x32xf32>
    %5 = tpu.matmul %2, %4, %cst {dimension_numbers = #tpu.dot_dimension_numbers<[1], [0], [0], [1], [0, 0, 1, 1], [], []>} : vector<32x16xbf16>, vector<16x32xbf16>, vector<32x32xf32> -> vector<32x32xf32>
    %c0_5 = arith.constant 0 : index
    %c0_6 = arith.constant 0 : index
    %c0_7 = arith.constant 0 : index
    %6 = vector.load %arg3[%c0_5, %c0_6, %c0_7] : memref<4x1x32xf32, #tpu.memory_space<vmem>>, vector<1x1x32xf32>
    %7 = vector.shape_cast %6 : vector<1x1x32xf32> to vector<1x32xf32>
    %8 = vector.broadcast %7 : vector<1x32xf32> to vector<32x32xf32>
    %9 = arith.addf %5, %8 : vector<32x32xf32>
    %c1 = arith.constant 1 : index
    %c0_8 = arith.constant 0 : index
    %c0_9 = arith.constant 0 : index
    %10 = vector.load %arg1[%c1, %c0_8, %c0_9] : memref<3x16x32xbf16, #tpu.memory_space<vmem>>, vector<1x16x32xbf16>
    %11 = vector.shape_cast %10 : vector<1x16x32xbf16> to vector<16x32xbf16>
    %cst_10 = arith.constant dense<0.000000e+00> : vector<32x32xf32>
    %12 = tpu.matmul %2, %11, %cst_10 {dimension_numbers = #tpu.dot_dimension_numbers<[1], [0], [0], [1], [0, 0, 1, 1], [], []>} : vector<32x16xbf16>, vector<16x32xbf16>, vector<32x32xf32> -> vector<32x32xf32>
    %c1_11 = arith.constant 1 : index
    %c0_12 = arith.constant 0 : index
    %c0_13 = arith.constant 0 : index
    %13 = vector.load %arg3[%c1_11, %c0_12, %c0_13] : memref<4x1x32xf32, #tpu.memory_space<vmem>>, vector<1x1x32xf32>
    %14 = vector.shape_cast %13 : vector<1x1x32xf32> to vector<1x32xf32>
    %15 = vector.broadcast %14 : vector<1x32xf32> to vector<32x32xf32>
    %16 = arith.addf %12, %15 : vector<32x32xf32>
    %c2 = arith.constant 2 : index
    %c0_14 = arith.constant 0 : index
    %c0_15 = arith.constant 0 : index
    %17 = vector.load %arg1[%c2, %c0_14, %c0_15] : memref<3x16x32xbf16, #tpu.memory_space<vmem>>, vector<1x16x32xbf16>
    %18 = vector.shape_cast %17 : vector<1x16x32xbf16> to vector<16x32xbf16>
    %cst_16 = arith.constant dense<0.000000e+00> : vector<32x32xf32>
    %19 = tpu.matmul %2, %18, %cst_16 {dimension_numbers = #tpu.dot_dimension_numbers<[1], [0], [0], [1], [0, 0, 1, 1], [], []>} : vector<32x16xbf16>, vector<16x32xbf16>, vector<32x32xf32> -> vector<32x32xf32>
    %c2_17 = arith.constant 2 : index
    %c0_18 = arith.constant 0 : index
    %c0_19 = arith.constant 0 : index
    %20 = vector.load %arg3[%c2_17, %c0_18, %c0_19] : memref<4x1x32xf32, #tpu.memory_space<vmem>>, vector<1x1x32xf32>
    %21 = vector.shape_cast %20 : vector<1x1x32xf32> to vector<1x32xf32>
    %22 = vector.broadcast %21 : vector<1x32xf32> to vector<32x32xf32>
    %23 = arith.addf %19, %22 : vector<32x32xf32>
    %24 = vector.shape_cast %9 : vector<32x32xf32> to vector<4x8x32xf32>
    %25 = vector.shape_cast %16 : vector<32x32xf32> to vector<4x8x32xf32>
    %26 = vector.shape_cast %23 : vector<32x32xf32> to vector<4x8x32xf32>
    %c0_20 = arith.constant 0 : index
    %c0_21 = arith.constant 0 : index
    %c0_22 = arith.constant 0 : index
    %27 = vector.load %arg2[%c0_20, %c0_21, %c0_22] : memref<3x32x32xbf16, #tpu.memory_space<vmem>>, vector<1x32x32xbf16>
    %28 = vector.shape_cast %27 : vector<1x32x32xbf16> to vector<32x32xbf16>
    %c1_23 = arith.constant 1 : index
    %c0_24 = arith.constant 0 : index
    %c0_25 = arith.constant 0 : index
    %29 = vector.load %arg2[%c1_23, %c0_24, %c0_25] : memref<3x32x32xbf16, #tpu.memory_space<vmem>>, vector<1x32x32xbf16>
    %30 = vector.shape_cast %29 : vector<1x32x32xbf16> to vector<32x32xbf16>
    %c2_26 = arith.constant 2 : index
    %c0_27 = arith.constant 0 : index
    %c0_28 = arith.constant 0 : index
    %31 = vector.load %arg2[%c2_26, %c0_27, %c0_28] : memref<3x32x32xbf16, #tpu.memory_space<vmem>>, vector<1x32x32xbf16>
    %32 = vector.shape_cast %31 : vector<1x32x32xbf16> to vector<32x32xbf16>
    %c3 = arith.constant 3 : index
    %c0_29 = arith.constant 0 : index
    %c0_30 = arith.constant 0 : index
    %33 = vector.load %arg3[%c3, %c0_29, %c0_30] : memref<4x1x32xf32, #tpu.memory_space<vmem>>, vector<1x1x32xf32>
    %34 = vector.shape_cast %33 : vector<1x1x32xf32> to vector<1x32xf32>
    %35 = vector.shape_cast %34 : vector<1x32xf32> to vector<1x32xf32>
    %36 = vector.broadcast %35 : vector<1x32xf32> to vector<4x32xf32>
    %cst_31 = arith.constant 0.000000e+00 : f32
    %37 = vector.broadcast %cst_31 : f32 to vector<4x32xf32>
    %38 = arith.truncf %37 : vector<4x32xf32> to vector<4x32xbf16>
    %cst_32 = arith.constant dense<0.000000e+00> : vector<4x32xf32>
    %39 = tpu.matmul %38, %28, %cst_32 {dimension_numbers = #tpu.dot_dimension_numbers<[1], [0], [0], [1], [0, 0, 1, 1], [], []>} : vector<4x32xbf16>, vector<32x32xbf16>, vector<4x32xf32> -> vector<4x32xf32>
    %cst_33 = arith.constant dense<0.000000e+00> : vector<4x32xf32>
    %40 = tpu.matmul %38, %30, %cst_33 {dimension_numbers = #tpu.dot_dimension_numbers<[1], [0], [0], [1], [0, 0, 1, 1], [], []>} : vector<4x32xbf16>, vector<32x32xbf16>, vector<4x32xf32> -> vector<4x32xf32>
    %cst_34 = arith.constant dense<0.000000e+00> : vector<4x32xf32>
    %41 = tpu.matmul %38, %32, %cst_34 {dimension_numbers = #tpu.dot_dimension_numbers<[1], [0], [0], [1], [0, 0, 1, 1], [], []>} : vector<4x32xbf16>, vector<32x32xbf16>, vector<4x32xf32> -> vector<4x32xf32>
    %42 = vector.extract_strided_slice %24 {offsets = [0, 0, 0], sizes = [4, 1, 32], strides = [1, 1, 1]} : vector<4x8x32xf32> to vector<4x1x32xf32>
    %43 = vector.shape_cast %42 : vector<4x1x32xf32> to vector<4x32xf32>
    %44 = arith.addf %43, %39 : vector<4x32xf32>
    %45 = arith.negf %44 : vector<4x32xf32>
    %46 = math.exp %45 : vector<4x32xf32>
    %cst_35 = arith.constant 1.000000e+00 : f32
    %47 = vector.broadcast %cst_35 : f32 to vector<4x32xf32>
    %48 = arith.addf %47, %46 : vector<4x32xf32>
    %49 = arith.divf %47, %48 : vector<4x32xf32>
    %50 = vector.extract_strided_slice %25 {offsets = [0, 0, 0], sizes = [4, 1, 32], strides = [1, 1, 1]} : vector<4x8x32xf32> to vector<4x1x32xf32>
    %51 = vector.shape_cast %50 : vector<4x1x32xf32> to vector<4x32xf32>
    %52 = arith.addf %51, %40 : vector<4x32xf32>
    %53 = arith.negf %52 : vector<4x32xf32>
    %54 = math.exp %53 : vector<4x32xf32>
    %cst_36 = arith.constant 1.000000e+00 : f32
    %55 = vector.broadcast %cst_36 : f32 to vector<4x32xf32>
    %56 = arith.addf %55, %54 : vector<4x32xf32>
    %57 = arith.divf %55, %56 : vector<4x32xf32>
    %58 = vector.extract_strided_slice %26 {offsets = [0, 0, 0], sizes = [4, 1, 32], strides = [1, 1, 1]} : vector<4x8x32xf32> to vector<4x1x32xf32>
    %59 = vector.shape_cast %58 : vector<4x1x32xf32> to vector<4x32xf32>
    %60 = arith.addf %41, %36 : vector<4x32xf32>
    %61 = arith.mulf %49, %60 : vector<4x32xf32>
    %62 = arith.addf %59, %61 : vector<4x32xf32>
    %63 = math.tanh %62 : vector<4x32xf32>
    %cst_37 = arith.constant 1.000000e+00 : f32
    %64 = vector.broadcast %cst_37 : f32 to vector<4x32xf32>
    %65 = arith.subf %64, %57 : vector<4x32xf32>
    %66 = arith.mulf %65, %63 : vector<4x32xf32>
    %67 = arith.mulf %57, %37 : vector<4x32xf32>
    %68 = arith.addf %66, %67 : vector<4x32xf32>
    %c0_38 = arith.constant 0 : index
    %c0_39 = arith.constant 0 : index
    %c0_40 = arith.constant 0 : index
    %69 = vector.load %arg10[%c0_38, %c0_39, %c0_40] : memref<8x4x32xf32, #tpu.memory_space<vmem>>, vector<1x4x32xf32>
    %70 = vector.shape_cast %69 : vector<1x4x32xf32> to vector<4x32xf32>
    %71 = vector.shape_cast %68 : vector<4x32xf32> to vector<1x4x32xf32>
    tpu.vector_store %arg10[%c0_38, %c0_39, %c0_40], %71 {strides = array<i32>} : memref<8x4x32xf32, #tpu.memory_space<vmem>>, vector<1x4x32xf32>,
    %72 = arith.truncf %68 : vector<4x32xf32> to vector<4x32xbf16>
    %cst_41 = arith.constant dense<0.000000e+00> : vector<4x32xf32>
    %73 = tpu.matmul %72, %28, %cst_41 {dimension_numbers = #tpu.dot_dimension_numbers<[1], [0], [0], [1], [0, 0, 1, 1], [], []>} : vector<4x32xbf16>, vector<32x32xbf16>, vector<4x32xf32> -> vector<4x32xf32>
    %cst_42 = arith.constant dense<0.000000e+00> : vector<4x32xf32>
    %74 = tpu.matmul %72, %30, %cst_42 {dimension_numbers = #tpu.dot_dimension_numbers<[1], [0], [0], [1], [0, 0, 1, 1], [], []>} : vector<4x32xbf16>, vector<32x32xbf16>, vector<4x32xf32> -> vector<4x32xf32>
    %cst_43 = arith.constant dense<0.000000e+00> : vector<4x32xf32>
    %75 = tpu.matmul %72, %32, %cst_43 {dimension_numbers = #tpu.dot_dimension_numbers<[1], [0], [0], [1], [0, 0, 1, 1], [], []>} : vector<4x32xbf16>, vector<32x32xbf16>, vector<4x32xf32> -> vector<4x32xf32>
    %76 = vector.extract_strided_slice %24 {offsets = [0, 1, 0], sizes = [4, 1, 32], strides = [1, 1, 1]} : vector<4x8x32xf32> to vector<4x1x32xf32>
    %77 = vector.shape_cast %76 : vector<4x1x32xf32> to vector<4x32xf32>
    %78 = arith.addf %77, %73 : vector<4x32xf32>
    %79 = arith.negf %78 : vector<4x32xf32>
    %80 = math.exp %79 : vector<4x32xf32>
    %cst_44 = arith.constant 1.000000e+00 : f32
    %81 = vector.broadcast %cst_44 : f32 to vector<4x32xf32>
    %82 = arith.addf %81, %80 : vector<4x32xf32>
    %83 = arith.divf %81, %82 : vector<4x32xf32>
    %84 = vector.extract_strided_slice %25 {offsets = [0, 1, 0], sizes = [4, 1, 32], strides = [1, 1, 1]} : vector<4x8x32xf32> to vector<4x1x32xf32>
    %85 = vector.shape_cast %84 : vector<4x1x32xf32> to vector<4x32xf32>
    %86 = arith.addf %85, %74 : vector<4x32xf32>
    %87 = arith.negf %86 : vector<4x32xf32>
    %88 = math.exp %87 : vector<4x32xf32>
    %cst_45 = arith.constant 1.000000e+00 : f32
    %89 = vector.broadcast %cst_45 : f32 to vector<4x32xf32>
    %90 = arith.addf %89, %88 : vector<4x32xf32>
    %91 = arith.divf %89, %90 : vector<4x32xf32>
    %92 = vector.extract_strided_slice %26 {offsets = [0, 1, 0], sizes = [4, 1, 32], strides = [1, 1, 1]} : vector<4x8x32xf32> to vector<4x1x32xf32>
    %93 = vector.shape_cast %92 : vector<4x1x32xf32> to vector<4x32xf32>
    %94 = arith.addf %75, %36 : vector<4x32xf32>
    %95 = arith.mulf %83, %94 : vector<4x32xf32>
    %96 = arith.addf %93, %95 : vector<4x32xf32>
    %97 = math.tanh %96 : vector<4x32xf32>
    %cst_46 = arith.constant 1.000000e+00 : f32
    %98 = vector.broadcast %cst_46 : f32 to vector<4x32xf32>
    %99 = arith.subf %98, %91 : vector<4x32xf32>
    %100 = arith.mulf %99, %97 : vector<4x32xf32>
    %101 = arith.mulf %91, %68 : vector<4x32xf32>
    %102 = arith.addf %100, %101 : vector<4x32xf32>
    %c1_47 = arith.constant 1 : index
    %c0_48 = arith.constant 0 : index
    %c0_49 = arith.constant 0 : index
    %103 = vector.load %arg10[%c1_47, %c0_48, %c0_49] : memref<8x4x32xf32, #tpu.memory_space<vmem>>, vector<1x4x32xf32>
    %104 = vector.shape_cast %103 : vector<1x4x32xf32> to vector<4x32xf32>
    %105 = vector.shape_cast %102 : vector<4x32xf32> to vector<1x4x32xf32>
    tpu.vector_store %arg10[%c1_47, %c0_48, %c0_49], %105 {strides = array<i32>} : memref<8x4x32xf32, #tpu.memory_space<vmem>>, vector<1x4x32xf32>,
    %106 = arith.truncf %102 : vector<4x32xf32> to vector<4x32xbf16>
    %cst_50 = arith.constant dense<0.000000e+00> : vector<4x32xf32>
    %107 = tpu.matmul %106, %28, %cst_50 {dimension_numbers = #tpu.dot_dimension_numbers<[1], [0], [0], [1], [0, 0, 1, 1], [], []>} : vector<4x32xbf16>, vector<32x32xbf16>, vector<4x32xf32> -> vector<4x32xf32>
    %cst_51 = arith.constant dense<0.000000e+00> : vector<4x32xf32>
    %108 = tpu.matmul %106, %30, %cst_51 {dimension_numbers = #tpu.dot_dimension_numbers<[1], [0], [0], [1], [0, 0, 1, 1], [], []>} : vector<4x32xbf16>, vector<32x32xbf16>, vector<4x32xf32> -> vector<4x32xf32>
    %cst_52 = arith.constant dense<0.000000e+00> : vector<4x32xf32>
    %109 = tpu.matmul %106, %32, %cst_52 {dimension_numbers = #tpu.dot_dimension_numbers<[1], [0], [0], [1], [0, 0, 1, 1], [], []>} : vector<4x32xbf16>, vector<32x32xbf16>, vector<4x32xf32> -> vector<4x32xf32>
    %110 = vector.extract_strided_slice %24 {offsets = [0, 2, 0], sizes = [4, 1, 32], strides = [1, 1, 1]} : vector<4x8x32xf32> to vector<4x1x32xf32>
    %111 = vector.shape_cast %110 : vector<4x1x32xf32> to vector<4x32xf32>
    %112 = arith.addf %111, %107 : vector<4x32xf32>
    %113 = arith.negf %112 : vector<4x32xf32>
    %114 = math.exp %113 : vector<4x32xf32>
    %cst_53 = arith.constant 1.000000e+00 : f32
    %115 = vector.broadcast %cst_53 : f32 to vector<4x32xf32>
    %116 = arith.addf %115, %114 : vector<4x32xf32>
    %117 = arith.divf %115, %116 : vector<4x32xf32>
    %118 = vector.extract_strided_slice %25 {offsets = [0, 2, 0], sizes = [4, 1, 32], strides = [1, 1, 1]} : vector<4x8x32xf32> to vector<4x1x32xf32>
    %119 = vector.shape_cast %118 : vector<4x1x32xf32> to vector<4x32xf32>
    %120 = arith.addf %119, %108 : vector<4x32xf32>
    %121 = arith.negf %120 : vector<4x32xf32>
    %122 = math.exp %121 : vector<4x32xf32>
    %cst_54 = arith.constant 1.000000e+00 : f32
    %123 = vector.broadcast %cst_54 : f32 to vector<4x32xf32>
    %124 = arith.addf %123, %122 : vector<4x32xf32>
    %125 = arith.divf %123, %124 : vector<4x32xf32>
    %126 = vector.extract_strided_slice %26 {offsets = [0, 2, 0], sizes = [4, 1, 32], strides = [1, 1, 1]} : vector<4x8x32xf32> to vector<4x1x32xf32>
    %127 = vector.shape_cast %126 : vector<4x1x32xf32> to vector<4x32xf32>
    %128 = arith.addf %109, %36 : vector<4x32xf32>
    %129 = arith.mulf %117, %128 : vector<4x32xf32>
    %130 = arith.addf %127, %129 : vector<4x32xf32>
    %131 = math.tanh %130 : vector<4x32xf32>
    %cst_55 = arith.constant 1.000000e+00 : f32
    %132 = vector.broadcast %cst_55 : f32 to vector<4x32xf32>
    %133 = arith.subf %132, %125 : vector<4x32xf32>
    %134 = arith.mulf %133, %131 : vector<4x32xf32>
    %135 = arith.mulf %125, %102 : vector<4x32xf32>
    %136 = arith.addf %134, %135 : vector<4x32xf32>
    %c2_56 = arith.constant 2 : index
    %c0_57 = arith.constant 0 : index
    %c0_58 = arith.constant 0 : index
    %137 = vector.load %arg10[%c2_56, %c0_57, %c0_58] : memref<8x4x32xf32, #tpu.memory_space<vmem>>, vector<1x4x32xf32>
    %138 = vector.shape_cast %137 : vector<1x4x32xf32> to vector<4x32xf32>
    %139 = vector.shape_cast %136 : vector<4x32xf32> to vector<1x4x32xf32>
    tpu.vector_store %arg10[%c2_56, %c0_57, %c0_58], %139 {strides = array<i32>} : memref<8x4x32xf32, #tpu.memory_space<vmem>>, vector<1x4x32xf32>,
    %140 = arith.truncf %136 : vector<4x32xf32> to vector<4x32xbf16>
    %cst_59 = arith.constant dense<0.000000e+00> : vector<4x32xf32>
    %141 = tpu.matmul %140, %28, %cst_59 {dimension_numbers = #tpu.dot_dimension_numbers<[1], [0], [0], [1], [0, 0, 1, 1], [], []>} : vector<4x32xbf16>, vector<32x32xbf16>, vector<4x32xf32> -> vector<4x32xf32>
    %cst_60 = arith.constant dense<0.000000e+00> : vector<4x32xf32>
    %142 = tpu.matmul %140, %30, %cst_60 {dimension_numbers = #tpu.dot_dimension_numbers<[1], [0], [0], [1], [0, 0, 1, 1], [], []>} : vector<4x32xbf16>, vector<32x32xbf16>, vector<4x32xf32> -> vector<4x32xf32>
    %cst_61 = arith.constant dense<0.000000e+00> : vector<4x32xf32>
    %143 = tpu.matmul %140, %32, %cst_61 {dimension_numbers = #tpu.dot_dimension_numbers<[1], [0], [0], [1], [0, 0, 1, 1], [], []>} : vector<4x32xbf16>, vector<32x32xbf16>, vector<4x32xf32> -> vector<4x32xf32>
    %144 = vector.extract_strided_slice %24 {offsets = [0, 3, 0], sizes = [4, 1, 32], strides = [1, 1, 1]} : vector<4x8x32xf32> to vector<4x1x32xf32>
    %145 = vector.shape_cast %144 : vector<4x1x32xf32> to vector<4x32xf32>
    %146 = arith.addf %145, %141 : vector<4x32xf32>
    %147 = arith.negf %146 : vector<4x32xf32>
    %148 = math.exp %147 : vector<4x32xf32>
    %cst_62 = arith.constant 1.000000e+00 : f32
    %149 = vector.broadcast %cst_62 : f32 to vector<4x32xf32>
    %150 = arith.addf %149, %148 : vector<4x32xf32>
    %151 = arith.divf %149, %150 : vector<4x32xf32>
    %152 = vector.extract_strided_slice %25 {offsets = [0, 3, 0], sizes = [4, 1, 32], strides = [1, 1, 1]} : vector<4x8x32xf32> to vector<4x1x32xf32>
    %153 = vector.shape_cast %152 : vector<4x1x32xf32> to vector<4x32xf32>
    %154 = arith.addf %153, %142 : vector<4x32xf32>
    %155 = arith.negf %154 : vector<4x32xf32>
    %156 = math.exp %155 : vector<4x32xf32>
    %cst_63 = arith.constant 1.000000e+00 : f32
    %157 = vector.broadcast %cst_63 : f32 to vector<4x32xf32>
    %158 = arith.addf %157, %156 : vector<4x32xf32>
    %159 = arith.divf %157, %158 : vector<4x32xf32>
    %160 = vector.extract_strided_slice %26 {offsets = [0, 3, 0], sizes = [4, 1, 32], strides = [1, 1, 1]} : vector<4x8x32xf32> to vector<4x1x32xf32>
    %161 = vector.shape_cast %160 : vector<4x1x32xf32> to vector<4x32xf32>
    %162 = arith.addf %143, %36 : vector<4x32xf32>
    %163 = arith.mulf %151, %162 : vector<4x32xf32>
    %164 = arith.addf %161, %163 : vector<4x32xf32>
    %165 = math.tanh %164 : vector<4x32xf32>
    %cst_64 = arith.constant 1.000000e+00 : f32
    %166 = vector.broadcast %cst_64 : f32 to vector<4x32xf32>
    %167 = arith.subf %166, %159 : vector<4x32xf32>
    %168 = arith.mulf %167, %165 : vector<4x32xf32>
    %169 = arith.mulf %159, %136 : vector<4x32xf32>
    %170 = arith.addf %168, %169 : vector<4x32xf32>
    %c3_65 = arith.constant 3 : index
    %c0_66 = arith.constant 0 : index
    %c0_67 = arith.constant 0 : index
    %171 = vector.load %arg10[%c3_65, %c0_66, %c0_67] : memref<8x4x32xf32, #tpu.memory_space<vmem>>, vector<1x4x32xf32>
    %172 = vector.shape_cast %171 : vector<1x4x32xf32> to vector<4x32xf32>
    %173 = vector.shape_cast %170 : vector<4x32xf32> to vector<1x4x32xf32>
    tpu.vector_store %arg10[%c3_65, %c0_66, %c0_67], %173 {strides = array<i32>} : memref<8x4x32xf32, #tpu.memory_space<vmem>>, vector<1x4x32xf32>,
    %174 = arith.truncf %170 : vector<4x32xf32> to vector<4x32xbf16>
    %cst_68 = arith.constant dense<0.000000e+00> : vector<4x32xf32>
    %175 = tpu.matmul %174, %28, %cst_68 {dimension_numbers = #tpu.dot_dimension_numbers<[1], [0], [0], [1], [0, 0, 1, 1], [], []>} : vector<4x32xbf16>, vector<32x32xbf16>, vector<4x32xf32> -> vector<4x32xf32>
    %cst_69 = arith.constant dense<0.000000e+00> : vector<4x32xf32>
    %176 = tpu.matmul %174, %30, %cst_69 {dimension_numbers = #tpu.dot_dimension_numbers<[1], [0], [0], [1], [0, 0, 1, 1], [], []>} : vector<4x32xbf16>, vector<32x32xbf16>, vector<4x32xf32> -> vector<4x32xf32>
    %cst_70 = arith.constant dense<0.000000e+00> : vector<4x32xf32>
    %177 = tpu.matmul %174, %32, %cst_70 {dimension_numbers = #tpu.dot_dimension_numbers<[1], [0], [0], [1], [0, 0, 1, 1], [], []>} : vector<4x32xbf16>, vector<32x32xbf16>, vector<4x32xf32> -> vector<4x32xf32>
    %178 = vector.extract_strided_slice %24 {offsets = [0, 4, 0], sizes = [4, 1, 32], strides = [1, 1, 1]} : vector<4x8x32xf32> to vector<4x1x32xf32>
    %179 = vector.shape_cast %178 : vector<4x1x32xf32> to vector<4x32xf32>
    %180 = arith.addf %179, %175 : vector<4x32xf32>
    %181 = arith.negf %180 : vector<4x32xf32>
    %182 = math.exp %181 : vector<4x32xf32>
    %cst_71 = arith.constant 1.000000e+00 : f32
    %183 = vector.broadcast %cst_71 : f32 to vector<4x32xf32>
    %184 = arith.addf %183, %182 : vector<4x32xf32>
    %185 = arith.divf %183, %184 : vector<4x32xf32>
    %186 = vector.extract_strided_slice %25 {offsets = [0, 4, 0], sizes = [4, 1, 32], strides = [1, 1, 1]} : vector<4x8x32xf32> to vector<4x1x32xf32>
    %187 = vector.shape_cast %186 : vector<4x1x32xf32> to vector<4x32xf32>
    %188 = arith.addf %187, %176 : vector<4x32xf32>
    %189 = arith.negf %188 : vector<4x32xf32>
    %190 = math.exp %189 : vector<4x32xf32>
    %cst_72 = arith.constant 1.000000e+00 : f32
    %191 = vector.broadcast %cst_72 : f32 to vector<4x32xf32>
    %192 = arith.addf %191, %190 : vector<4x32xf32>
    %193 = arith.divf %191, %192 : vector<4x32xf32>
    %194 = vector.extract_strided_slice %26 {offsets = [0, 4, 0], sizes = [4, 1, 32], strides = [1, 1, 1]} : vector<4x8x32xf32> to vector<4x1x32xf32>
    %195 = vector.shape_cast %194 : vector<4x1x32xf32> to vector<4x32xf32>
    %196 = arith.addf %177, %36 : vector<4x32xf32>
    %197 = arith.mulf %185, %196 : vector<4x32xf32>
    %198 = arith.addf %195, %197 : vector<4x32xf32>
    %199 = math.tanh %198 : vector<4x32xf32>
    %cst_73 = arith.constant 1.000000e+00 : f32
    %200 = vector.broadcast %cst_73 : f32 to vector<4x32xf32>
    %201 = arith.subf %200, %193 : vector<4x32xf32>
    %202 = arith.mulf %201, %199 : vector<4x32xf32>
    %203 = arith.mulf %193, %170 : vector<4x32xf32>
    %204 = arith.addf %202, %203 : vector<4x32xf32>
    %c4 = arith.constant 4 : index
    %c0_74 = arith.constant 0 : index
    %c0_75 = arith.constant 0 : index
    %205 = vector.load %arg10[%c4, %c0_74, %c0_75] : memref<8x4x32xf32, #tpu.memory_space<vmem>>, vector<1x4x32xf32>
    %206 = vector.shape_cast %205 : vector<1x4x32xf32> to vector<4x32xf32>
    %207 = vector.shape_cast %204 : vector<4x32xf32> to vector<1x4x32xf32>
    tpu.vector_store %arg10[%c4, %c0_74, %c0_75], %207 {strides = array<i32>} : memref<8x4x32xf32, #tpu.memory_space<vmem>>, vector<1x4x32xf32>,
    %208 = arith.truncf %204 : vector<4x32xf32> to vector<4x32xbf16>
    %cst_76 = arith.constant dense<0.000000e+00> : vector<4x32xf32>
    %209 = tpu.matmul %208, %28, %cst_76 {dimension_numbers = #tpu.dot_dimension_numbers<[1], [0], [0], [1], [0, 0, 1, 1], [], []>} : vector<4x32xbf16>, vector<32x32xbf16>, vector<4x32xf32> -> vector<4x32xf32>
    %cst_77 = arith.constant dense<0.000000e+00> : vector<4x32xf32>
    %210 = tpu.matmul %208, %30, %cst_77 {dimension_numbers = #tpu.dot_dimension_numbers<[1], [0], [0], [1], [0, 0, 1, 1], [], []>} : vector<4x32xbf16>, vector<32x32xbf16>, vector<4x32xf32> -> vector<4x32xf32>
    %cst_78 = arith.constant dense<0.000000e+00> : vector<4x32xf32>
    %211 = tpu.matmul %208, %32, %cst_78 {dimension_numbers = #tpu.dot_dimension_numbers<[1], [0], [0], [1], [0, 0, 1, 1], [], []>} : vector<4x32xbf16>, vector<32x32xbf16>, vector<4x32xf32> -> vector<4x32xf32>
    %212 = vector.extract_strided_slice %24 {offsets = [0, 5, 0], sizes = [4, 1, 32], strides = [1, 1, 1]} : vector<4x8x32xf32> to vector<4x1x32xf32>
    %213 = vector.shape_cast %212 : vector<4x1x32xf32> to vector<4x32xf32>
    %214 = arith.addf %213, %209 : vector<4x32xf32>
    %215 = arith.negf %214 : vector<4x32xf32>
    %216 = math.exp %215 : vector<4x32xf32>
    %cst_79 = arith.constant 1.000000e+00 : f32
    %217 = vector.broadcast %cst_79 : f32 to vector<4x32xf32>
    %218 = arith.addf %217, %216 : vector<4x32xf32>
    %219 = arith.divf %217, %218 : vector<4x32xf32>
    %220 = vector.extract_strided_slice %25 {offsets = [0, 5, 0], sizes = [4, 1, 32], strides = [1, 1, 1]} : vector<4x8x32xf32> to vector<4x1x32xf32>
    %221 = vector.shape_cast %220 : vector<4x1x32xf32> to vector<4x32xf32>
    %222 = arith.addf %221, %210 : vector<4x32xf32>
    %223 = arith.negf %222 : vector<4x32xf32>
    %224 = math.exp %223 : vector<4x32xf32>
    %cst_80 = arith.constant 1.000000e+00 : f32
    %225 = vector.broadcast %cst_80 : f32 to vector<4x32xf32>
    %226 = arith.addf %225, %224 : vector<4x32xf32>
    %227 = arith.divf %225, %226 : vector<4x32xf32>
    %228 = vector.extract_strided_slice %26 {offsets = [0, 5, 0], sizes = [4, 1, 32], strides = [1, 1, 1]} : vector<4x8x32xf32> to vector<4x1x32xf32>
    %229 = vector.shape_cast %228 : vector<4x1x32xf32> to vector<4x32xf32>
    %230 = arith.addf %211, %36 : vector<4x32xf32>
    %231 = arith.mulf %219, %230 : vector<4x32xf32>
    %232 = arith.addf %229, %231 : vector<4x32xf32>
    %233 = math.tanh %232 : vector<4x32xf32>
    %cst_81 = arith.constant 1.000000e+00 : f32
    %234 = vector.broadcast %cst_81 : f32 to vector<4x32xf32>
    %235 = arith.subf %234, %227 : vector<4x32xf32>
    %236 = arith.mulf %235, %233 : vector<4x32xf32>
    %237 = arith.mulf %227, %204 : vector<4x32xf32>
    %238 = arith.addf %236, %237 : vector<4x32xf32>
    %c5 = arith.constant 5 : index
    %c0_82 = arith.constant 0 : index
    %c0_83 = arith.constant 0 : index
    %239 = vector.load %arg10[%c5, %c0_82, %c0_83] : memref<8x4x32xf32, #tpu.memory_space<vmem>>, vector<1x4x32xf32>
    %240 = vector.shape_cast %239 : vector<1x4x32xf32> to vector<4x32xf32>
    %241 = vector.shape_cast %238 : vector<4x32xf32> to vector<1x4x32xf32>
    tpu.vector_store %arg10[%c5, %c0_82, %c0_83], %241 {strides = array<i32>} : memref<8x4x32xf32, #tpu.memory_space<vmem>>, vector<1x4x32xf32>,
    %242 = arith.truncf %238 : vector<4x32xf32> to vector<4x32xbf16>
    %cst_84 = arith.constant dense<0.000000e+00> : vector<4x32xf32>
    %243 = tpu.matmul %242, %28, %cst_84 {dimension_numbers = #tpu.dot_dimension_numbers<[1], [0], [0], [1], [0, 0, 1, 1], [], []>} : vector<4x32xbf16>, vector<32x32xbf16>, vector<4x32xf32> -> vector<4x32xf32>
    %cst_85 = arith.constant dense<0.000000e+00> : vector<4x32xf32>
    %244 = tpu.matmul %242, %30, %cst_85 {dimension_numbers = #tpu.dot_dimension_numbers<[1], [0], [0], [1], [0, 0, 1, 1], [], []>} : vector<4x32xbf16>, vector<32x32xbf16>, vector<4x32xf32> -> vector<4x32xf32>
    %cst_86 = arith.constant dense<0.000000e+00> : vector<4x32xf32>
    %245 = tpu.matmul %242, %32, %cst_86 {dimension_numbers = #tpu.dot_dimension_numbers<[1], [0], [0], [1], [0, 0, 1, 1], [], []>} : vector<4x32xbf16>, vector<32x32xbf16>, vector<4x32xf32> -> vector<4x32xf32>
    %246 = vector.extract_strided_slice %24 {offsets = [0, 6, 0], sizes = [4, 1, 32], strides = [1, 1, 1]} : vector<4x8x32xf32> to vector<4x1x32xf32>
    %247 = vector.shape_cast %246 : vector<4x1x32xf32> to vector<4x32xf32>
    %248 = arith.addf %247, %243 : vector<4x32xf32>
    %249 = arith.negf %248 : vector<4x32xf32>
    %250 = math.exp %249 : vector<4x32xf32>
    %cst_87 = arith.constant 1.000000e+00 : f32
    %251 = vector.broadcast %cst_87 : f32 to vector<4x32xf32>
    %252 = arith.addf %251, %250 : vector<4x32xf32>
    %253 = arith.divf %251, %252 : vector<4x32xf32>
    %254 = vector.extract_strided_slice %25 {offsets = [0, 6, 0], sizes = [4, 1, 32], strides = [1, 1, 1]} : vector<4x8x32xf32> to vector<4x1x32xf32>
    %255 = vector.shape_cast %254 : vector<4x1x32xf32> to vector<4x32xf32>
    %256 = arith.addf %255, %244 : vector<4x32xf32>
    %257 = arith.negf %256 : vector<4x32xf32>
    %258 = math.exp %257 : vector<4x32xf32>
    %cst_88 = arith.constant 1.000000e+00 : f32
    %259 = vector.broadcast %cst_88 : f32 to vector<4x32xf32>
    %260 = arith.addf %259, %258 : vector<4x32xf32>
    %261 = arith.divf %259, %260 : vector<4x32xf32>
    %262 = vector.extract_strided_slice %26 {offsets = [0, 6, 0], sizes = [4, 1, 32], strides = [1, 1, 1]} : vector<4x8x32xf32> to vector<4x1x32xf32>
    %263 = vector.shape_cast %262 : vector<4x1x32xf32> to vector<4x32xf32>
    %264 = arith.addf %245, %36 : vector<4x32xf32>
    %265 = arith.mulf %253, %264 : vector<4x32xf32>
    %266 = arith.addf %263, %265 : vector<4x32xf32>
    %267 = math.tanh %266 : vector<4x32xf32>
    %cst_89 = arith.constant 1.000000e+00 : f32
    %268 = vector.broadcast %cst_89 : f32 to vector<4x32xf32>
    %269 = arith.subf %268, %261 : vector<4x32xf32>
    %270 = arith.mulf %269, %267 : vector<4x32xf32>
    %271 = arith.mulf %261, %238 : vector<4x32xf32>
    %272 = arith.addf %270, %271 : vector<4x32xf32>
    %c6 = arith.constant 6 : index
    %c0_90 = arith.constant 0 : index
    %c0_91 = arith.constant 0 : index
    %273 = vector.load %arg10[%c6, %c0_90, %c0_91] : memref<8x4x32xf32, #tpu.memory_space<vmem>>, vector<1x4x32xf32>
    %274 = vector.shape_cast %273 : vector<1x4x32xf32> to vector<4x32xf32>
    %275 = vector.shape_cast %272 : vector<4x32xf32> to vector<1x4x32xf32>
    tpu.vector_store %arg10[%c6, %c0_90, %c0_91], %275 {strides = array<i32>} : memref<8x4x32xf32, #tpu.memory_space<vmem>>, vector<1x4x32xf32>,
    %276 = arith.truncf %272 : vector<4x32xf32> to vector<4x32xbf16>
    %cst_92 = arith.constant dense<0.000000e+00> : vector<4x32xf32>
    %277 = tpu.matmul %276, %28, %cst_92 {dimension_numbers = #tpu.dot_dimension_numbers<[1], [0], [0], [1], [0, 0, 1, 1], [], []>} : vector<4x32xbf16>, vector<32x32xbf16>, vector<4x32xf32> -> vector<4x32xf32>
    %cst_93 = arith.constant dense<0.000000e+00> : vector<4x32xf32>
    %278 = tpu.matmul %276, %30, %cst_93 {dimension_numbers = #tpu.dot_dimension_numbers<[1], [0], [0], [1], [0, 0, 1, 1], [], []>} : vector<4x32xbf16>, vector<32x32xbf16>, vector<4x32xf32> -> vector<4x32xf32>
    %cst_94 = arith.constant dense<0.000000e+00> : vector<4x32xf32>
    %279 = tpu.matmul %276, %32, %cst_94 {dimension_numbers = #tpu.dot_dimension_numbers<[1], [0], [0], [1], [0, 0, 1, 1], [], []>} : vector<4x32xbf16>, vector<32x32xbf16>, vector<4x32xf32> -> vector<4x32xf32>
    %280 = vector.extract_strided_slice %24 {offsets = [0, 7, 0], sizes = [4, 1, 32], strides = [1, 1, 1]} : vector<4x8x32xf32> to vector<4x1x32xf32>
    %281 = vector.shape_cast %280 : vector<4x1x32xf32> to vector<4x32xf32>
    %282 = arith.addf %281, %277 : vector<4x32xf32>
    %283 = arith.negf %282 : vector<4x32xf32>
    %284 = math.exp %283 : vector<4x32xf32>
    %cst_95 = arith.constant 1.000000e+00 : f32
    %285 = vector.broadcast %cst_95 : f32 to vector<4x32xf32>
    %286 = arith.addf %285, %284 : vector<4x32xf32>
    %287 = arith.divf %285, %286 : vector<4x32xf32>
    %288 = vector.extract_strided_slice %25 {offsets = [0, 7, 0], sizes = [4, 1, 32], strides = [1, 1, 1]} : vector<4x8x32xf32> to vector<4x1x32xf32>
    %289 = vector.shape_cast %288 : vector<4x1x32xf32> to vector<4x32xf32>
    %290 = arith.addf %289, %278 : vector<4x32xf32>
    %291 = arith.negf %290 : vector<4x32xf32>
    %292 = math.exp %291 : vector<4x32xf32>
    %cst_96 = arith.constant 1.000000e+00 : f32
    %293 = vector.broadcast %cst_96 : f32 to vector<4x32xf32>
    %294 = arith.addf %293, %292 : vector<4x32xf32>
    %295 = arith.divf %293, %294 : vector<4x32xf32>
    %296 = vector.extract_strided_slice %26 {offsets = [0, 7, 0], sizes = [4, 1, 32], strides = [1, 1, 1]} : vector<4x8x32xf32> to vector<4x1x32xf32>
    %297 = vector.shape_cast %296 : vector<4x1x32xf32> to vector<4x32xf32>
    %298 = arith.addf %279, %36 : vector<4x32xf32>
    %299 = arith.mulf %287, %298 : vector<4x32xf32>
    %300 = arith.addf %297, %299 : vector<4x32xf32>
    %301 = math.tanh %300 : vector<4x32xf32>
    %cst_97 = arith.constant 1.000000e+00 : f32
    %302 = vector.broadcast %cst_97 : f32 to vector<4x32xf32>
    %303 = arith.subf %302, %295 : vector<4x32xf32>
    %304 = arith.mulf %303, %301 : vector<4x32xf32>
    %305 = arith.mulf %295, %272 : vector<4x32xf32>
    %306 = arith.addf %304, %305 : vector<4x32xf32>
    %c7 = arith.constant 7 : index
    %c0_98 = arith.constant 0 : index
    %c0_99 = arith.constant 0 : index
    %307 = vector.load %arg10[%c7, %c0_98, %c0_99] : memref<8x4x32xf32, #tpu.memory_space<vmem>>, vector<1x4x32xf32>
    %308 = vector.shape_cast %307 : vector<1x4x32xf32> to vector<4x32xf32>
    %309 = vector.shape_cast %306 : vector<4x32xf32> to vector<1x4x32xf32>
    tpu.vector_store %arg10[%c7, %c0_98, %c0_99], %309 {strides = array<i32>} : memref<8x4x32xf32, #tpu.memory_space<vmem>>, vector<1x4x32xf32>,
    %c0_100 = arith.constant 0 : index
    %c0_101 = arith.constant 0 : index
    %c0_102 = arith.constant 0 : index
    %310 = vector.load %arg10[%c0_100, %c0_101, %c0_102] : memref<8x4x32xf32, #tpu.memory_space<vmem>>, vector<8x4x32xf32>
    %311 = vector.shape_cast %310 : vector<8x4x32xf32> to vector<32x32xf32>
    %312 = arith.truncf %311 : vector<32x32xf32> to vector<32x32xbf16>
    %c0_103 = arith.constant 0 : index
    %c0_104 = arith.constant 0 : index
    %c0_105 = arith.constant 0 : index
    %313 = vector.load %arg4[%c0_103, %c0_104, %c0_105] : memref<3x32x32xbf16, #tpu.memory_space<vmem>>, vector<1x32x32xbf16>
    %314 = vector.shape_cast %313 : vector<1x32x32xbf16> to vector<32x32xbf16>
    %cst_106 = arith.constant dense<0.000000e+00> : vector<32x32xf32>
    %315 = tpu.matmul %312, %314, %cst_106 {dimension_numbers = #tpu.dot_dimension_numbers<[1], [0], [0], [1], [0, 0, 1, 1], [], []>} : vector<32x32xbf16>, vector<32x32xbf16>, vector<32x32xf32> -> vector<32x32xf32>
    %c0_107 = arith.constant 0 : index
    %c0_108 = arith.constant 0 : index
    %c0_109 = arith.constant 0 : index
    %316 = vector.load %arg6[%c0_107, %c0_108, %c0_109] : memref<4x1x32xf32, #tpu.memory_space<vmem>>, vector<1x1x32xf32>
    %317 = vector.shape_cast %316 : vector<1x1x32xf32> to vector<1x32xf32>
    %318 = vector.broadcast %317 : vector<1x32xf32> to vector<32x32xf32>
    %319 = arith.addf %315, %318 : vector<32x32xf32>
    %c1_110 = arith.constant 1 : index
    %c0_111 = arith.constant 0 : index
    %c0_112 = arith.constant 0 : index
    %320 = vector.load %arg4[%c1_110, %c0_111, %c0_112] : memref<3x32x32xbf16, #tpu.memory_space<vmem>>, vector<1x32x32xbf16>
    %321 = vector.shape_cast %320 : vector<1x32x32xbf16> to vector<32x32xbf16>
    %cst_113 = arith.constant dense<0.000000e+00> : vector<32x32xf32>
    %322 = tpu.matmul %312, %321, %cst_113 {dimension_numbers = #tpu.dot_dimension_numbers<[1], [0], [0], [1], [0, 0, 1, 1], [], []>} : vector<32x32xbf16>, vector<32x32xbf16>, vector<32x32xf32> -> vector<32x32xf32>
    %c1_114 = arith.constant 1 : index
    %c0_115 = arith.constant 0 : index
    %c0_116 = arith.constant 0 : index
    %323 = vector.load %arg6[%c1_114, %c0_115, %c0_116] : memref<4x1x32xf32, #tpu.memory_space<vmem>>, vector<1x1x32xf32>
    %324 = vector.shape_cast %323 : vector<1x1x32xf32> to vector<1x32xf32>
    %325 = vector.broadcast %324 : vector<1x32xf32> to vector<32x32xf32>
    %326 = arith.addf %322, %325 : vector<32x32xf32>
    %c2_117 = arith.constant 2 : index
    %c0_118 = arith.constant 0 : index
    %c0_119 = arith.constant 0 : index
    %327 = vector.load %arg4[%c2_117, %c0_118, %c0_119] : memref<3x32x32xbf16, #tpu.memory_space<vmem>>, vector<1x32x32xbf16>
    %328 = vector.shape_cast %327 : vector<1x32x32xbf16> to vector<32x32xbf16>
    %cst_120 = arith.constant dense<0.000000e+00> : vector<32x32xf32>
    %329 = tpu.matmul %312, %328, %cst_120 {dimension_numbers = #tpu.dot_dimension_numbers<[1], [0], [0], [1], [0, 0, 1, 1], [], []>} : vector<32x32xbf16>, vector<32x32xbf16>, vector<32x32xf32> -> vector<32x32xf32>
    %c2_121 = arith.constant 2 : index
    %c0_122 = arith.constant 0 : index
    %c0_123 = arith.constant 0 : index
    %330 = vector.load %arg6[%c2_121, %c0_122, %c0_123] : memref<4x1x32xf32, #tpu.memory_space<vmem>>, vector<1x1x32xf32>
    %331 = vector.shape_cast %330 : vector<1x1x32xf32> to vector<1x32xf32>
    %332 = vector.broadcast %331 : vector<1x32xf32> to vector<32x32xf32>
    %333 = arith.addf %329, %332 : vector<32x32xf32>
    %334 = vector.shape_cast %319 : vector<32x32xf32> to vector<8x4x32xf32>
    %335 = vector.shape_cast %326 : vector<32x32xf32> to vector<8x4x32xf32>
    %336 = vector.shape_cast %333 : vector<32x32xf32> to vector<8x4x32xf32>
    %c0_124 = arith.constant 0 : index
    %c0_125 = arith.constant 0 : index
    %c0_126 = arith.constant 0 : index
    %337 = vector.load %arg5[%c0_124, %c0_125, %c0_126] : memref<3x32x32xbf16, #tpu.memory_space<vmem>>, vector<1x32x32xbf16>
    %338 = vector.shape_cast %337 : vector<1x32x32xbf16> to vector<32x32xbf16>
    %c1_127 = arith.constant 1 : index
    %c0_128 = arith.constant 0 : index
    %c0_129 = arith.constant 0 : index
    %339 = vector.load %arg5[%c1_127, %c0_128, %c0_129] : memref<3x32x32xbf16, #tpu.memory_space<vmem>>, vector<1x32x32xbf16>
    %340 = vector.shape_cast %339 : vector<1x32x32xbf16> to vector<32x32xbf16>
    %c2_130 = arith.constant 2 : index
    %c0_131 = arith.constant 0 : index
    %c0_132 = arith.constant 0 : index
    %341 = vector.load %arg5[%c2_130, %c0_131, %c0_132] : memref<3x32x32xbf16, #tpu.memory_space<vmem>>, vector<1x32x32xbf16>
    %342 = vector.shape_cast %341 : vector<1x32x32xbf16> to vector<32x32xbf16>
    %c3_133 = arith.constant 3 : index
    %c0_134 = arith.constant 0 : index
    %c0_135 = arith.constant 0 : index
    %343 = vector.load %arg6[%c3_133, %c0_134, %c0_135] : memref<4x1x32xf32, #tpu.memory_space<vmem>>, vector<1x1x32xf32>
    %344 = vector.shape_cast %343 : vector<1x1x32xf32> to vector<1x32xf32>
    %345 = vector.shape_cast %344 : vector<1x32xf32> to vector<1x32xf32>
    %346 = vector.broadcast %345 : vector<1x32xf32> to vector<4x32xf32>
    %cst_136 = arith.constant 0.000000e+00 : f32
    %347 = vector.broadcast %cst_136 : f32 to vector<4x32xf32>
    %348 = arith.truncf %347 : vector<4x32xf32> to vector<4x32xbf16>
    %cst_137 = arith.constant dense<0.000000e+00> : vector<4x32xf32>
    %349 = tpu.matmul %348, %338, %cst_137 {dimension_numbers = #tpu.dot_dimension_numbers<[1], [0], [0], [1], [0, 0, 1, 1], [], []>} : vector<4x32xbf16>, vector<32x32xbf16>, vector<4x32xf32> -> vector<4x32xf32>
    %cst_138 = arith.constant dense<0.000000e+00> : vector<4x32xf32>
    %350 = tpu.matmul %348, %340, %cst_138 {dimension_numbers = #tpu.dot_dimension_numbers<[1], [0], [0], [1], [0, 0, 1, 1], [], []>} : vector<4x32xbf16>, vector<32x32xbf16>, vector<4x32xf32> -> vector<4x32xf32>
    %cst_139 = arith.constant dense<0.000000e+00> : vector<4x32xf32>
    %351 = tpu.matmul %348, %342, %cst_139 {dimension_numbers = #tpu.dot_dimension_numbers<[1], [0], [0], [1], [0, 0, 1, 1], [], []>} : vector<4x32xbf16>, vector<32x32xbf16>, vector<4x32xf32> -> vector<4x32xf32>
    %352 = vector.extract_strided_slice %334 {offsets = [0, 0, 0], sizes = [1, 4, 32], strides = [1, 1, 1]} : vector<8x4x32xf32> to vector<1x4x32xf32>
    %353 = vector.shape_cast %352 : vector<1x4x32xf32> to vector<4x32xf32>
    %354 = arith.addf %353, %349 : vector<4x32xf32>
    %355 = arith.negf %354 : vector<4x32xf32>
    %356 = math.exp %355 : vector<4x32xf32>
    %cst_140 = arith.constant 1.000000e+00 : f32
    %357 = vector.broadcast %cst_140 : f32 to vector<4x32xf32>
    %358 = arith.addf %357, %356 : vector<4x32xf32>
    %359 = arith.divf %357, %358 : vector<4x32xf32>
    %360 = vector.extract_strided_slice %335 {offsets = [0, 0, 0], sizes = [1, 4, 32], strides = [1, 1, 1]} : vector<8x4x32xf32> to vector<1x4x32xf32>
    %361 = vector.shape_cast %360 : vector<1x4x32xf32> to vector<4x32xf32>
    %362 = arith.addf %361, %350 : vector<4x32xf32>
    %363 = arith.negf %362 : vector<4x32xf32>
    %364 = math.exp %363 : vector<4x32xf32>
    %cst_141 = arith.constant 1.000000e+00 : f32
    %365 = vector.broadcast %cst_141 : f32 to vector<4x32xf32>
    %366 = arith.addf %365, %364 : vector<4x32xf32>
    %367 = arith.divf %365, %366 : vector<4x32xf32>
    %368 = vector.extract_strided_slice %336 {offsets = [0, 0, 0], sizes = [1, 4, 32], strides = [1, 1, 1]} : vector<8x4x32xf32> to vector<1x4x32xf32>
    %369 = vector.shape_cast %368 : vector<1x4x32xf32> to vector<4x32xf32>
    %370 = arith.addf %351, %346 : vector<4x32xf32>
    %371 = arith.mulf %359, %370 : vector<4x32xf32>
    %372 = arith.addf %369, %371 : vector<4x32xf32>
    %373 = math.tanh %372 : vector<4x32xf32>
    %cst_142 = arith.constant 1.000000e+00 : f32
    %374 = vector.broadcast %cst_142 : f32 to vector<4x32xf32>
    %375 = arith.subf %374, %367 : vector<4x32xf32>
    %376 = arith.mulf %375, %373 : vector<4x32xf32>
    %377 = arith.mulf %367, %347 : vector<4x32xf32>
    %378 = arith.addf %376, %377 : vector<4x32xf32>
    %379 = arith.truncf %378 : vector<4x32xf32> to vector<4x32xbf16>
    %cst_143 = arith.constant dense<0.000000e+00> : vector<4x32xf32>
    %380 = tpu.matmul %379, %338, %cst_143 {dimension_numbers = #tpu.dot_dimension_numbers<[1], [0], [0], [1], [0, 0, 1, 1], [], []>} : vector<4x32xbf16>, vector<32x32xbf16>, vector<4x32xf32> -> vector<4x32xf32>
    %cst_144 = arith.constant dense<0.000000e+00> : vector<4x32xf32>
    %381 = tpu.matmul %379, %340, %cst_144 {dimension_numbers = #tpu.dot_dimension_numbers<[1], [0], [0], [1], [0, 0, 1, 1], [], []>} : vector<4x32xbf16>, vector<32x32xbf16>, vector<4x32xf32> -> vector<4x32xf32>
    %cst_145 = arith.constant dense<0.000000e+00> : vector<4x32xf32>
    %382 = tpu.matmul %379, %342, %cst_145 {dimension_numbers = #tpu.dot_dimension_numbers<[1], [0], [0], [1], [0, 0, 1, 1], [], []>} : vector<4x32xbf16>, vector<32x32xbf16>, vector<4x32xf32> -> vector<4x32xf32>
    %383 = vector.extract_strided_slice %334 {offsets = [1, 0, 0], sizes = [1, 4, 32], strides = [1, 1, 1]} : vector<8x4x32xf32> to vector<1x4x32xf32>
    %384 = vector.shape_cast %383 : vector<1x4x32xf32> to vector<4x32xf32>
    %385 = arith.addf %384, %380 : vector<4x32xf32>
    %386 = arith.negf %385 : vector<4x32xf32>
    %387 = math.exp %386 : vector<4x32xf32>
    %cst_146 = arith.constant 1.000000e+00 : f32
    %388 = vector.broadcast %cst_146 : f32 to vector<4x32xf32>
    %389 = arith.addf %388, %387 : vector<4x32xf32>
    %390 = arith.divf %388, %389 : vector<4x32xf32>
    %391 = vector.extract_strided_slice %335 {offsets = [1, 0, 0], sizes = [1, 4, 32], strides = [1, 1, 1]} : vector<8x4x32xf32> to vector<1x4x32xf32>
    %392 = vector.shape_cast %391 : vector<1x4x32xf32> to vector<4x32xf32>
    %393 = arith.addf %392, %381 : vector<4x32xf32>
    %394 = arith.negf %393 : vector<4x32xf32>
    %395 = math.exp %394 : vector<4x32xf32>
    %cst_147 = arith.constant 1.000000e+00 : f32
    %396 = vector.broadcast %cst_147 : f32 to vector<4x32xf32>
    %397 = arith.addf %396, %395 : vector<4x32xf32>
    %398 = arith.divf %396, %397 : vector<4x32xf32>
    %399 = vector.extract_strided_slice %336 {offsets = [1, 0, 0], sizes = [1, 4, 32], strides = [1, 1, 1]} : vector<8x4x32xf32> to vector<1x4x32xf32>
    %400 = vector.shape_cast %399 : vector<1x4x32xf32> to vector<4x32xf32>
    %401 = arith.addf %382, %346 : vector<4x32xf32>
    %402 = arith.mulf %390, %401 : vector<4x32xf32>
    %403 = arith.addf %400, %402 : vector<4x32xf32>
    %404 = math.tanh %403 : vector<4x32xf32>
    %cst_148 = arith.constant 1.000000e+00 : f32
    %405 = vector.broadcast %cst_148 : f32 to vector<4x32xf32>
    %406 = arith.subf %405, %398 : vector<4x32xf32>
    %407 = arith.mulf %406, %404 : vector<4x32xf32>
    %408 = arith.mulf %398, %378 : vector<4x32xf32>
    %409 = arith.addf %407, %408 : vector<4x32xf32>
    %410 = arith.truncf %409 : vector<4x32xf32> to vector<4x32xbf16>
    %cst_149 = arith.constant dense<0.000000e+00> : vector<4x32xf32>
    %411 = tpu.matmul %410, %338, %cst_149 {dimension_numbers = #tpu.dot_dimension_numbers<[1], [0], [0], [1], [0, 0, 1, 1], [], []>} : vector<4x32xbf16>, vector<32x32xbf16>, vector<4x32xf32> -> vector<4x32xf32>
    %cst_150 = arith.constant dense<0.000000e+00> : vector<4x32xf32>
    %412 = tpu.matmul %410, %340, %cst_150 {dimension_numbers = #tpu.dot_dimension_numbers<[1], [0], [0], [1], [0, 0, 1, 1], [], []>} : vector<4x32xbf16>, vector<32x32xbf16>, vector<4x32xf32> -> vector<4x32xf32>
    %cst_151 = arith.constant dense<0.000000e+00> : vector<4x32xf32>
    %413 = tpu.matmul %410, %342, %cst_151 {dimension_numbers = #tpu.dot_dimension_numbers<[1], [0], [0], [1], [0, 0, 1, 1], [], []>} : vector<4x32xbf16>, vector<32x32xbf16>, vector<4x32xf32> -> vector<4x32xf32>
    %414 = vector.extract_strided_slice %334 {offsets = [2, 0, 0], sizes = [1, 4, 32], strides = [1, 1, 1]} : vector<8x4x32xf32> to vector<1x4x32xf32>
    %415 = vector.shape_cast %414 : vector<1x4x32xf32> to vector<4x32xf32>
    %416 = arith.addf %415, %411 : vector<4x32xf32>
    %417 = arith.negf %416 : vector<4x32xf32>
    %418 = math.exp %417 : vector<4x32xf32>
    %cst_152 = arith.constant 1.000000e+00 : f32
    %419 = vector.broadcast %cst_152 : f32 to vector<4x32xf32>
    %420 = arith.addf %419, %418 : vector<4x32xf32>
    %421 = arith.divf %419, %420 : vector<4x32xf32>
    %422 = vector.extract_strided_slice %335 {offsets = [2, 0, 0], sizes = [1, 4, 32], strides = [1, 1, 1]} : vector<8x4x32xf32> to vector<1x4x32xf32>
    %423 = vector.shape_cast %422 : vector<1x4x32xf32> to vector<4x32xf32>
    %424 = arith.addf %423, %412 : vector<4x32xf32>
    %425 = arith.negf %424 : vector<4x32xf32>
    %426 = math.exp %425 : vector<4x32xf32>
    %cst_153 = arith.constant 1.000000e+00 : f32
    %427 = vector.broadcast %cst_153 : f32 to vector<4x32xf32>
    %428 = arith.addf %427, %426 : vector<4x32xf32>
    %429 = arith.divf %427, %428 : vector<4x32xf32>
    %430 = vector.extract_strided_slice %336 {offsets = [2, 0, 0], sizes = [1, 4, 32], strides = [1, 1, 1]} : vector<8x4x32xf32> to vector<1x4x32xf32>
    %431 = vector.shape_cast %430 : vector<1x4x32xf32> to vector<4x32xf32>
    %432 = arith.addf %413, %346 : vector<4x32xf32>
    %433 = arith.mulf %421, %432 : vector<4x32xf32>
    %434 = arith.addf %431, %433 : vector<4x32xf32>
    %435 = math.tanh %434 : vector<4x32xf32>
    %cst_154 = arith.constant 1.000000e+00 : f32
    %436 = vector.broadcast %cst_154 : f32 to vector<4x32xf32>
    %437 = arith.subf %436, %429 : vector<4x32xf32>
    %438 = arith.mulf %437, %435 : vector<4x32xf32>
    %439 = arith.mulf %429, %409 : vector<4x32xf32>
    %440 = arith.addf %438, %439 : vector<4x32xf32>
    %441 = arith.truncf %440 : vector<4x32xf32> to vector<4x32xbf16>
    %cst_155 = arith.constant dense<0.000000e+00> : vector<4x32xf32>
    %442 = tpu.matmul %441, %338, %cst_155 {dimension_numbers = #tpu.dot_dimension_numbers<[1], [0], [0], [1], [0, 0, 1, 1], [], []>} : vector<4x32xbf16>, vector<32x32xbf16>, vector<4x32xf32> -> vector<4x32xf32>
    %cst_156 = arith.constant dense<0.000000e+00> : vector<4x32xf32>
    %443 = tpu.matmul %441, %340, %cst_156 {dimension_numbers = #tpu.dot_dimension_numbers<[1], [0], [0], [1], [0, 0, 1, 1], [], []>} : vector<4x32xbf16>, vector<32x32xbf16>, vector<4x32xf32> -> vector<4x32xf32>
    %cst_157 = arith.constant dense<0.000000e+00> : vector<4x32xf32>
    %444 = tpu.matmul %441, %342, %cst_157 {dimension_numbers = #tpu.dot_dimension_numbers<[1], [0], [0], [1], [0, 0, 1, 1], [], []>} : vector<4x32xbf16>, vector<32x32xbf16>, vector<4x32xf32> -> vector<4x32xf32>
    %445 = vector.extract_strided_slice %334 {offsets = [3, 0, 0], sizes = [1, 4, 32], strides = [1, 1, 1]} : vector<8x4x32xf32> to vector<1x4x32xf32>
    %446 = vector.shape_cast %445 : vector<1x4x32xf32> to vector<4x32xf32>
    %447 = arith.addf %446, %442 : vector<4x32xf32>
    %448 = arith.negf %447 : vector<4x32xf32>
    %449 = math.exp %448 : vector<4x32xf32>
    %cst_158 = arith.constant 1.000000e+00 : f32
    %450 = vector.broadcast %cst_158 : f32 to vector<4x32xf32>
    %451 = arith.addf %450, %449 : vector<4x32xf32>
    %452 = arith.divf %450, %451 : vector<4x32xf32>
    %453 = vector.extract_strided_slice %335 {offsets = [3, 0, 0], sizes = [1, 4, 32], strides = [1, 1, 1]} : vector<8x4x32xf32> to vector<1x4x32xf32>
    %454 = vector.shape_cast %453 : vector<1x4x32xf32> to vector<4x32xf32>
    %455 = arith.addf %454, %443 : vector<4x32xf32>
    %456 = arith.negf %455 : vector<4x32xf32>
    %457 = math.exp %456 : vector<4x32xf32>
    %cst_159 = arith.constant 1.000000e+00 : f32
    %458 = vector.broadcast %cst_159 : f32 to vector<4x32xf32>
    %459 = arith.addf %458, %457 : vector<4x32xf32>
    %460 = arith.divf %458, %459 : vector<4x32xf32>
    %461 = vector.extract_strided_slice %336 {offsets = [3, 0, 0], sizes = [1, 4, 32], strides = [1, 1, 1]} : vector<8x4x32xf32> to vector<1x4x32xf32>
    %462 = vector.shape_cast %461 : vector<1x4x32xf32> to vector<4x32xf32>
    %463 = arith.addf %444, %346 : vector<4x32xf32>
    %464 = arith.mulf %452, %463 : vector<4x32xf32>
    %465 = arith.addf %462, %464 : vector<4x32xf32>
    %466 = math.tanh %465 : vector<4x32xf32>
    %cst_160 = arith.constant 1.000000e+00 : f32
    %467 = vector.broadcast %cst_160 : f32 to vector<4x32xf32>
    %468 = arith.subf %467, %460 : vector<4x32xf32>
    %469 = arith.mulf %468, %466 : vector<4x32xf32>
    %470 = arith.mulf %460, %440 : vector<4x32xf32>
    %471 = arith.addf %469, %470 : vector<4x32xf32>
    %472 = arith.truncf %471 : vector<4x32xf32> to vector<4x32xbf16>
    %cst_161 = arith.constant dense<0.000000e+00> : vector<4x32xf32>
    %473 = tpu.matmul %472, %338, %cst_161 {dimension_numbers = #tpu.dot_dimension_numbers<[1], [0], [0], [1], [0, 0, 1, 1], [], []>} : vector<4x32xbf16>, vector<32x32xbf16>, vector<4x32xf32> -> vector<4x32xf32>
    %cst_162 = arith.constant dense<0.000000e+00> : vector<4x32xf32>
    %474 = tpu.matmul %472, %340, %cst_162 {dimension_numbers = #tpu.dot_dimension_numbers<[1], [0], [0], [1], [0, 0, 1, 1], [], []>} : vector<4x32xbf16>, vector<32x32xbf16>, vector<4x32xf32> -> vector<4x32xf32>
    %cst_163 = arith.constant dense<0.000000e+00> : vector<4x32xf32>
    %475 = tpu.matmul %472, %342, %cst_163 {dimension_numbers = #tpu.dot_dimension_numbers<[1], [0], [0], [1], [0, 0, 1, 1], [], []>} : vector<4x32xbf16>, vector<32x32xbf16>, vector<4x32xf32> -> vector<4x32xf32>
    %476 = vector.extract_strided_slice %334 {offsets = [4, 0, 0], sizes = [1, 4, 32], strides = [1, 1, 1]} : vector<8x4x32xf32> to vector<1x4x32xf32>
    %477 = vector.shape_cast %476 : vector<1x4x32xf32> to vector<4x32xf32>
    %478 = arith.addf %477, %473 : vector<4x32xf32>
    %479 = arith.negf %478 : vector<4x32xf32>
    %480 = math.exp %479 : vector<4x32xf32>
    %cst_164 = arith.constant 1.000000e+00 : f32
    %481 = vector.broadcast %cst_164 : f32 to vector<4x32xf32>
    %482 = arith.addf %481, %480 : vector<4x32xf32>
    %483 = arith.divf %481, %482 : vector<4x32xf32>
    %484 = vector.extract_strided_slice %335 {offsets = [4, 0, 0], sizes = [1, 4, 32], strides = [1, 1, 1]} : vector<8x4x32xf32> to vector<1x4x32xf32>
    %485 = vector.shape_cast %484 : vector<1x4x32xf32> to vector<4x32xf32>
    %486 = arith.addf %485, %474 : vector<4x32xf32>
    %487 = arith.negf %486 : vector<4x32xf32>
    %488 = math.exp %487 : vector<4x32xf32>
    %cst_165 = arith.constant 1.000000e+00 : f32
    %489 = vector.broadcast %cst_165 : f32 to vector<4x32xf32>
    %490 = arith.addf %489, %488 : vector<4x32xf32>
    %491 = arith.divf %489, %490 : vector<4x32xf32>
    %492 = vector.extract_strided_slice %336 {offsets = [4, 0, 0], sizes = [1, 4, 32], strides = [1, 1, 1]} : vector<8x4x32xf32> to vector<1x4x32xf32>
    %493 = vector.shape_cast %492 : vector<1x4x32xf32> to vector<4x32xf32>
    %494 = arith.addf %475, %346 : vector<4x32xf32>
    %495 = arith.mulf %483, %494 : vector<4x32xf32>
    %496 = arith.addf %493, %495 : vector<4x32xf32>
    %497 = math.tanh %496 : vector<4x32xf32>
    %cst_166 = arith.constant 1.000000e+00 : f32
    %498 = vector.broadcast %cst_166 : f32 to vector<4x32xf32>
    %499 = arith.subf %498, %491 : vector<4x32xf32>
    %500 = arith.mulf %499, %497 : vector<4x32xf32>
    %501 = arith.mulf %491, %471 : vector<4x32xf32>
    %502 = arith.addf %500, %501 : vector<4x32xf32>
    %503 = arith.truncf %502 : vector<4x32xf32> to vector<4x32xbf16>
    %cst_167 = arith.constant dense<0.000000e+00> : vector<4x32xf32>
    %504 = tpu.matmul %503, %338, %cst_167 {dimension_numbers = #tpu.dot_dimension_numbers<[1], [0], [0], [1], [0, 0, 1, 1], [], []>} : vector<4x32xbf16>, vector<32x32xbf16>, vector<4x32xf32> -> vector<4x32xf32>
    %cst_168 = arith.constant dense<0.000000e+00> : vector<4x32xf32>
    %505 = tpu.matmul %503, %340, %cst_168 {dimension_numbers = #tpu.dot_dimension_numbers<[1], [0], [0], [1], [0, 0, 1, 1], [], []>} : vector<4x32xbf16>, vector<32x32xbf16>, vector<4x32xf32> -> vector<4x32xf32>
    %cst_169 = arith.constant dense<0.000000e+00> : vector<4x32xf32>
    %506 = tpu.matmul %503, %342, %cst_169 {dimension_numbers = #tpu.dot_dimension_numbers<[1], [0], [0], [1], [0, 0, 1, 1], [], []>} : vector<4x32xbf16>, vector<32x32xbf16>, vector<4x32xf32> -> vector<4x32xf32>
    %507 = vector.extract_strided_slice %334 {offsets = [5, 0, 0], sizes = [1, 4, 32], strides = [1, 1, 1]} : vector<8x4x32xf32> to vector<1x4x32xf32>
    %508 = vector.shape_cast %507 : vector<1x4x32xf32> to vector<4x32xf32>
    %509 = arith.addf %508, %504 : vector<4x32xf32>
    %510 = arith.negf %509 : vector<4x32xf32>
    %511 = math.exp %510 : vector<4x32xf32>
    %cst_170 = arith.constant 1.000000e+00 : f32
    %512 = vector.broadcast %cst_170 : f32 to vector<4x32xf32>
    %513 = arith.addf %512, %511 : vector<4x32xf32>
    %514 = arith.divf %512, %513 : vector<4x32xf32>
    %515 = vector.extract_strided_slice %335 {offsets = [5, 0, 0], sizes = [1, 4, 32], strides = [1, 1, 1]} : vector<8x4x32xf32> to vector<1x4x32xf32>
    %516 = vector.shape_cast %515 : vector<1x4x32xf32> to vector<4x32xf32>
    %517 = arith.addf %516, %505 : vector<4x32xf32>
    %518 = arith.negf %517 : vector<4x32xf32>
    %519 = math.exp %518 : vector<4x32xf32>
    %cst_171 = arith.constant 1.000000e+00 : f32
    %520 = vector.broadcast %cst_171 : f32 to vector<4x32xf32>
    %521 = arith.addf %520, %519 : vector<4x32xf32>
    %522 = arith.divf %520, %521 : vector<4x32xf32>
    %523 = vector.extract_strided_slice %336 {offsets = [5, 0, 0], sizes = [1, 4, 32], strides = [1, 1, 1]} : vector<8x4x32xf32> to vector<1x4x32xf32>
    %524 = vector.shape_cast %523 : vector<1x4x32xf32> to vector<4x32xf32>
    %525 = arith.addf %506, %346 : vector<4x32xf32>
    %526 = arith.mulf %514, %525 : vector<4x32xf32>
    %527 = arith.addf %524, %526 : vector<4x32xf32>
    %528 = math.tanh %527 : vector<4x32xf32>
    %cst_172 = arith.constant 1.000000e+00 : f32
    %529 = vector.broadcast %cst_172 : f32 to vector<4x32xf32>
    %530 = arith.subf %529, %522 : vector<4x32xf32>
    %531 = arith.mulf %530, %528 : vector<4x32xf32>
    %532 = arith.mulf %522, %502 : vector<4x32xf32>
    %533 = arith.addf %531, %532 : vector<4x32xf32>
    %534 = arith.truncf %533 : vector<4x32xf32> to vector<4x32xbf16>
    %cst_173 = arith.constant dense<0.000000e+00> : vector<4x32xf32>
    %535 = tpu.matmul %534, %338, %cst_173 {dimension_numbers = #tpu.dot_dimension_numbers<[1], [0], [0], [1], [0, 0, 1, 1], [], []>} : vector<4x32xbf16>, vector<32x32xbf16>, vector<4x32xf32> -> vector<4x32xf32>
    %cst_174 = arith.constant dense<0.000000e+00> : vector<4x32xf32>
    %536 = tpu.matmul %534, %340, %cst_174 {dimension_numbers = #tpu.dot_dimension_numbers<[1], [0], [0], [1], [0, 0, 1, 1], [], []>} : vector<4x32xbf16>, vector<32x32xbf16>, vector<4x32xf32> -> vector<4x32xf32>
    %cst_175 = arith.constant dense<0.000000e+00> : vector<4x32xf32>
    %537 = tpu.matmul %534, %342, %cst_175 {dimension_numbers = #tpu.dot_dimension_numbers<[1], [0], [0], [1], [0, 0, 1, 1], [], []>} : vector<4x32xbf16>, vector<32x32xbf16>, vector<4x32xf32> -> vector<4x32xf32>
    %538 = vector.extract_strided_slice %334 {offsets = [6, 0, 0], sizes = [1, 4, 32], strides = [1, 1, 1]} : vector<8x4x32xf32> to vector<1x4x32xf32>
    %539 = vector.shape_cast %538 : vector<1x4x32xf32> to vector<4x32xf32>
    %540 = arith.addf %539, %535 : vector<4x32xf32>
    %541 = arith.negf %540 : vector<4x32xf32>
    %542 = math.exp %541 : vector<4x32xf32>
    %cst_176 = arith.constant 1.000000e+00 : f32
    %543 = vector.broadcast %cst_176 : f32 to vector<4x32xf32>
    %544 = arith.addf %543, %542 : vector<4x32xf32>
    %545 = arith.divf %543, %544 : vector<4x32xf32>
    %546 = vector.extract_strided_slice %335 {offsets = [6, 0, 0], sizes = [1, 4, 32], strides = [1, 1, 1]} : vector<8x4x32xf32> to vector<1x4x32xf32>
    %547 = vector.shape_cast %546 : vector<1x4x32xf32> to vector<4x32xf32>
    %548 = arith.addf %547, %536 : vector<4x32xf32>
    %549 = arith.negf %548 : vector<4x32xf32>
    %550 = math.exp %549 : vector<4x32xf32>
    %cst_177 = arith.constant 1.000000e+00 : f32
    %551 = vector.broadcast %cst_177 : f32 to vector<4x32xf32>
    %552 = arith.addf %551, %550 : vector<4x32xf32>
    %553 = arith.divf %551, %552 : vector<4x32xf32>
    %554 = vector.extract_strided_slice %336 {offsets = [6, 0, 0], sizes = [1, 4, 32], strides = [1, 1, 1]} : vector<8x4x32xf32> to vector<1x4x32xf32>
    %555 = vector.shape_cast %554 : vector<1x4x32xf32> to vector<4x32xf32>
    %556 = arith.addf %537, %346 : vector<4x32xf32>
    %557 = arith.mulf %545, %556 : vector<4x32xf32>
    %558 = arith.addf %555, %557 : vector<4x32xf32>
    %559 = math.tanh %558 : vector<4x32xf32>
    %cst_178 = arith.constant 1.000000e+00 : f32
    %560 = vector.broadcast %cst_178 : f32 to vector<4x32xf32>
    %561 = arith.subf %560, %553 : vector<4x32xf32>
    %562 = arith.mulf %561, %559 : vector<4x32xf32>
    %563 = arith.mulf %553, %533 : vector<4x32xf32>
    %564 = arith.addf %562, %563 : vector<4x32xf32>
    %565 = arith.truncf %564 : vector<4x32xf32> to vector<4x32xbf16>
    %cst_179 = arith.constant dense<0.000000e+00> : vector<4x32xf32>
    %566 = tpu.matmul %565, %338, %cst_179 {dimension_numbers = #tpu.dot_dimension_numbers<[1], [0], [0], [1], [0, 0, 1, 1], [], []>} : vector<4x32xbf16>, vector<32x32xbf16>, vector<4x32xf32> -> vector<4x32xf32>
    %cst_180 = arith.constant dense<0.000000e+00> : vector<4x32xf32>
    %567 = tpu.matmul %565, %340, %cst_180 {dimension_numbers = #tpu.dot_dimension_numbers<[1], [0], [0], [1], [0, 0, 1, 1], [], []>} : vector<4x32xbf16>, vector<32x32xbf16>, vector<4x32xf32> -> vector<4x32xf32>
    %cst_181 = arith.constant dense<0.000000e+00> : vector<4x32xf32>
    %568 = tpu.matmul %565, %342, %cst_181 {dimension_numbers = #tpu.dot_dimension_numbers<[1], [0], [0], [1], [0, 0, 1, 1], [], []>} : vector<4x32xbf16>, vector<32x32xbf16>, vector<4x32xf32> -> vector<4x32xf32>
    %569 = vector.extract_strided_slice %334 {offsets = [7, 0, 0], sizes = [1, 4, 32], strides = [1, 1, 1]} : vector<8x4x32xf32> to vector<1x4x32xf32>
    %570 = vector.shape_cast %569 : vector<1x4x32xf32> to vector<4x32xf32>
    %571 = arith.addf %570, %566 : vector<4x32xf32>
    %572 = arith.negf %571 : vector<4x32xf32>
    %573 = math.exp %572 : vector<4x32xf32>
    %cst_182 = arith.constant 1.000000e+00 : f32
    %574 = vector.broadcast %cst_182 : f32 to vector<4x32xf32>
    %575 = arith.addf %574, %573 : vector<4x32xf32>
    %576 = arith.divf %574, %575 : vector<4x32xf32>
    %577 = vector.extract_strided_slice %335 {offsets = [7, 0, 0], sizes = [1, 4, 32], strides = [1, 1, 1]} : vector<8x4x32xf32> to vector<1x4x32xf32>
    %578 = vector.shape_cast %577 : vector<1x4x32xf32> to vector<4x32xf32>
    %579 = arith.addf %578, %567 : vector<4x32xf32>
    %580 = arith.negf %579 : vector<4x32xf32>
    %581 = math.exp %580 : vector<4x32xf32>
    %cst_183 = arith.constant 1.000000e+00 : f32
    %582 = vector.broadcast %cst_183 : f32 to vector<4x32xf32>
    %583 = arith.addf %582, %581 : vector<4x32xf32>
    %584 = arith.divf %582, %583 : vector<4x32xf32>
    %585 = vector.extract_strided_slice %336 {offsets = [7, 0, 0], sizes = [1, 4, 32], strides = [1, 1, 1]} : vector<8x4x32xf32> to vector<1x4x32xf32>
    %586 = vector.shape_cast %585 : vector<1x4x32xf32> to vector<4x32xf32>
    %587 = arith.addf %568, %346 : vector<4x32xf32>
    %588 = arith.mulf %576, %587 : vector<4x32xf32>
    %589 = arith.addf %586, %588 : vector<4x32xf32>
    %590 = math.tanh %589 : vector<4x32xf32>
    %cst_184 = arith.constant 1.000000e+00 : f32
    %591 = vector.broadcast %cst_184 : f32 to vector<4x32xf32>
    %592 = arith.subf %591, %584 : vector<4x32xf32>
    %593 = arith.mulf %592, %590 : vector<4x32xf32>
    %594 = arith.mulf %584, %564 : vector<4x32xf32>
    %595 = arith.addf %593, %594 : vector<4x32xf32>
    %596 = arith.truncf %595 : vector<4x32xf32> to vector<4x32xbf16>
    %c0_185 = arith.constant 0 : index
    %c0_186 = arith.constant 0 : index
    %597 = vector.load %arg7[%c0_185, %c0_186] : memref<32x10xbf16, #tpu.memory_space<vmem>>, vector<32x10xbf16>
    %cst_187 = arith.constant dense<0.000000e+00> : vector<4x10xf32>
    %598 = tpu.matmul %596, %597, %cst_187 {dimension_numbers = #tpu.dot_dimension_numbers<[1], [0], [0], [1], [0, 0, 1, 1], [], []>} : vector<4x32xbf16>, vector<32x10xbf16>, vector<4x10xf32> -> vector<4x10xf32>
    %c0_188 = arith.constant 0 : index
    %c0_189 = arith.constant 0 : index
    %599 = vector.load %arg8[%c0_188, %c0_189] : memref<1x10xf32, #tpu.memory_space<vmem>>, vector<1x10xf32>
    %600 = vector.broadcast %599 : vector<1x10xf32> to vector<4x10xf32>
    %601 = arith.addf %598, %600 : vector<4x10xf32>
    %cst_190 = arith.constant dense<0xFF800000> : vector<4xf32>
    %602 = vector.multi_reduction <maximumf>, %601, %cst_190 [1] : vector<4x10xf32> to vector<4xf32>
    %603 = vector.shape_cast %602 : vector<4xf32> to vector<4x1xf32>
    %604 = vector.broadcast %603 : vector<4x1xf32> to vector<4x10xf32>
    %605 = arith.subf %601, %604 : vector<4x10xf32>
    %606 = math.exp %605 : vector<4x10xf32>
    %cst_191 = arith.constant dense<0.000000e+00> : vector<4xf32>
    %607 = vector.multi_reduction <add>, %606, %cst_191 [1] : vector<4x10xf32> to vector<4xf32>
    %608 = vector.shape_cast %607 : vector<4xf32> to vector<4x1xf32>
    %609 = math.log %608 : vector<4x1xf32>
    %610 = vector.broadcast %609 : vector<4x1xf32> to vector<4x10xf32>
    %611 = arith.subf %605, %610 : vector<4x10xf32>
    %c0_192 = arith.constant 0 : index
    %c0_193 = arith.constant 0 : index
    %612 = vector.load %arg9[%c0_192, %c0_193] : memref<4x10xf32, #tpu.memory_space<vmem>>, vector<4x10xf32>
    tpu.vector_store %arg9[%c0_192, %c0_193], %611 {strides = array<i32>} : memref<4x10xf32, #tpu.memory_space<vmem>>, vector<4x10xf32>,
    return
  }
}

</mosaic_0001>

<llo_original>
// kernel: mnist_classifier_forward.1
$region0: #{mnist_classifier_forward.1}
  #allocation0 [shape = 'u32[]', space=smem, size = 0x4, offset = 0x4, fixed_abs, tag = 'smem constant byte address 0x4 - core index']
  #allocation1 [shape = 'u32[144,128]{1,0:T(1,128)}', space=vmem, size = 0x12000, scoped, tag = 'internal scratch']
  #allocation2 [shape = 'f32[8,4,32]{2,1,0:T(4,128)}', space=vmem, size = 0x4000, scoped, tag = 'scratch operand']
  %s0 = inlined_call_operand.vmem [shape: f32[4,8,16], index: 0, kind: input, shape index: {}]
  %s1 = inlined_call_operand.vmem [shape: bf16[3,16,32], index: 1, kind: input, shape index: {}]
  %s2 = inlined_call_operand.vmem [shape: bf16[3,32,32], index: 2, kind: input, shape index: {}]
  %s3 = inlined_call_operand.vmem [shape: f32[4,1,32], index: 3, kind: input, shape index: {}]
  %s4 = inlined_call_operand.vmem [shape: bf16[3,32,32], index: 4, kind: input, shape index: {}]
  %s5 = inlined_call_operand.vmem [shape: bf16[3,32,32], index: 5, kind: input, shape index: {}]
  %s6 = inlined_call_operand.vmem [shape: f32[4,1,32], index: 6, kind: input, shape index: {}]
  %s7 = inlined_call_operand.vmem [shape: bf16[32,10], index: 7, kind: input, shape index: {}]
  %s8 = inlined_call_operand.vmem [shape: f32[1,10], index: 8, kind: input, shape index: {}]
  %s9 = inlined_call_operand.hbm [shape: f32[4,10], index: 9, kind: output, shape index: {}]
  %s10 = sld [smem:[#allocation0]]
  $region46: #{mnist_classifier_forward.1} parent=0
    _
  %s12 = ssub.s32 1, %s10
  %s13 = scalar_select 0, %s12, %s10
  $region1: #{mnist_classifier_forward.1} parent=0
    #allocation3 [shape = 'u8[2048]{0}', space=vmem, size = 0x800, scoped, tag = 'output window, operand 0, single buffered']
    #allocation4 [shape = 's32[1]{0}', space=sflag, size = 0x4, scoped, tag = 'scoped memory for mnist_classifier_forward.1']
    %14 = vsyncpa [#allocation4], 0
    // Predicated region
    $region2: #{mnist_classifier_forward.1} parent=1 // pred_check
      _
    $region3: #{mnist_classifier_forward.1} parent=1 // pred_check_branch
      %16 = sbr.rel (0) target = $region5
    $region4: #{mnist_classifier_forward.1} parent=1 // pred_region
      _
    $region5: #{mnist_classifier_forward.1} parent=1 // pred_fallthru
      _
    // Predicated region
    $region6: #{mnist_classifier_forward.1} parent=1 // pred_check
      _
    $region7: #{mnist_classifier_forward.1} parent=1 // pred_check_branch
      %18 = sbr.rel (0) target = $region9
    $region8: #{mnist_classifier_forward.1} parent=1 // pred_region
      _
    $region9: #{mnist_classifier_forward.1} parent=1 // pred_fallthru
      _
    // Predicated region
    $region10: #{mnist_classifier_forward.1} parent=1 // pred_check
      _
    $region11: #{mnist_classifier_forward.1} parent=1 // pred_check_branch
      %20 = sbr.rel (0) target = $region13
    $region12: #{mnist_classifier_forward.1} parent=1 // pred_region
      _
    $region13: #{mnist_classifier_forward.1} parent=1 // pred_fallthru
      _
    // Predicated region
    $region14: #{mnist_classifier_forward.1} parent=1 // pred_check
      _
    $region15: #{mnist_classifier_forward.1} parent=1 // pred_check_branch
      %22 = sbr.rel (0) target = $region17
    $region16: #{mnist_classifier_forward.1} parent=1 // pred_region
      _
    $region17: #{mnist_classifier_forward.1} parent=1 // pred_fallthru
      _
    // Predicated region
    $region18: #{mnist_classifier_forward.1} parent=1 // pred_check
      _
    $region19: #{mnist_classifier_forward.1} parent=1 // pred_check_branch
      %24 = sbr.rel (0) target = $region21
    $region20: #{mnist_classifier_forward.1} parent=1 // pred_region
      _
    $region21: #{mnist_classifier_forward.1} parent=1 // pred_fallthru
      _
    // Predicated region
    $region22: #{mnist_classifier_forward.1} parent=1 // pred_check
      _
    $region23: #{mnist_classifier_forward.1} parent=1 // pred_check_branch
      %26 = sbr.rel (0) target = $region25
    $region24: #{mnist_classifier_forward.1} parent=1 // pred_region
      _
    $region25: #{mnist_classifier_forward.1} parent=1 // pred_fallthru
      _
    // Predicated region
    $region26: #{mnist_classifier_forward.1} parent=1 // pred_check
      _
    $region27: #{mnist_classifier_forward.1} parent=1 // pred_check_branch
      %28 = sbr.rel (0) target = $region29
    $region28: #{mnist_classifier_forward.1} parent=1 // pred_region
      _
    $region29: #{mnist_classifier_forward.1} parent=1 // pred_fallthru
      _
    // Predicated region
    $region30: #{mnist_classifier_forward.1} parent=1 // pred_check
      _
    $region31: #{mnist_classifier_forward.1} parent=1 // pred_check_branch
      %30 = sbr.rel (0) target = $region33
    $region32: #{mnist_classifier_forward.1} parent=1 // pred_region
      _
    $region33: #{mnist_classifier_forward.1} parent=1 // pred_fallthru
      _
    // Predicated region
    $region34: #{mnist_classifier_forward.1} parent=1 // pred_check
      _
    $region35: #{mnist_classifier_forward.1} parent=1 // pred_check_branch
      %32 = sbr.rel (0) target = $region37
    $region36: #{mnist_classifier_forward.1} parent=1 // pred_region
      _
    $region37: #{mnist_classifier_forward.1} parent=1 // pred_fallthru
      _
    %v34 = vld [vmem:[%s0] sm:$0xff]
    %v35 = vld [vmem:[%s0 + $0x8] sm:$0xff]
    %v36 = vld [vmem:[%s0 + $0x10] sm:$0xff]
    %v37 = vld [vmem:[%s0 + $0x18] sm:$0xff]
    %v38 = vpack.c.bf16 %v35, %v34
    %v39 = vpack.c.bf16 %v37, %v36
    %v40 = vld [vmem:[%s1] sm:$0xf]
    %v41 = vld [vmem:[%s1 + $0x4] sm:$0xf]
    %v42 = vld [vmem:[%s3] sm:$0x1]
    %v44 = vlaneseq
    %v45 = vshrl.u32 %v44, 7
    %v46 = vsub.s32 0, %v45
    %v47 = vrot.slane %v42, %v46
    %v51 = vunpack.c.l.b16 %v40
    %v52 = vunpack.c.l.b16 %v41
    %v53 = vpack.c.b16 %v52, %v51
    %vm55 = vcmask 130048
    %v57 = vsel %vm55, %v38, 0
    %v60 = vsel %vm55, %v39, 0
    %62 = vmatprep.subr.bf16.mxu0 0
    %63 = vmatpush1.bf16.msra.mxu0 0
    %64 = vmatprep.subr.bf16.mxu0 0
    %65 = vmatpush1.bf16.msra.mxu0 0
    %66 = vmatprep.subr.bf16.mxu0 0
    %67 = vmatpush1.bf16.msra.mxu0 0
    %68 = vmatprep.subr.bf16.mxu0 0
    %69 = vmatpush1.bf16.msra.mxu0 0
    %70 = vmatprep.subr.bf16.mxu0 0
    %71 = vmatpush1.bf16.msra.mxu0 0
    %72 = vmatprep.subr.bf16.mxu0 0
    %73 = vmatpush1.bf16.msra.mxu0 0
    %74 = vmatprep.subr.bf16.mxu0 0
    %75 = vmatpush1.bf16.msra.mxu0 0
    %76 = vmatprep.subr.bf16.mxu0 0
    %77 = vmatpush1.bf16.msra.mxu0 %v53
    %78 = vmatprep.subr.bf16.mxu0 0
    %79 = vmatpush2.bf16.msra.mxu0 0
    %80 = vmatprep.subr.bf16.mxu0 0
    %81 = vmatpush2.bf16.msra.mxu0 0
    %82 = vmatprep.subr.bf16.mxu0 0
    %83 = vmatpush2.bf16.msra.mxu0 0
    %84 = vmatprep.subr.bf16.mxu0 0
    %85 = vmatpush2.bf16.msra.mxu0 0
    %86 = vmatprep.subr.bf16.mxu0 0
    %87 = vmatpush2.bf16.msra.mxu0 0
    %88 = vmatprep.subr.bf16.mxu0 0
    %89 = vmatpush2.bf16.msra.mxu0 0
    %90 = vmatprep.subr.bf16.mxu0 0
    %91 = vmatpush2.bf16.msra.mxu0 0
    %92 = vmatprep.subr.bf16.mxu0 0
    %93 = vmatpush2.bf16.msra.mxu0 0
    %94 = vmatprep.mubr.bf16.mxu0 0
    %95 = vmatmul.mubr.bf16.gmra.mxu0 %v57
    %v96 = vpop.f32.mrf.mxu0
    %v97 = vadd.f32 %v47, %v96
    %v98 = vpop.f32.mrf.mxu0
    %v99 = vpop.f32.mrf.mxu0
    %v100 = vadd.f32 %v47, %v99
    %v101 = vpop.f32.mrf.mxu0
    %102 = vmatprep.mubr.bf16.mxu0 0
    %103 = vmatmul.mubr.bf16.gmra.mxu0 %v60
    %v104 = vpop.f32.mrf.mxu0
    %v105 = vadd.f32 %v47, %v104
    %v106 = vpop.f32.mrf.mxu0
    %v107 = vpop.f32.mrf.mxu0
    %v108 = vadd.f32 %v47, %v107
    %v109 = vpop.f32.mrf.mxu0
    %110 = vdwg.mxu0
    %s111 = scalar_lea.vmem %s1, 8
    %v112 = vld [vmem:[%s111] sm:$0xf]
    %v113 = vld [vmem:[%s111 + $0x4] sm:$0xf]
    %s114 = scalar_lea.vmem %s3, 1
    %v115 = vld [vmem:[%s114] sm:$0x1]
    %v117 = vlaneseq
    %v118 = vshrl.u32 %v117, 7
    %v119 = vsub.s32 0, %v118
    %v120 = vrot.slane %v115, %v119
    %v124 = vunpack.c.l.b16 %v112
    %v125 = vunpack.c.l.b16 %v113
    %v126 = vpack.c.b16 %v125, %v124
    %128 = vmatprep.subr.bf16.mxu0 0
    %129 = vmatpush1.bf16.msra.mxu0 0
    %130 = vmatprep.subr.bf16.mxu0 0
    %131 = vmatpush1.bf16.msra.mxu0 0
    %132 = vmatprep.subr.bf16.mxu0 0
    %133 = vmatpush1.bf16.msra.mxu0 0
    %134 = vmatprep.subr.bf16.mxu0 0
    %135 = vmatpush1.bf16.msra.mxu0 0
    %136 = vmatprep.subr.bf16.mxu0 0
    %137 = vmatpush1.bf16.msra.mxu0 0
    %138 = vmatprep.subr.bf16.mxu0 0
    %139 = vmatpush1.bf16.msra.mxu0 0
    %140 = vmatprep.subr.bf16.mxu0 0
    %141 = vmatpush1.bf16.msra.mxu0 0
    %142 = vmatprep.subr.bf16.mxu0 0
    %143 = vmatpush1.bf16.msra.mxu0 %v126
    %144 = vmatprep.subr.bf16.mxu0 0
    %145 = vmatpush2.bf16.msra.mxu0 0
    %146 = vmatprep.subr.bf16.mxu0 0
    %147 = vmatpush2.bf16.msra.mxu0 0
    %148 = vmatprep.subr.bf16.mxu0 0
    %149 = vmatpush2.bf16.msra.mxu0 0
    %150 = vmatprep.subr.bf16.mxu0 0
    %151 = vmatpush2.bf16.msra.mxu0 0
    %152 = vmatprep.subr.bf16.mxu0 0
    %153 = vmatpush2.bf16.msra.mxu0 0
    %154 = vmatprep.subr.bf16.mxu0 0
    %155 = vmatpush2.bf16.msra.mxu0 0
    %156 = vmatprep.subr.bf16.mxu0 0
    %157 = vmatpush2.bf16.msra.mxu0 0
    %158 = vmatprep.subr.bf16.mxu0 0
    %159 = vmatpush2.bf16.msra.mxu0 0
    %160 = vmatprep.mubr.bf16.mxu0 0
    %161 = vmatmul.mubr.bf16.gmra.mxu0 %v57
    %v162 = vpop.f32.mrf.mxu0
    %v163 = vadd.f32 %v120, %v162
    %v164 = vpop.f32.mrf.mxu0
    %v165 = vpop.f32.mrf.mxu0
    %v166 = vadd.f32 %v120, %v165
    %v167 = vpop.f32.mrf.mxu0
    %168 = vmatprep.mubr.bf16.mxu0 0
    %169 = vmatmul.mubr.bf16.gmra.mxu0 %v60
    %v170 = vpop.f32.mrf.mxu0
    %v171 = vadd.f32 %v120, %v170
    %v172 = vpop.f32.mrf.mxu0
    %v173 = vpop.f32.mrf.mxu0
    %v174 = vadd.f32 %v120, %v173
    %v175 = vpop.f32.mrf.mxu0
    %176 = vdwg.mxu0
    %s177 = scalar_lea.vmem %s1, 16
    %v178 = vld [vmem:[%s177] sm:$0xf]
    %v179 = vld [vmem:[%s177 + $0x4] sm:$0xf]
    %s180 = scalar_lea.vmem %s3, 2
    %v181 = vld [vmem:[%s180] sm:$0x1]
    %v183 = vlaneseq
    %v184 = vshrl.u32 %v183, 7
    %v185 = vsub.s32 0, %v184
    %v186 = vrot.slane %v181, %v185
    %v190 = vunpack.c.l.b16 %v178
    %v191 = vunpack.c.l.b16 %v179
    %v192 = vpack.c.b16 %v191, %v190
    %194 = vmatprep.subr.bf16.mxu0 0
    %195 = vmatpush1.bf16.msra.mxu0 0
    %196 = vmatprep.subr.bf16.mxu0 0
    %197 = vmatpush1.bf16.msra.mxu0 0
    %198 = vmatprep.subr.bf16.mxu0 0
    %199 = vmatpush1.bf16.msra.mxu0 0
    %200 = vmatprep.subr.bf16.mxu0 0
    %201 = vmatpush1.bf16.msra.mxu0 0
    %202 = vmatprep.subr.bf16.mxu0 0
    %203 = vmatpush1.bf16.msra.mxu0 0
    %204 = vmatprep.subr.bf16.mxu0 0
    %205 = vmatpush1.bf16.msra.mxu0 0
    %206 = vmatprep.subr.bf16.mxu0 0
    %207 = vmatpush1.bf16.msra.mxu0 0
    %208 = vmatprep.subr.bf16.mxu0 0
    %209 = vmatpush1.bf16.msra.mxu0 %v192
    %210 = vmatprep.subr.bf16.mxu0 0
    %211 = vmatpush2.bf16.msra.mxu0 0
    %212 = vmatprep.subr.bf16.mxu0 0
    %213 = vmatpush2.bf16.msra.mxu0 0
    %214 = vmatprep.subr.bf16.mxu0 0
    %215 = vmatpush2.bf16.msra.mxu0 0
    %216 = vmatprep.subr.bf16.mxu0 0
    %217 = vmatpush2.bf16.msra.mxu0 0
    %218 = vmatprep.subr.bf16.mxu0 0
    %219 = vmatpush2.bf16.msra.mxu0 0
    %220 = vmatprep.subr.bf16.mxu0 0
    %221 = vmatpush2.bf16.msra.mxu0 0
    %222 = vmatprep.subr.bf16.mxu0 0
    %223 = vmatpush2.bf16.msra.mxu0 0
    %224 = vmatprep.subr.bf16.mxu0 0
    %225 = vmatpush2.bf16.msra.mxu0 0
    %226 = vmatprep.mubr.bf16.mxu0 0
    %227 = vmatmul.mubr.bf16.gmra.mxu0 %v57
    %v228 = vpop.f32.mrf.mxu0
    %v229 = vadd.f32 %v186, %v228
    %v230 = vpop.f32.mrf.mxu0
    %v231 = vpop.f32.mrf.mxu0
    %v232 = vadd.f32 %v186, %v231
    %v233 = vpop.f32.mrf.mxu0
    %234 = vmatprep.mubr.bf16.mxu0 0
    %235 = vmatmul.mubr.bf16.gmra.mxu0 %v60
    %v236 = vpop.f32.mrf.mxu0
    %v237 = vadd.f32 %v186, %v236
    %v238 = vpop.f32.mrf.mxu0
    %v239 = vpop.f32.mrf.mxu0
    %v240 = vadd.f32 %v186, %v239
    %v241 = vpop.f32.mrf.mxu0
    %242 = vdwg.mxu0
    %v243 = vld [vmem:[%s2] sm:$0xf]
    %v244 = vld [vmem:[%s2 + $0x4] sm:$0xf]
    %v245 = vld [vmem:[%s2 + $0x8] sm:$0xf]
    %v246 = vld [vmem:[%s2 + $0xc] sm:$0xf]
    %s247 = scalar_lea.vmem %s2, 16
    %v248 = vld [vmem:[%s247] sm:$0xf]
    %v249 = vld [vmem:[%s247 + $0x4] sm:$0xf]
    %v250 = vld [vmem:[%s247 + $0x8] sm:$0xf]
    %v251 = vld [vmem:[%s247 + $0xc] sm:$0xf]
    %s252 = scalar_lea.vmem %s2, 32
    %v253 = vld [vmem:[%s252] sm:$0xf]
    %v254 = vld [vmem:[%s252 + $0x4] sm:$0xf]
    %v255 = vld [vmem:[%s252 + $0x8] sm:$0xf]
    %v256 = vld [vmem:[%s252 + $0xc] sm:$0xf]
    %s257 = scalar_lea.vmem %s3, 3
    %v258 = vld [vmem:[%s257] sm:$0x1]
    %v260 = vlaneseq
    %v261 = vshrl.u32 %v260, 7
    %v262 = vsub.s32 0, %v261
    %v263 = vrot.slane %v258, %v262
    %v269 = vunpack.c.l.b16 %v243
    %v270 = vunpack.c.l.b16 %v244
    %v271 = vunpack.c.l.b16 %v245
    %v272 = vunpack.c.l.b16 %v246
    %v273 = vpack.c.b16 %v270, %v269
    %v274 = vpack.c.b16 %v272, %v271
    %vm277 = vcmask 261120
    %v279 = vsel %vm277, 0, 0
    %281 = vmatprep.subr.bf16.mxu0 0
    %282 = vmatpush1.bf16.msra.mxu0 0
    %283 = vmatprep.subr.bf16.mxu0 0
    %284 = vmatpush1.bf16.msra.mxu0 0
    %285 = vmatprep.subr.bf16.mxu0 0
    %286 = vmatpush1.bf16.msra.mxu0 0
    %287 = vmatprep.subr.bf16.mxu0 0
    %288 = vmatpush1.bf16.msra.mxu0 0
    %289 = vmatprep.subr.bf16.mxu0 0
    %290 = vmatpush1.bf16.msra.mxu0 0
    %291 = vmatprep.subr.bf16.mxu0 0
    %292 = vmatpush1.bf16.msra.mxu0 0
    %293 = vmatprep.subr.bf16.mxu0 0
    %294 = vmatpush1.bf16.msra.mxu0 %v274
    %295 = vmatprep.subr.bf16.mxu0 0
    %296 = vmatpush1.bf16.msra.mxu0 %v273
    %297 = vmatprep.subr.bf16.mxu0 0
    %298 = vmatpush2.bf16.msra.mxu0 0
    %299 = vmatprep.subr.bf16.mxu0 0
    %300 = vmatpush2.bf16.msra.mxu0 0
    %301 = vmatprep.subr.bf16.mxu0 0
    %302 = vmatpush2.bf16.msra.mxu0 0
    %303 = vmatprep.subr.bf16.mxu0 0
    %304 = vmatpush2.bf16.msra.mxu0 0
    %305 = vmatprep.subr.bf16.mxu0 0
    %306 = vmatpush2.bf16.msra.mxu0 0
    %307 = vmatprep.subr.bf16.mxu0 0
    %308 = vmatpush2.bf16.msra.mxu0 0
    %309 = vmatprep.subr.bf16.mxu0 0
    %310 = vmatpush2.bf16.msra.mxu0 0
    %311 = vmatprep.subr.bf16.mxu0 0
    %312 = vmatpush2.bf16.msra.mxu0 0
    %313 = vmatprep.mubr.bf16.mxu0 0
    %314 = vmatmul.mubr.bf16.gmra.mxu0 %v279
    %v315 = vpop.f32.mrf.mxu0
    %v316 = vadd.f32 0.0, %v315
    %v317 = vpop.f32.mrf.mxu0
    %v318 = vpop.f32.mrf.mxu0
    %v319 = vpop.f32.mrf.mxu0
    %320 = vdwg.mxu0
    %v325 = vunpack.c.l.b16 %v248
    %v326 = vunpack.c.l.b16 %v249
    %v327 = vunpack.c.l.b16 %v250
    %v328 = vunpack.c.l.b16 %v251
    %v329 = vpack.c.b16 %v326, %v325
    %v330 = vpack.c.b16 %v328, %v327
    %333 = vmatprep.subr.bf16.mxu0 0
    %334 = vmatpush1.bf16.msra.mxu0 0
    %335 = vmatprep.subr.bf16.mxu0 0
    %336 = vmatpush1.bf16.msra.mxu0 0
    %337 = vmatprep.subr.bf16.mxu0 0
    %338 = vmatpush1.bf16.msra.mxu0 0
    %339 = vmatprep.subr.bf16.mxu0 0
    %340 = vmatpush1.bf16.msra.mxu0 0
    %341 = vmatprep.subr.bf16.mxu0 0
    %342 = vmatpush1.bf16.msra.mxu0 0
    %343 = vmatprep.subr.bf16.mxu0 0
    %344 = vmatpush1.bf16.msra.mxu0 0
    %345 = vmatprep.subr.bf16.mxu0 0
    %346 = vmatpush1.bf16.msra.mxu0 %v330
    %347 = vmatprep.subr.bf16.mxu0 0
    %348 = vmatpush1.bf16.msra.mxu0 %v329
    %349 = vmatprep.subr.bf16.mxu0 0
    %350 = vmatpush2.bf16.msra.mxu0 0
    %351 = vmatprep.subr.bf16.mxu0 0
    %352 = vmatpush2.bf16.msra.mxu0 0
    %353 = vmatprep.subr.bf16.mxu0 0
    %354 = vmatpush2.bf16.msra.mxu0 0
    %355 = vmatprep.subr.bf16.mxu0 0
    %356 = vmatpush2.bf16.msra.mxu0 0
    %357 = vmatprep.subr.bf16.mxu0 0
    %358 = vmatpush2.bf16.msra.mxu0 0
    %359 = vmatprep.subr.bf16.mxu0 0
    %360 = vmatpush2.bf16.msra.mxu0 0
    %361 = vmatprep.subr.bf16.mxu0 0
    %362 = vmatpush2.bf16.msra.mxu0 0
    %363 = vmatprep.subr.bf16.mxu0 0
    %364 = vmatpush2.bf16.msra.mxu0 0
    %365 = vmatprep.mubr.bf16.mxu0 0
    %366 = vmatmul.mubr.bf16.gmra.mxu0 %v279
    %v367 = vpop.f32.mrf.mxu0
    %v368 = vadd.f32 0.0, %v367
    %v369 = vpop.f32.mrf.mxu0
    %v370 = vpop.f32.mrf.mxu0
    %v371 = vpop.f32.mrf.mxu0
    %372 = vdwg.mxu0
    %v374 = vrot.slane %v316, 1
    %v375 = vrot.slane %v316, 2
    %v376 = vrot.slane %v316, 3
    %v381 = vadd.f32 %v97, %v316
    %v382 = vadd.f32 %v100, %v374
    %v383 = vadd.f32 %v105, %v375
    %v384 = vadd.f32 %v108, %v376
    %v385 = vxor.u32 %v381, 2147483648
    %v386 = vxor.u32 %v382, 2147483648
    %v387 = vxor.u32 %v383, 2147483648
    %v388 = vxor.u32 %v384, 2147483648
    %v389 = vmul.f32 %v385, 1.442695
    %v390 = vpow.pop %v389
    %v391 = vmul.f32 %v386, 1.442695
    %v392 = vpow.pop %v391
    %v393 = vmul.f32 %v387, 1.442695
    %v394 = vpow.pop %v393
    %v395 = vmul.f32 %v388, 1.442695
    %v396 = vpow.pop %v395
    %v397 = vadd.f32 %v390, 1.0
    %v398 = vadd.f32 %v392, 1.0
    %v399 = vadd.f32 %v394, 1.0
    %v400 = vadd.f32 %v396, 1.0
    %v401 = vrcp.pop %v397
    %v402 = vmul.f32 1.0, %v401
    %v403 = vrcp.pop %v398
    %v404 = vmul.f32 1.0, %v403
    %v405 = vrcp.pop %v399
    %v406 = vmul.f32 1.0, %v405
    %v407 = vrcp.pop %v400
    %v408 = vmul.f32 1.0, %v407
    %v410 = vrot.slane %v368, 1
    %v411 = vrot.slane %v368, 2
    %v412 = vrot.slane %v368, 3
    %v417 = vadd.f32 %v163, %v368
    %v418 = vadd.f32 %v166, %v410
    %v419 = vadd.f32 %v171, %v411
    %v420 = vadd.f32 %v174, %v412
    %v421 = vxor.u32 %v417, 2147483648
    %v422 = vxor.u32 %v418, 2147483648
    %v423 = vxor.u32 %v419, 2147483648
    %v424 = vxor.u32 %v420, 2147483648
    %v425 = vmul.f32 %v421, 1.442695
    %v426 = vpow.pop %v425
    %v427 = vmul.f32 %v422, 1.442695
    %v428 = vpow.pop %v427
    %v429 = vmul.f32 %v423, 1.442695
    %v430 = vpow.pop %v429
    %v431 = vmul.f32 %v424, 1.442695
    %v432 = vpow.pop %v431
    %v433 = vadd.f32 %v426, 1.0
    %v434 = vadd.f32 %v428, 1.0
    %v435 = vadd.f32 %v430, 1.0
    %v436 = vadd.f32 %v432, 1.0
    %v437 = vrcp.pop %v433
    %v438 = vmul.f32 1.0, %v437
    %v439 = vrcp.pop %v434
    %v440 = vmul.f32 1.0, %v439
    %v441 = vrcp.pop %v435
    %v442 = vmul.f32 1.0, %v441
    %v443 = vrcp.pop %v436
    %v444 = vmul.f32 1.0, %v443
    %v449 = vunpack.c.l.b16 %v253
    %v450 = vunpack.c.l.b16 %v254
    %v451 = vunpack.c.l.b16 %v255
    %v452 = vunpack.c.l.b16 %v256
    %v453 = vpack.c.b16 %v450, %v449
    %v454 = vpack.c.b16 %v452, %v451
    %457 = vmatprep.subr.bf16.mxu0 0
    %458 = vmatpush1.bf16.msra.mxu0 0
    %459 = vmatprep.subr.bf16.mxu0 0
    %460 = vmatpush1.bf16.msra.mxu0 0
    %461 = vmatprep.subr.bf16.mxu0 0
    %462 = vmatpush1.bf16.msra.mxu0 0
    %463 = vmatprep.subr.bf16.mxu0 0
    %464 = vmatpush1.bf16.msra.mxu0 0
    %465 = vmatprep.subr.bf16.mxu0 0
    %466 = vmatpush1.bf16.msra.mxu0 0
    %467 = vmatprep.subr.bf16.mxu0 0
    %468 = vmatpush1.bf16.msra.mxu0 0
    %469 = vmatprep.subr.bf16.mxu0 0
    %470 = vmatpush1.bf16.msra.mxu0 %v454
    %471 = vmatprep.subr.bf16.mxu0 0
    %472 = vmatpush1.bf16.msra.mxu0 %v453
    %473 = vmatprep.subr.bf16.mxu0 0
    %474 = vmatpush2.bf16.msra.mxu0 0
    %475 = vmatprep.subr.bf16.mxu0 0
    %476 = vmatpush2.bf16.msra.mxu0 0
    %477 = vmatprep.subr.bf16.mxu0 0
    %478 = vmatpush2.bf16.msra.mxu0 0
    %479 = vmatprep.subr.bf16.mxu0 0
    %480 = vmatpush2.bf16.msra.mxu0 0
    %481 = vmatprep.subr.bf16.mxu0 0
    %482 = vmatpush2.bf16.msra.mxu0 0
    %483 = vmatprep.subr.bf16.mxu0 0
    %484 = vmatpush2.bf16.msra.mxu0 0
    %485 = vmatprep.subr.bf16.mxu0 0
    %486 = vmatpush2.bf16.msra.mxu0 0
    %487 = vmatprep.subr.bf16.mxu0 0
    %488 = vmatpush2.bf16.msra.mxu0 0
    %489 = vmatprep.mubr.bf16.mxu0 0
    %490 = vmatmul.mubr.bf16.gmra.mxu0 %v279
    %v491 = vpop.f32.mrf.mxu0
    %v492 = vadd.f32 %v263, %v491
    %v493 = vpop.f32.mrf.mxu0
    %v494 = vpop.f32.mrf.mxu0
    %v495 = vpop.f32.mrf.mxu0
    %496 = vdwg.mxu0
    %v498 = vrot.slane %v492, 1
    %v499 = vrot.slane %v492, 2
    %v500 = vrot.slane %v492, 3
    %v505 = vmul.f32 %v402, %v492
    %v506 = vmul.f32 %v404, %v498
    %v507 = vmul.f32 %v406, %v499
    %v508 = vmul.f32 %v408, %v500
    %v509 = vadd.f32 %v229, %v505
    %v510 = vadd.f32 %v232, %v506
    %v511 = vadd.f32 %v237, %v507
    %v512 = vadd.f32 %v240, %v508
    %v513 = vtanh.pop %v509
    %v514 = vtanh.pop %v510
    %v515 = vtanh.pop %v511
    %v516 = vtanh.pop %v512
    %v517 = vsub.f32 1.0, %v438
    %v518 = vsub.f32 1.0, %v440
    %v519 = vsub.f32 1.0, %v442
    %v520 = vsub.f32 1.0, %v444
    %v521 = vmul.f32 %v517, %v513
    %v522 = vmul.f32 %v518, %v514
    %v523 = vmul.f32 %v519, %v515
    %v524 = vmul.f32 %v520, %v516
    %v525 = vmul.f32 %v438, 0.0
    %v526 = vmul.f32 %v440, 0.0
    %v527 = vmul.f32 %v442, 0.0
    %v528 = vmul.f32 %v444, 0.0
    %v529 = vadd.f32 %v521, %v525
    %v530 = vadd.f32 %v522, %v526
    %v531 = vadd.f32 %v523, %v527
    %v532 = vadd.f32 %v524, %v528
    %v537 = vrot.slane %v530, 7
    %vm538 = vcmask 1041409
    %v539 = vsel %vm538, %v537, %v529
    %v540 = vrot.slane %v531, 6
    %vm541 = vcmask 1042434
    %v542 = vsel %vm541, %v540, %v539
    %v543 = vrot.slane %v532, 5
    %vm544 = vcmask 1043459
    %v545 = vsel %vm544, %v543, %v542
    %vm547 = vcmask 257024
    %548 = vst.msk [vmem:[#allocation2] sm:$0xf] %vm547, %v545
    %v549 = vpack.c.bf16 %v529, %v529
    %v550 = vpack.c.bf16 %v530, %v530
    %v551 = vpack.c.bf16 %v531, %v531
    %v552 = vpack.c.bf16 %v532, %v532
    %v557 = vunpack.c.l.b16 %v549
    %v558 = vunpack.c.l.b16 %v550
    %v559 = vunpack.c.l.b16 %v551
    %v560 = vunpack.c.l.b16 %v552
    %v561 = vrot.slane %v558, 7
    %v562 = vsel %vm538, %v561, %v557
    %v563 = vrot.slane %v559, 6
    %v564 = vsel %vm541, %v563, %v562
    %v565 = vrot.slane %v560, 5
    %v566 = vsel %vm544, %v565, %v564
    %v567 = vpack.c.b16 %v566, %v566
    %v569 = vsel %vm277, %v567, 0
    %571 = vmatprep.subr.bf16.mxu0 0
    %572 = vmatpush1.bf16.msra.mxu0 0
    %573 = vmatprep.subr.bf16.mxu0 0
    %574 = vmatpush1.bf16.msra.mxu0 0
    %575 = vmatprep.subr.bf16.mxu0 0
    %576 = vmatpush1.bf16.msra.mxu0 0
    %577 = vmatprep.subr.bf16.mxu0 0
    %578 = vmatpush1.bf16.msra.mxu0 0
    %579 = vmatprep.subr.bf16.mxu0 0
    %580 = vmatpush1.bf16.msra.mxu0 0
    %581 = vmatprep.subr.bf16.mxu0 0
    %582 = vmatpush1.bf16.msra.mxu0 0
    %583 = vmatprep.subr.bf16.mxu0 0
    %584 = vmatpush1.bf16.msra.mxu0 %v274
    %585 = vmatprep.subr.bf16.mxu0 0
    %586 = vmatpush1.bf16.msra.mxu0 %v273
    %587 = vmatprep.subr.bf16.mxu0 0
    %588 = vmatpush2.bf16.msra.mxu0 0
    %589 = vmatprep.subr.bf16.mxu0 0
    %590 = vmatpush2.bf16.msra.mxu0 0
    %591 = vmatprep.subr.bf16.mxu0 0
    %592 = vmatpush2.bf16.msra.mxu0 0
    %593 = vmatprep.subr.bf16.mxu0 0
    %594 = vmatpush2.bf16.msra.mxu0 0
    %595 = vmatprep.subr.bf16.mxu0 0
    %596 = vmatpush2.bf16.msra.mxu0 0
    %597 = vmatprep.subr.bf16.mxu0 0
    %598 = vmatpush2.bf16.msra.mxu0 0
    %599 = vmatprep.subr.bf16.mxu0 0
    %600 = vmatpush2.bf16.msra.mxu0 0
    %601 = vmatprep.subr.bf16.mxu0 0
    %602 = vmatpush2.bf16.msra.mxu0 0
    %603 = vmatprep.mubr.bf16.mxu0 0
    %604 = vmatmul.mubr.bf16.gmra.mxu0 %v569
    %v605 = vpop.f32.mrf.mxu0
    %v606 = vadd.f32 0.0, %v605
    %v607 = vpop.f32.mrf.mxu0
    %v608 = vpop.f32.mrf.mxu0
    %v609 = vpop.f32.mrf.mxu0
    %610 = vdwg.mxu0
    %611 = vmatprep.subr.bf16.mxu0 0
    %612 = vmatpush1.bf16.msra.mxu0 0
    %613 = vmatprep.subr.bf16.mxu0 0
    %614 = vmatpush1.bf16.msra.mxu0 0
    %615 = vmatprep.subr.bf16.mxu0 0
    %616 = vmatpush1.bf16.msra.mxu0 0
    %617 = vmatprep.subr.bf16.mxu0 0
    %618 = vmatpush1.bf16.msra.mxu0 0
    %619 = vmatprep.subr.bf16.mxu0 0
    %620 = vmatpush1.bf16.msra.mxu0 0
    %621 = vmatprep.subr.bf16.mxu0 0
    %622 = vmatpush1.bf16.msra.mxu0 0
    %623 = vmatprep.subr.bf16.mxu0 0
    %624 = vmatpush1.bf16.msra.mxu0 %v330
    %625 = vmatprep.subr.bf16.mxu0 0
    %626 = vmatpush1.bf16.msra.mxu0 %v329
    %627 = vmatprep.subr.bf16.mxu0 0
    %628 = vmatpush2.bf16.msra.mxu0 0
    %629 = vmatprep.subr.bf16.mxu0 0
    %630 = vmatpush2.bf16.msra.mxu0 0
    %631 = vmatprep.subr.bf16.mxu0 0
    %632 = vmatpush2.bf16.msra.mxu0 0
    %633 = vmatprep.subr.bf16.mxu0 0
    %634 = vmatpush2.bf16.msra.mxu0 0
    %635 = vmatprep.subr.bf16.mxu0 0
    %636 = vmatpush2.bf16.msra.mxu0 0
    %637 = vmatprep.subr.bf16.mxu0 0
    %638 = vmatpush2.bf16.msra.mxu0 0
    %639 = vmatprep.subr.bf16.mxu0 0
    %640 = vmatpush2.bf16.msra.mxu0 0
    %641 = vmatprep.subr.bf16.mxu0 0
    %642 = vmatpush2.bf16.msra.mxu0 0
    %643 = vmatprep.mubr.bf16.mxu0 0
    %644 = vmatmul.mubr.bf16.gmra.mxu0 %v569
    %v645 = vpop.f32.mrf.mxu0
    %v646 = vadd.f32 0.0, %v645
    %v647 = vpop.f32.mrf.mxu0
    %v648 = vpop.f32.mrf.mxu0
    %v649 = vpop.f32.mrf.mxu0
    %650 = vdwg.mxu0
    %v652 = vrot.slane %v606, 7
    %v653 = vrot.slane %v606, 1
    %v654 = vrot.slane %v606, 2
    %v659 = vadd.f32 %v97, %v652
    %v660 = vadd.f32 %v100, %v606
    %v661 = vadd.f32 %v105, %v653
    %v662 = vadd.f32 %v108, %v654
    %v663 = vxor.u32 %v659, 2147483648
    %v664 = vxor.u32 %v660, 2147483648
    %v665 = vxor.u32 %v661, 2147483648
    %v666 = vxor.u32 %v662, 2147483648
    %v667 = vmul.f32 %v663, 1.442695
    %v668 = vpow.pop %v667
    %v669 = vmul.f32 %v664, 1.442695
    %v670 = vpow.pop %v669
    %v671 = vmul.f32 %v665, 1.442695
    %v672 = vpow.pop %v671
    %v673 = vmul.f32 %v666, 1.442695
    %v674 = vpow.pop %v673
    %v675 = vadd.f32 %v668, 1.0
    %v676 = vadd.f32 %v670, 1.0
    %v677 = vadd.f32 %v672, 1.0
    %v678 = vadd.f32 %v674, 1.0
    %v679 = vrcp.pop %v675
    %v680 = vmul.f32 1.0, %v679
    %v681 = vrcp.pop %v676
    %v682 = vmul.f32 1.0, %v681
    %v683 = vrcp.pop %v677
    %v684 = vmul.f32 1.0, %v683
    %v685 = vrcp.pop %v678
    %v686 = vmul.f32 1.0, %v685
    %v688 = vrot.slane %v646, 7
    %v689 = vrot.slane %v646, 1
    %v690 = vrot.slane %v646, 2
    %v695 = vadd.f32 %v163, %v688
    %v696 = vadd.f32 %v166, %v646
    %v697 = vadd.f32 %v171, %v689
    %v698 = vadd.f32 %v174, %v690
    %v699 = vxor.u32 %v695, 2147483648
    %v700 = vxor.u32 %v696, 2147483648
    %v701 = vxor.u32 %v697, 2147483648
    %v702 = vxor.u32 %v698, 2147483648
    %v703 = vmul.f32 %v699, 1.442695
    %v704 = vpow.pop %v703
    %v705 = vmul.f32 %v700, 1.442695
    %v706 = vpow.pop %v705
    %v707 = vmul.f32 %v701, 1.442695
    %v708 = vpow.pop %v707
    %v709 = vmul.f32 %v702, 1.442695
    %v710 = vpow.pop %v709
    %v711 = vadd.f32 %v704, 1.0
    %v712 = vadd.f32 %v706, 1.0
    %v713 = vadd.f32 %v708, 1.0
    %v714 = vadd.f32 %v710, 1.0
    %v715 = vrcp.pop %v711
    %v716 = vmul.f32 1.0, %v715
    %v717 = vrcp.pop %v712
    %v718 = vmul.f32 1.0, %v717
    %v719 = vrcp.pop %v713
    %v720 = vmul.f32 1.0, %v719
    %v721 = vrcp.pop %v714
    %v722 = vmul.f32 1.0, %v721
    %723 = vmatprep.subr.bf16.mxu0 0
    %724 = vmatpush1.bf16.msra.mxu0 0
    %725 = vmatprep.subr.bf16.mxu0 0
    %726 = vmatpush1.bf16.msra.mxu0 0
    %727 = vmatprep.subr.bf16.mxu0 0
    %728 = vmatpush1.bf16.msra.mxu0 0
    %729 = vmatprep.subr.bf16.mxu0 0
    %730 = vmatpush1.bf16.msra.mxu0 0
    %731 = vmatprep.subr.bf16.mxu0 0
    %732 = vmatpush1.bf16.msra.mxu0 0
    %733 = vmatprep.subr.bf16.mxu0 0
    %734 = vmatpush1.bf16.msra.mxu0 0
    %735 = vmatprep.subr.bf16.mxu0 0
    %736 = vmatpush1.bf16.msra.mxu0 %v454
    %737 = vmatprep.subr.bf16.mxu0 0
    %738 = vmatpush1.bf16.msra.mxu0 %v453
    %739 = vmatprep.subr.bf16.mxu0 0
    %740 = vmatpush2.bf16.msra.mxu0 0
    %741 = vmatprep.subr.bf16.mxu0 0
    %742 = vmatpush2.bf16.msra.mxu0 0
    %743 = vmatprep.subr.bf16.mxu0 0
    %744 = vmatpush2.bf16.msra.mxu0 0
    %745 = vmatprep.subr.bf16.mxu0 0
    %746 = vmatpush2.bf16.msra.mxu0 0
    %747 = vmatprep.subr.bf16.mxu0 0
    %748 = vmatpush2.bf16.msra.mxu0 0
    %749 = vmatprep.subr.bf16.mxu0 0
    %750 = vmatpush2.bf16.msra.mxu0 0
    %751 = vmatprep.subr.bf16.mxu0 0
    %752 = vmatpush2.bf16.msra.mxu0 0
    %753 = vmatprep.subr.bf16.mxu0 0
    %754 = vmatpush2.bf16.msra.mxu0 0
    %755 = vmatprep.mubr.bf16.mxu0 0
    %756 = vmatmul.mubr.bf16.gmra.mxu0 %v569
    %v757 = vpop.f32.mrf.mxu0
    %v758 = vadd.f32 %v263, %v757
    %v759 = vpop.f32.mrf.mxu0
    %v760 = vpop.f32.mrf.mxu0
    %v761 = vpop.f32.mrf.mxu0
    %762 = vdwg.mxu0
    %v764 = vrot.slane %v758, 7
    %v765 = vrot.slane %v758, 1
    %v766 = vrot.slane %v758, 2
    %v771 = vmul.f32 %v680, %v764
    %v772 = vmul.f32 %v682, %v758
    %v773 = vmul.f32 %v684, %v765
    %v774 = vmul.f32 %v686, %v766
    %v775 = vadd.f32 %v229, %v771
    %v776 = vadd.f32 %v232, %v772
    %v777 = vadd.f32 %v237, %v773
    %v778 = vadd.f32 %v240, %v774
    %v779 = vtanh.pop %v775
    %v780 = vtanh.pop %v776
    %v781 = vtanh.pop %v777
    %v782 = vtanh.pop %v778
    %v783 = vsub.f32 1.0, %v716
    %v784 = vsub.f32 1.0, %v718
    %v785 = vsub.f32 1.0, %v720
    %v786 = vsub.f32 1.0, %v722
    %v787 = vmul.f32 %v783, %v779
    %v788 = vmul.f32 %v784, %v780
    %v789 = vmul.f32 %v785, %v781
    %v790 = vmul.f32 %v786, %v782
    %v791 = vrot.slane %v529, 7
    %v792 = vrot.slane %v531, 7
    %v793 = vrot.slane %v532, 7
    %v798 = vmul.f32 %v716, %v791
    %v799 = vmul.f32 %v718, %v537
    %v800 = vmul.f32 %v720, %v792
    %v801 = vmul.f32 %v722, %v793
    %v802 = vadd.f32 %v787, %v798
    %v803 = vadd.f32 %v788, %v799
    %v804 = vadd.f32 %v789, %v800
    %v805 = vadd.f32 %v790, %v801
    %v810 = vrot.slane %v803, 7
    %v811 = vsel %vm541, %v810, %v802
    %v812 = vrot.slane %v804, 6
    %v813 = vsel %vm544, %v812, %v811
    %v814 = vrot.slane %v805, 5
    %vm815 = vcmask 1044484
    %v816 = vsel %vm815, %v814, %v813
    %s818 = scalar_lea.vmem [#allocation2], 4
    %vm819 = vcmask 258049
    %820 = vst.msk [vmem:[%s818 - $0x1] sm:$0x1e] %vm819, %v816
    %v821 = vpack.c.bf16 %v802, %v802
    %v822 = vpack.c.bf16 %v803, %v803
    %v823 = vpack.c.bf16 %v804, %v804
    %v824 = vpack.c.bf16 %v805, %v805
    %v829 = vunpack.c.l.b16 %v821
    %v830 = vunpack.c.l.b16 %v822
    %v831 = vunpack.c.l.b16 %v823
    %v832 = vunpack.c.l.b16 %v824
    %v833 = vrot.slane %v829, 1
    %v834 = vsel %vm538, %v830, %v833
    %v835 = vrot.slane %v831, 7
    %v836 = vsel %vm541, %v835, %v834
    %v837 = vrot.slane %v832, 6
    %v838 = vsel %vm544, %v837, %v836
    %v839 = vpack.c.b16 %v838, %v838
    %v841 = vsel %vm277, %v839, 0
    %843 = vmatprep.subr.bf16.mxu0 0
    %844 = vmatpush1.bf16.msra.mxu0 0
    %845 = vmatprep.subr.bf16.mxu0 0
    %846 = vmatpush1.bf16.msra.mxu0 0
    %847 = vmatprep.subr.bf16.mxu0 0
    %848 = vmatpush1.bf16.msra.mxu0 0
    %849 = vmatprep.subr.bf16.mxu0 0
    %850 = vmatpush1.bf16.msra.mxu0 0
    %851 = vmatprep.subr.bf16.mxu0 0
    %852 = vmatpush1.bf16.msra.mxu0 0
    %853 = vmatprep.subr.bf16.mxu0 0
    %854 = vmatpush1.bf16.msra.mxu0 0
    %855 = vmatprep.subr.bf16.mxu0 0
    %856 = vmatpush1.bf16.msra.mxu0 %v274
    %857 = vmatprep.subr.bf16.mxu0 0
    %858 = vmatpush1.bf16.msra.mxu0 %v273
    %859 = vmatprep.subr.bf16.mxu0 0
    %860 = vmatpush2.bf16.msra.mxu0 0
    %861 = vmatprep.subr.bf16.mxu0 0
    %862 = vmatpush2.bf16.msra.mxu0 0
    %863 = vmatprep.subr.bf16.mxu0 0
    %864 = vmatpush2.bf16.msra.mxu0 0
    %865 = vmatprep.subr.bf16.mxu0 0
    %866 = vmatpush2.bf16.msra.mxu0 0
    %867 = vmatprep.subr.bf16.mxu0 0
    %868 = vmatpush2.bf16.msra.mxu0 0
    %869 = vmatprep.subr.bf16.mxu0 0
    %870 = vmatpush2.bf16.msra.mxu0 0
    %871 = vmatprep.subr.bf16.mxu0 0
    %872 = vmatpush2.bf16.msra.mxu0 0
    %873 = vmatprep.subr.bf16.mxu0 0
    %874 = vmatpush2.bf16.msra.mxu0 0
    %875 = vmatprep.mubr.bf16.mxu0 0
    %876 = vmatmul.mubr.bf16.gmra.mxu0 %v841
    %v877 = vpop.f32.mrf.mxu0
    %v878 = vadd.f32 0.0, %v877
    %v879 = vpop.f32.mrf.mxu0
    %v880 = vpop.f32.mrf.mxu0
    %v881 = vpop.f32.mrf.mxu0
    %882 = vdwg.mxu0
    %883 = vmatprep.subr.bf16.mxu0 0
    %884 = vmatpush1.bf16.msra.mxu0 0
    %885 = vmatprep.subr.bf16.mxu0 0
    %886 = vmatpush1.bf16.msra.mxu0 0
    %887 = vmatprep.subr.bf16.mxu0 0
    %888 = vmatpush1.bf16.msra.mxu0 0
    %889 = vmatprep.subr.bf16.mxu0 0
    %890 = vmatpush1.bf16.msra.mxu0 0
    %891 = vmatprep.subr.bf16.mxu0 0
    %892 = vmatpush1.bf16.msra.mxu0 0
    %893 = vmatprep.subr.bf16.mxu0 0
    %894 = vmatpush1.bf16.msra.mxu0 0
    %895 = vmatprep.subr.bf16.mxu0 0
    %896 = vmatpush1.bf16.msra.mxu0 %v330
    %897 = vmatprep.subr.bf16.mxu0 0
    %898 = vmatpush1.bf16.msra.mxu0 %v329
    %899 = vmatprep.subr.bf16.mxu0 0
    %900 = vmatpush2.bf16.msra.mxu0 0
    %901 = vmatprep.subr.bf16.mxu0 0
    %902 = vmatpush2.bf16.msra.mxu0 0
    %903 = vmatprep.subr.bf16.mxu0 0
    %904 = vmatpush2.bf16.msra.mxu0 0
    %905 = vmatprep.subr.bf16.mxu0 0
    %906 = vmatpush2.bf16.msra.mxu0 0
    %907 = vmatprep.subr.bf16.mxu0 0
    %908 = vmatpush2.bf16.msra.mxu0 0
    %909 = vmatprep.subr.bf16.mxu0 0
    %910 = vmatpush2.bf16.msra.mxu0 0
    %911 = vmatprep.subr.bf16.mxu0 0
    %912 = vmatpush2.bf16.msra.mxu0 0
    %913 = vmatprep.subr.bf16.mxu0 0
    %914 = vmatpush2.bf16.msra.mxu0 0
    %915 = vmatprep.mubr.bf16.mxu0 0
    %916 = vmatmul.mubr.bf16.gmra.mxu0 %v841
    %v917 = vpop.f32.mrf.mxu0
    %v918 = vadd.f32 0.0, %v917
    %v919 = vpop.f32.mrf.mxu0
    %v920 = vpop.f32.mrf.mxu0
    %v921 = vpop.f32.mrf.mxu0
    %922 = vdwg.mxu0
    %v924 = vrot.slane %v878, 6
    %v925 = vrot.slane %v878, 7
    %v926 = vrot.slane %v878, 1
    %v931 = vadd.f32 %v97, %v924
    %v932 = vadd.f32 %v100, %v925
    %v933 = vadd.f32 %v105, %v878
    %v934 = vadd.f32 %v108, %v926
    %v935 = vxor.u32 %v931, 2147483648
    %v936 = vxor.u32 %v932, 2147483648
    %v937 = vxor.u32 %v933, 2147483648
    %v938 = vxor.u32 %v934, 2147483648
    %v939 = vmul.f32 %v935, 1.442695
    %v940 = vpow.pop %v939
    %v941 = vmul.f32 %v936, 1.442695
    %v942 = vpow.pop %v941
    %v943 = vmul.f32 %v937, 1.442695
    %v944 = vpow.pop %v943
    %v945 = vmul.f32 %v938, 1.442695
    %v946 = vpow.pop %v945
    %v947 = vadd.f32 %v940, 1.0
    %v948 = vadd.f32 %v942, 1.0
    %v949 = vadd.f32 %v944, 1.0
    %v950 = vadd.f32 %v946, 1.0
    %v951 = vrcp.pop %v947
    %v952 = vmul.f32 1.0, %v951
    %v953 = vrcp.pop %v948
    %v954 = vmul.f32 1.0, %v953
    %v955 = vrcp.pop %v949
    %v956 = vmul.f32 1.0, %v955
    %v957 = vrcp.pop %v950
    %v958 = vmul.f32 1.0, %v957
    %v960 = vrot.slane %v918, 6
    %v961 = vrot.slane %v918, 7
    %v962 = vrot.slane %v918, 1
    %v967 = vadd.f32 %v163, %v960
    %v968 = vadd.f32 %v166, %v961
    %v969 = vadd.f32 %v171, %v918
    %v970 = vadd.f32 %v174, %v962
    %v971 = vxor.u32 %v967, 2147483648
    %v972 = vxor.u32 %v968, 2147483648
    %v973 = vxor.u32 %v969, 2147483648
    %v974 = vxor.u32 %v970, 2147483648
    %v975 = vmul.f32 %v971, 1.442695
    %v976 = vpow.pop %v975
    %v977 = vmul.f32 %v972, 1.442695
    %v978 = vpow.pop %v977
    %v979 = vmul.f32 %v973, 1.442695
    %v980 = vpow.pop %v979
    %v981 = vmul.f32 %v974, 1.442695
    %v982 = vpow.pop %v981
    %v983 = vadd.f32 %v976, 1.0
    %v984 = vadd.f32 %v978, 1.0
    %v985 = vadd.f32 %v980, 1.0
    %v986 = vadd.f32 %v982, 1.0
    %v987 = vrcp.pop %v983
    %v988 = vmul.f32 1.0, %v987
    %v989 = vrcp.pop %v984
    %v990 = vmul.f32 1.0, %v989
    %v991 = vrcp.pop %v985
    %v992 = vmul.f32 1.0, %v991
    %v993 = vrcp.pop %v986
    %v994 = vmul.f32 1.0, %v993
    %995 = vmatprep.subr.bf16.mxu0 0
    %996 = vmatpush1.bf16.msra.mxu0 0
    %997 = vmatprep.subr.bf16.mxu0 0
    %998 = vmatpush1.bf16.msra.mxu0 0
    %999 = vmatprep.subr.bf16.mxu0 0
    %1000 = vmatpush1.bf16.msra.mxu0 0
    %1001 = vmatprep.subr.bf16.mxu0 0
    %1002 = vmatpush1.bf16.msra.mxu0 0
    %1003 = vmatprep.subr.bf16.mxu0 0
    %1004 = vmatpush1.bf16.msra.mxu0 0
    %1005 = vmatprep.subr.bf16.mxu0 0
    %1006 = vmatpush1.bf16.msra.mxu0 0
    %1007 = vmatprep.subr.bf16.mxu0 0
    %1008 = vmatpush1.bf16.msra.mxu0 %v454
    %1009 = vmatprep.subr.bf16.mxu0 0
    %1010 = vmatpush1.bf16.msra.mxu0 %v453
    %1011 = vmatprep.subr.bf16.mxu0 0
    %1012 = vmatpush2.bf16.msra.mxu0 0
    %1013 = vmatprep.subr.bf16.mxu0 0
    %1014 = vmatpush2.bf16.msra.mxu0 0
    %1015 = vmatprep.subr.bf16.mxu0 0
    %1016 = vmatpush2.bf16.msra.mxu0 0
    %1017 = vmatprep.subr.bf16.mxu0 0
    %1018 = vmatpush2.bf16.msra.mxu0 0
    %1019 = vmatprep.subr.bf16.mxu0 0
    %1020 = vmatpush2.bf16.msra.mxu0 0
    %1021 = vmatprep.subr.bf16.mxu0 0
    %1022 = vmatpush2.bf16.msra.mxu0 0
    %1023 = vmatprep.subr.bf16.mxu0 0
    %1024 = vmatpush2.bf16.msra.mxu0 0
    %1025 = vmatprep.subr.bf16.mxu0 0
    %1026 = vmatpush2.bf16.msra.mxu0 0
    %1027 = vmatprep.mubr.bf16.mxu0 0
    %1028 = vmatmul.mubr.bf16.gmra.mxu0 %v841
    %v1029 = vpop.f32.mrf.mxu0
    %v1030 = vadd.f32 %v263, %v1029
    %v1031 = vpop.f32.mrf.mxu0
    %v1032 = vpop.f32.mrf.mxu0
    %v1033 = vpop.f32.mrf.mxu0
    %1034 = vdwg.mxu0
    %v1036 = vrot.slane %v1030, 6
    %v1037 = vrot.slane %v1030, 7
    %v1038 = vrot.slane %v1030, 1
    %v1043 = vmul.f32 %v952, %v1036
    %v1044 = vmul.f32 %v954, %v1037
    %v1045 = vmul.f32 %v956, %v1030
    %v1046 = vmul.f32 %v958, %v1038
    %v1047 = vadd.f32 %v229, %v1043
    %v1048 = vadd.f32 %v232, %v1044
    %v1049 = vadd.f32 %v237, %v1045
    %v1050 = vadd.f32 %v240, %v1046
    %v1051 = vtanh.pop %v1047
    %v1052 = vtanh.pop %v1048
    %v1053 = vtanh.pop %v1049
    %v1054 = vtanh.pop %v1050
    %v1055 = vsub.f32 1.0, %v988
    %v1056 = vsub.f32 1.0, %v990
    %v1057 = vsub.f32 1.0, %v992
    %v1058 = vsub.f32 1.0, %v994
    %v1059 = vmul.f32 %v1055, %v1051
    %v1060 = vmul.f32 %v1056, %v1052
    %v1061 = vmul.f32 %v1057, %v1053
    %v1062 = vmul.f32 %v1058, %v1054
    %v1063 = vrot.slane %v802, 7
    %v1064 = vrot.slane %v804, 7
    %v1065 = vrot.slane %v805, 7
    %v1070 = vmul.f32 %v988, %v1063
    %v1071 = vmul.f32 %v990, %v810
    %v1072 = vmul.f32 %v992, %v1064
    %v1073 = vmul.f32 %v994, %v1065
    %v1074 = vadd.f32 %v1059, %v1070
    %v1075 = vadd.f32 %v1060, %v1071
    %v1076 = vadd.f32 %v1061, %v1072
    %v1077 = vadd.f32 %v1062, %v1073
    %v1082 = vrot.slane %v1075, 7
    %v1083 = vsel %vm544, %v1082, %v1074
    %v1084 = vrot.slane %v1076, 6
    %v1085 = vsel %vm815, %v1084, %v1083
    %v1086 = vrot.slane %v1077, 5
    %vm1087 = vcmask 1045509
    %v1088 = vsel %vm1087, %v1086, %v1085
    %s1090 = scalar_lea.vmem [#allocation2], 8
    %vm1091 = vcmask 259074
    %1092 = vst.msk [vmem:[%s1090 - $0x2] sm:$0x3c] %vm1091, %v1088
    %v1093 = vpack.c.bf16 %v1074, %v1074
    %v1094 = vpack.c.bf16 %v1075, %v1075
    %v1095 = vpack.c.bf16 %v1076, %v1076
    %v1096 = vpack.c.bf16 %v1077, %v1077
    %v1101 = vunpack.c.l.b16 %v1093
    %v1102 = vunpack.c.l.b16 %v1094
    %v1103 = vunpack.c.l.b16 %v1095
    %v1104 = vunpack.c.l.b16 %v1096
    %v1105 = vrot.slane %v1101, 2
    %v1106 = vrot.slane %v1102, 1
    %v1107 = vsel %vm538, %v1106, %v1105
    %v1108 = vsel %vm541, %v1103, %v1107
    %v1109 = vrot.slane %v1104, 7
    %v1110 = vsel %vm544, %v1109, %v1108
    %v1111 = vpack.c.b16 %v1110, %v1110
    %v1113 = vsel %vm277, %v1111, 0
    %1115 = vmatprep.subr.bf16.mxu0 0
    %1116 = vmatpush1.bf16.msra.mxu0 0
    %1117 = vmatprep.subr.bf16.mxu0 0
    %1118 = vmatpush1.bf16.msra.mxu0 0
    %1119 = vmatprep.subr.bf16.mxu0 0
    %1120 = vmatpush1.bf16.msra.mxu0 0
    %1121 = vmatprep.subr.bf16.mxu0 0
    %1122 = vmatpush1.bf16.msra.mxu0 0
    %1123 = vmatprep.subr.bf16.mxu0 0
    %1124 = vmatpush1.bf16.msra.mxu0 0
    %1125 = vmatprep.subr.bf16.mxu0 0
    %1126 = vmatpush1.bf16.msra.mxu0 0
    %1127 = vmatprep.subr.bf16.mxu0 0
    %1128 = vmatpush1.bf16.msra.mxu0 %v274
    %1129 = vmatprep.subr.bf16.mxu0 0
    %1130 = vmatpush1.bf16.msra.mxu0 %v273
    %1131 = vmatprep.subr.bf16.mxu0 0
    %1132 = vmatpush2.bf16.msra.mxu0 0
    %1133 = vmatprep.subr.bf16.mxu0 0
    %1134 = vmatpush2.bf16.msra.mxu0 0
    %1135 = vmatprep.subr.bf16.mxu0 0
    %1136 = vmatpush2.bf16.msra.mxu0 0
    %1137 = vmatprep.subr.bf16.mxu0 0
    %1138 = vmatpush2.bf16.msra.mxu0 0
    %1139 = vmatprep.subr.bf16.mxu0 0
    %1140 = vmatpush2.bf16.msra.mxu0 0
    %1141 = vmatprep.subr.bf16.mxu0 0
    %1142 = vmatpush2.bf16.msra.mxu0 0
    %1143 = vmatprep.subr.bf16.mxu0 0
    %1144 = vmatpush2.bf16.msra.mxu0 0
    %1145 = vmatprep.subr.bf16.mxu0 0
    %1146 = vmatpush2.bf16.msra.mxu0 0
    %1147 = vmatprep.mubr.bf16.mxu0 0
    %1148 = vmatmul.mubr.bf16.gmra.mxu0 %v1113
    %v1149 = vpop.f32.mrf.mxu0
    %v1150 = vadd.f32 0.0, %v1149
    %v1151 = vpop.f32.mrf.mxu0
    %v1152 = vpop.f32.mrf.mxu0
    %v1153 = vpop.f32.mrf.mxu0
    %1154 = vdwg.mxu0
    %1155 = vmatprep.subr.bf16.mxu0 0
    %1156 = vmatpush1.bf16.msra.mxu0 0
    %1157 = vmatprep.subr.bf16.mxu0 0
    %1158 = vmatpush1.bf16.msra.mxu0 0
    %1159 = vmatprep.subr.bf16.mxu0 0
    %1160 = vmatpush1.bf16.msra.mxu0 0
    %1161 = vmatprep.subr.bf16.mxu0 0
    %1162 = vmatpush1.bf16.msra.mxu0 0
    %1163 = vmatprep.subr.bf16.mxu0 0
    %1164 = vmatpush1.bf16.msra.mxu0 0
    %1165 = vmatprep.subr.bf16.mxu0 0
    %1166 = vmatpush1.bf16.msra.mxu0 0
    %1167 = vmatprep.subr.bf16.mxu0 0
    %1168 = vmatpush1.bf16.msra.mxu0 %v330
    %1169 = vmatprep.subr.bf16.mxu0 0
    %1170 = vmatpush1.bf16.msra.mxu0 %v329
    %1171 = vmatprep.subr.bf16.mxu0 0
    %1172 = vmatpush2.bf16.msra.mxu0 0
    %1173 = vmatprep.subr.bf16.mxu0 0
    %1174 = vmatpush2.bf16.msra.mxu0 0
    %1175 = vmatprep.subr.bf16.mxu0 0
    %1176 = vmatpush2.bf16.msra.mxu0 0
    %1177 = vmatprep.subr.bf16.mxu0 0
    %1178 = vmatpush2.bf16.msra.mxu0 0
    %1179 = vmatprep.subr.bf16.mxu0 0
    %1180 = vmatpush2.bf16.msra.mxu0 0
    %1181 = vmatprep.subr.bf16.mxu0 0
    %1182 = vmatpush2.bf16.msra.mxu0 0
    %1183 = vmatprep.subr.bf16.mxu0 0
    %1184 = vmatpush2.bf16.msra.mxu0 0
    %1185 = vmatprep.subr.bf16.mxu0 0
    %1186 = vmatpush2.bf16.msra.mxu0 0
    %1187 = vmatprep.mubr.bf16.mxu0 0
    %1188 = vmatmul.mubr.bf16.gmra.mxu0 %v1113
    %v1189 = vpop.f32.mrf.mxu0
    %v1190 = vadd.f32 0.0, %v1189
    %v1191 = vpop.f32.mrf.mxu0
    %v1192 = vpop.f32.mrf.mxu0
    %v1193 = vpop.f32.mrf.mxu0
    %1194 = vdwg.mxu0
    %v1196 = vrot.slane %v1150, 5
    %v1197 = vrot.slane %v1150, 6
    %v1198 = vrot.slane %v1150, 7
    %v1203 = vadd.f32 %v97, %v1196
    %v1204 = vadd.f32 %v100, %v1197
    %v1205 = vadd.f32 %v105, %v1198
    %v1206 = vadd.f32 %v108, %v1150
    %v1207 = vxor.u32 %v1203, 2147483648
    %v1208 = vxor.u32 %v1204, 2147483648
    %v1209 = vxor.u32 %v1205, 2147483648
    %v1210 = vxor.u32 %v1206, 2147483648
    %v1211 = vmul.f32 %v1207, 1.442695
    %v1212 = vpow.pop %v1211
    %v1213 = vmul.f32 %v1208, 1.442695
    %v1214 = vpow.pop %v1213
    %v1215 = vmul.f32 %v1209, 1.442695
    %v1216 = vpow.pop %v1215
    %v1217 = vmul.f32 %v1210, 1.442695
    %v1218 = vpow.pop %v1217
    %v1219 = vadd.f32 %v1212, 1.0
    %v1220 = vadd.f32 %v1214, 1.0
    %v1221 = vadd.f32 %v1216, 1.0
    %v1222 = vadd.f32 %v1218, 1.0
    %v1223 = vrcp.pop %v1219
    %v1224 = vmul.f32 1.0, %v1223
    %v1225 = vrcp.pop %v1220
    %v1226 = vmul.f32 1.0, %v1225
    %v1227 = vrcp.pop %v1221
    %v1228 = vmul.f32 1.0, %v1227
    %v1229 = vrcp.pop %v1222
    %v1230 = vmul.f32 1.0, %v1229
    %v1232 = vrot.slane %v1190, 5
    %v1233 = vrot.slane %v1190, 6
    %v1234 = vrot.slane %v1190, 7
    %v1239 = vadd.f32 %v163, %v1232
    %v1240 = vadd.f32 %v166, %v1233
    %v1241 = vadd.f32 %v171, %v1234
    %v1242 = vadd.f32 %v174, %v1190
    %v1243 = vxor.u32 %v1239, 2147483648
    %v1244 = vxor.u32 %v1240, 2147483648
    %v1245 = vxor.u32 %v1241, 2147483648
    %v1246 = vxor.u32 %v1242, 2147483648
    %v1247 = vmul.f32 %v1243, 1.442695
    %v1248 = vpow.pop %v1247
    %v1249 = vmul.f32 %v1244, 1.442695
    %v1250 = vpow.pop %v1249
    %v1251 = vmul.f32 %v1245, 1.442695
    %v1252 = vpow.pop %v1251
    %v1253 = vmul.f32 %v1246, 1.442695
    %v1254 = vpow.pop %v1253
    %v1255 = vadd.f32 %v1248, 1.0
    %v1256 = vadd.f32 %v1250, 1.0
    %v1257 = vadd.f32 %v1252, 1.0
    %v1258 = vadd.f32 %v1254, 1.0
    %v1259 = vrcp.pop %v1255
    %v1260 = vmul.f32 1.0, %v1259
    %v1261 = vrcp.pop %v1256
    %v1262 = vmul.f32 1.0, %v1261
    %v1263 = vrcp.pop %v1257
    %v1264 = vmul.f32 1.0, %v1263
    %v1265 = vrcp.pop %v1258
    %v1266 = vmul.f32 1.0, %v1265
    %1267 = vmatprep.subr.bf16.mxu0 0
    %1268 = vmatpush1.bf16.msra.mxu0 0
    %1269 = vmatprep.subr.bf16.mxu0 0
    %1270 = vmatpush1.bf16.msra.mxu0 0
    %1271 = vmatprep.subr.bf16.mxu0 0
    %1272 = vmatpush1.bf16.msra.mxu0 0
    %1273 = vmatprep.subr.bf16.mxu0 0
    %1274 = vmatpush1.bf16.msra.mxu0 0
    %1275 = vmatprep.subr.bf16.mxu0 0
    %1276 = vmatpush1.bf16.msra.mxu0 0
    %1277 = vmatprep.subr.bf16.mxu0 0
    %1278 = vmatpush1.bf16.msra.mxu0 0
    %1279 = vmatprep.subr.bf16.mxu0 0
    %1280 = vmatpush1.bf16.msra.mxu0 %v454
    %1281 = vmatprep.subr.bf16.mxu0 0
    %1282 = vmatpush1.bf16.msra.mxu0 %v453
    %1283 = vmatprep.subr.bf16.mxu0 0
    %1284 = vmatpush2.bf16.msra.mxu0 0
    %1285 = vmatprep.subr.bf16.mxu0 0
    %1286 = vmatpush2.bf16.msra.mxu0 0
    %1287 = vmatprep.subr.bf16.mxu0 0
    %1288 = vmatpush2.bf16.msra.mxu0 0
    %1289 = vmatprep.subr.bf16.mxu0 0
    %1290 = vmatpush2.bf16.msra.mxu0 0
    %1291 = vmatprep.subr.bf16.mxu0 0
    %1292 = vmatpush2.bf16.msra.mxu0 0
    %1293 = vmatprep.subr.bf16.mxu0 0
    %1294 = vmatpush2.bf16.msra.mxu0 0
    %1295 = vmatprep.subr.bf16.mxu0 0
    %1296 = vmatpush2.bf16.msra.mxu0 0
    %1297 = vmatprep.subr.bf16.mxu0 0
    %1298 = vmatpush2.bf16.msra.mxu0 0
    %1299 = vmatprep.mubr.bf16.mxu0 0
    %1300 = vmatmul.mubr.bf16.gmra.mxu0 %v1113
    %v1301 = vpop.f32.mrf.mxu0
    %v1302 = vadd.f32 %v263, %v1301
    %v1303 = vpop.f32.mrf.mxu0
    %v1304 = vpop.f32.mrf.mxu0
    %v1305 = vpop.f32.mrf.mxu0
    %1306 = vdwg.mxu0
    %v1308 = vrot.slane %v1302, 5
    %v1309 = vrot.slane %v1302, 6
    %v1310 = vrot.slane %v1302, 7
    %v1315 = vmul.f32 %v1224, %v1308
    %v1316 = vmul.f32 %v1226, %v1309
    %v1317 = vmul.f32 %v1228, %v1310
    %v1318 = vmul.f32 %v1230, %v1302
    %v1319 = vadd.f32 %v229, %v1315
    %v1320 = vadd.f32 %v232, %v1316
    %v1321 = vadd.f32 %v237, %v1317
    %v1322 = vadd.f32 %v240, %v1318
    %v1323 = vtanh.pop %v1319
    %v1324 = vtanh.pop %v1320
    %v1325 = vtanh.pop %v1321
    %v1326 = vtanh.pop %v1322
    %v1327 = vsub.f32 1.0, %v1260
    %v1328 = vsub.f32 1.0, %v1262
    %v1329 = vsub.f32 1.0, %v1264
    %v1330 = vsub.f32 1.0, %v1266
    %v1331 = vmul.f32 %v1327, %v1323
    %v1332 = vmul.f32 %v1328, %v1324
    %v1333 = vmul.f32 %v1329, %v1325
    %v1334 = vmul.f32 %v1330, %v1326
    %v1335 = vrot.slane %v1074, 7
    %v1336 = vrot.slane %v1076, 7
    %v1337 = vrot.slane %v1077, 7
    %v1342 = vmul.f32 %v1260, %v1335
    %v1343 = vmul.f32 %v1262, %v1082
    %v1344 = vmul.f32 %v1264, %v1336
    %v1345 = vmul.f32 %v1266, %v1337
    %v1346 = vadd.f32 %v1331, %v1342
    %v1347 = vadd.f32 %v1332, %v1343
    %v1348 = vadd.f32 %v1333, %v1344
    %v1349 = vadd.f32 %v1334, %v1345
    %v1354 = vrot.slane %v1347, 7
    %v1355 = vsel %vm815, %v1354, %v1346
    %v1356 = vrot.slane %v1348, 6
    %v1357 = vsel %vm1087, %v1356, %v1355
    %v1358 = vrot.slane %v1349, 5
    %vm1359 = vcmask 1046534
    %v1360 = vsel %vm1359, %v1358, %v1357
    %s1362 = scalar_lea.vmem [#allocation2], 12
    %vm1363 = vcmask 260099
    %1364 = vst.msk [vmem:[%s1362 - $0x3] sm:$0x78] %vm1363, %v1360
    %v1365 = vpack.c.bf16 %v1346, %v1346
    %v1366 = vpack.c.bf16 %v1347, %v1347
    %v1367 = vpack.c.bf16 %v1348, %v1348
    %v1368 = vpack.c.bf16 %v1349, %v1349
    %v1373 = vunpack.c.l.b16 %v1365
    %v1374 = vunpack.c.l.b16 %v1366
    %v1375 = vunpack.c.l.b16 %v1367
    %v1376 = vunpack.c.l.b16 %v1368
    %v1377 = vrot.slane %v1373, 3
    %v1378 = vrot.slane %v1374, 2
    %v1379 = vsel %vm538, %v1378, %v1377
    %v1380 = vrot.slane %v1375, 1
    %v1381 = vsel %vm541, %v1380, %v1379
    %v1382 = vsel %vm544, %v1376, %v1381
    %v1383 = vpack.c.b16 %v1382, %v1382
    %v1385 = vsel %vm277, %v1383, 0
    %1387 = vmatprep.subr.bf16.mxu0 0
    %1388 = vmatpush1.bf16.msra.mxu0 0
    %1389 = vmatprep.subr.bf16.mxu0 0
    %1390 = vmatpush1.bf16.msra.mxu0 0
    %1391 = vmatprep.subr.bf16.mxu0 0
    %1392 = vmatpush1.bf16.msra.mxu0 0
    %1393 = vmatprep.subr.bf16.mxu0 0
    %1394 = vmatpush1.bf16.msra.mxu0 0
    %1395 = vmatprep.subr.bf16.mxu0 0
    %1396 = vmatpush1.bf16.msra.mxu0 0
    %1397 = vmatprep.subr.bf16.mxu0 0
    %1398 = vmatpush1.bf16.msra.mxu0 0
    %1399 = vmatprep.subr.bf16.mxu0 0
    %1400 = vmatpush1.bf16.msra.mxu0 %v274
    %1401 = vmatprep.subr.bf16.mxu0 0
    %1402 = vmatpush1.bf16.msra.mxu0 %v273
    %1403 = vmatprep.subr.bf16.mxu0 0
    %1404 = vmatpush2.bf16.msra.mxu0 0
    %1405 = vmatprep.subr.bf16.mxu0 0
    %1406 = vmatpush2.bf16.msra.mxu0 0
    %1407 = vmatprep.subr.bf16.mxu0 0
    %1408 = vmatpush2.bf16.msra.mxu0 0
    %1409 = vmatprep.subr.bf16.mxu0 0
    %1410 = vmatpush2.bf16.msra.mxu0 0
    %1411 = vmatprep.subr.bf16.mxu0 0
    %1412 = vmatpush2.bf16.msra.mxu0 0
    %1413 = vmatprep.subr.bf16.mxu0 0
    %1414 = vmatpush2.bf16.msra.mxu0 0
    %1415 = vmatprep.subr.bf16.mxu0 0
    %1416 = vmatpush2.bf16.msra.mxu0 0
    %1417 = vmatprep.subr.bf16.mxu0 0
    %1418 = vmatpush2.bf16.msra.mxu0 0
    %1419 = vmatprep.mubr.bf16.mxu0 0
    %1420 = vmatmul.mubr.bf16.gmra.mxu0 %v1385
    %v1421 = vpop.f32.mrf.mxu0
    %v1422 = vadd.f32 0.0, %v1421
    %v1423 = vpop.f32.mrf.mxu0
    %v1424 = vpop.f32.mrf.mxu0
    %v1425 = vpop.f32.mrf.mxu0
    %1426 = vdwg.mxu0
    %1427 = vmatprep.subr.bf16.mxu0 0
    %1428 = vmatpush1.bf16.msra.mxu0 0
    %1429 = vmatprep.subr.bf16.mxu0 0
    %1430 = vmatpush1.bf16.msra.mxu0 0
    %1431 = vmatprep.subr.bf16.mxu0 0
    %1432 = vmatpush1.bf16.msra.mxu0 0
    %1433 = vmatprep.subr.bf16.mxu0 0
    %1434 = vmatpush1.bf16.msra.mxu0 0
    %1435 = vmatprep.subr.bf16.mxu0 0
    %1436 = vmatpush1.bf16.msra.mxu0 0
    %1437 = vmatprep.subr.bf16.mxu0 0
    %1438 = vmatpush1.bf16.msra.mxu0 0
    %1439 = vmatprep.subr.bf16.mxu0 0
    %1440 = vmatpush1.bf16.msra.mxu0 %v330
    %1441 = vmatprep.subr.bf16.mxu0 0
    %1442 = vmatpush1.bf16.msra.mxu0 %v329
    %1443 = vmatprep.subr.bf16.mxu0 0
    %1444 = vmatpush2.bf16.msra.mxu0 0
    %1445 = vmatprep.subr.bf16.mxu0 0
    %1446 = vmatpush2.bf16.msra.mxu0 0
    %1447 = vmatprep.subr.bf16.mxu0 0
    %1448 = vmatpush2.bf16.msra.mxu0 0
    %1449 = vmatprep.subr.bf16.mxu0 0
    %1450 = vmatpush2.bf16.msra.mxu0 0
    %1451 = vmatprep.subr.bf16.mxu0 0
    %1452 = vmatpush2.bf16.msra.mxu0 0
    %1453 = vmatprep.subr.bf16.mxu0 0
    %1454 = vmatpush2.bf16.msra.mxu0 0
    %1455 = vmatprep.subr.bf16.mxu0 0
    %1456 = vmatpush2.bf16.msra.mxu0 0
    %1457 = vmatprep.subr.bf16.mxu0 0
    %1458 = vmatpush2.bf16.msra.mxu0 0
    %1459 = vmatprep.mubr.bf16.mxu0 0
    %1460 = vmatmul.mubr.bf16.gmra.mxu0 %v1385
    %v1461 = vpop.f32.mrf.mxu0
    %v1462 = vadd.f32 0.0, %v1461
    %v1463 = vpop.f32.mrf.mxu0
    %v1464 = vpop.f32.mrf.mxu0
    %v1465 = vpop.f32.mrf.mxu0
    %1466 = vdwg.mxu0
    %v1468 = vrot.slane %v1422, 4
    %v1469 = vrot.slane %v1422, 5
    %v1470 = vrot.slane %v1422, 6
    %v1471 = vrot.slane %v1422, 7
    %v1476 = vadd.f32 %v97, %v1468
    %v1477 = vadd.f32 %v100, %v1469
    %v1478 = vadd.f32 %v105, %v1470
    %v1479 = vadd.f32 %v108, %v1471
    %v1480 = vxor.u32 %v1476, 2147483648
    %v1481 = vxor.u32 %v1477, 2147483648
    %v1482 = vxor.u32 %v1478, 2147483648
    %v1483 = vxor.u32 %v1479, 2147483648
    %v1484 = vmul.f32 %v1480, 1.442695
    %v1485 = vpow.pop %v1484
    %v1486 = vmul.f32 %v1481, 1.442695
    %v1487 = vpow.pop %v1486
    %v1488 = vmul.f32 %v1482, 1.442695
    %v1489 = vpow.pop %v1488
    %v1490 = vmul.f32 %v1483, 1.442695
    %v1491 = vpow.pop %v1490
    %v1492 = vadd.f32 %v1485, 1.0
    %v1493 = vadd.f32 %v1487, 1.0
    %v1494 = vadd.f32 %v1489, 1.0
    %v1495 = vadd.f32 %v1491, 1.0
    %v1496 = vrcp.pop %v1492
    %v1497 = vmul.f32 1.0, %v1496
    %v1498 = vrcp.pop %v1493
    %v1499 = vmul.f32 1.0, %v1498
    %v1500 = vrcp.pop %v1494
    %v1501 = vmul.f32 1.0, %v1500
    %v1502 = vrcp.pop %v1495
    %v1503 = vmul.f32 1.0, %v1502
    %v1505 = vrot.slane %v1462, 4
    %v1506 = vrot.slane %v1462, 5
    %v1507 = vrot.slane %v1462, 6
    %v1508 = vrot.slane %v1462, 7
    %v1513 = vadd.f32 %v163, %v1505
    %v1514 = vadd.f32 %v166, %v1506
    %v1515 = vadd.f32 %v171, %v1507
    %v1516 = vadd.f32 %v174, %v1508
    %v1517 = vxor.u32 %v1513, 2147483648
    %v1518 = vxor.u32 %v1514, 2147483648
    %v1519 = vxor.u32 %v1515, 2147483648
    %v1520 = vxor.u32 %v1516, 2147483648
    %v1521 = vmul.f32 %v1517, 1.442695
    %v1522 = vpow.pop %v1521
    %v1523 = vmul.f32 %v1518, 1.442695
    %v1524 = vpow.pop %v1523
    %v1525 = vmul.f32 %v1519, 1.442695
    %v1526 = vpow.pop %v1525
    %v1527 = vmul.f32 %v1520, 1.442695
    %v1528 = vpow.pop %v1527
    %v1529 = vadd.f32 %v1522, 1.0
    %v1530 = vadd.f32 %v1524, 1.0
    %v1531 = vadd.f32 %v1526, 1.0
    %v1532 = vadd.f32 %v1528, 1.0
    %v1533 = vrcp.pop %v1529
    %v1534 = vmul.f32 1.0, %v1533
    %v1535 = vrcp.pop %v1530
    %v1536 = vmul.f32 1.0, %v1535
    %v1537 = vrcp.pop %v1531
    %v1538 = vmul.f32 1.0, %v1537
    %v1539 = vrcp.pop %v1532
    %v1540 = vmul.f32 1.0, %v1539
    %1541 = vmatprep.subr.bf16.mxu0 0
    %1542 = vmatpush1.bf16.msra.mxu0 0
    %1543 = vmatprep.subr.bf16.mxu0 0
    %1544 = vmatpush1.bf16.msra.mxu0 0
    %1545 = vmatprep.subr.bf16.mxu0 0
    %1546 = vmatpush1.bf16.msra.mxu0 0
    %1547 = vmatprep.subr.bf16.mxu0 0
    %1548 = vmatpush1.bf16.msra.mxu0 0
    %1549 = vmatprep.subr.bf16.mxu0 0
    %1550 = vmatpush1.bf16.msra.mxu0 0
    %1551 = vmatprep.subr.bf16.mxu0 0
    %1552 = vmatpush1.bf16.msra.mxu0 0
    %1553 = vmatprep.subr.bf16.mxu0 0
    %1554 = vmatpush1.bf16.msra.mxu0 %v454
    %1555 = vmatprep.subr.bf16.mxu0 0
    %1556 = vmatpush1.bf16.msra.mxu0 %v453
    %1557 = vmatprep.subr.bf16.mxu0 0
    %1558 = vmatpush2.bf16.msra.mxu0 0
    %1559 = vmatprep.subr.bf16.mxu0 0
    %1560 = vmatpush2.bf16.msra.mxu0 0
    %1561 = vmatprep.subr.bf16.mxu0 0
    %1562 = vmatpush2.bf16.msra.mxu0 0
    %1563 = vmatprep.subr.bf16.mxu0 0
    %1564 = vmatpush2.bf16.msra.mxu0 0
    %1565 = vmatprep.subr.bf16.mxu0 0
    %1566 = vmatpush2.bf16.msra.mxu0 0
    %1567 = vmatprep.subr.bf16.mxu0 0
    %1568 = vmatpush2.bf16.msra.mxu0 0
    %1569 = vmatprep.subr.bf16.mxu0 0
    %1570 = vmatpush2.bf16.msra.mxu0 0
    %1571 = vmatprep.subr.bf16.mxu0 0
    %1572 = vmatpush2.bf16.msra.mxu0 0
    %1573 = vmatprep.mubr.bf16.mxu0 0
    %1574 = vmatmul.mubr.bf16.gmra.mxu0 %v1385
    %v1575 = vpop.f32.mrf.mxu0
    %v1576 = vadd.f32 %v263, %v1575
    %v1577 = vpop.f32.mrf.mxu0
    %v1578 = vpop.f32.mrf.mxu0
    %v1579 = vpop.f32.mrf.mxu0
    %1580 = vdwg.mxu0
    %v1582 = vrot.slane %v1576, 4
    %v1583 = vrot.slane %v1576, 5
    %v1584 = vrot.slane %v1576, 6
    %v1585 = vrot.slane %v1576, 7
    %v1590 = vmul.f32 %v1497, %v1582
    %v1591 = vmul.f32 %v1499, %v1583
    %v1592 = vmul.f32 %v1501, %v1584
    %v1593 = vmul.f32 %v1503, %v1585
    %v1594 = vadd.f32 %v229, %v1590
    %v1595 = vadd.f32 %v232, %v1591
    %v1596 = vadd.f32 %v237, %v1592
    %v1597 = vadd.f32 %v240, %v1593
    %v1598 = vtanh.pop %v1594
    %v1599 = vtanh.pop %v1595
    %v1600 = vtanh.pop %v1596
    %v1601 = vtanh.pop %v1597
    %v1602 = vsub.f32 1.0, %v1534
    %v1603 = vsub.f32 1.0, %v1536
    %v1604 = vsub.f32 1.0, %v1538
    %v1605 = vsub.f32 1.0, %v1540
    %v1606 = vmul.f32 %v1602, %v1598
    %v1607 = vmul.f32 %v1603, %v1599
    %v1608 = vmul.f32 %v1604, %v1600
    %v1609 = vmul.f32 %v1605, %v1601
    %v1610 = vrot.slane %v1346, 7
    %v1611 = vrot.slane %v1348, 7
    %v1612 = vrot.slane %v1349, 7
    %v1617 = vmul.f32 %v1534, %v1610
    %v1618 = vmul.f32 %v1536, %v1354
    %v1619 = vmul.f32 %v1538, %v1611
    %v1620 = vmul.f32 %v1540, %v1612
    %v1621 = vadd.f32 %v1606, %v1617
    %v1622 = vadd.f32 %v1607, %v1618
    %v1623 = vadd.f32 %v1608, %v1619
    %v1624 = vadd.f32 %v1609, %v1620
    %v1629 = vrot.slane %v1622, 7
    %v1630 = vsel %vm1087, %v1629, %v1621
    %v1631 = vrot.slane %v1623, 6
    %v1632 = vsel %vm1359, %v1631, %v1630
    %v1633 = vrot.slane %v1624, 5
    %vm1634 = vcmask 1047559
    %v1635 = vsel %vm1634, %v1633, %v1632
    %s1637 = scalar_lea.vmem [#allocation2], 16
    %vm1638 = vcmask 261124
    %1639 = vst.msk [vmem:[%s1637 - $0x4] sm:$0xf0] %vm1638, %v1635
    %v1640 = vpack.c.bf16 %v1621, %v1621
    %v1641 = vpack.c.bf16 %v1622, %v1622
    %v1642 = vpack.c.bf16 %v1623, %v1623
    %v1643 = vpack.c.bf16 %v1624, %v1624
    %v1648 = vunpack.c.l.b16 %v1640
    %v1649 = vunpack.c.l.b16 %v1641
    %v1650 = vunpack.c.l.b16 %v1642
    %v1651 = vunpack.c.l.b16 %v1643
    %v1652 = vrot.slane %v1648, 4
    %v1653 = vrot.slane %v1649, 3
    %v1654 = vsel %vm538, %v1653, %v1652
    %v1655 = vrot.slane %v1650, 2
    %v1656 = vsel %vm541, %v1655, %v1654
    %v1657 = vrot.slane %v1651, 1
    %v1658 = vsel %vm544, %v1657, %v1656
    %v1659 = vpack.c.b16 %v1658, %v1658
    %v1661 = vsel %vm277, %v1659, 0
    %1663 = vmatprep.subr.bf16.mxu0 0
    %1664 = vmatpush1.bf16.msra.mxu0 0
    %1665 = vmatprep.subr.bf16.mxu0 0
    %1666 = vmatpush1.bf16.msra.mxu0 0
    %1667 = vmatprep.subr.bf16.mxu0 0
    %1668 = vmatpush1.bf16.msra.mxu0 0
    %1669 = vmatprep.subr.bf16.mxu0 0
    %1670 = vmatpush1.bf16.msra.mxu0 0
    %1671 = vmatprep.subr.bf16.mxu0 0
    %1672 = vmatpush1.bf16.msra.mxu0 0
    %1673 = vmatprep.subr.bf16.mxu0 0
    %1674 = vmatpush1.bf16.msra.mxu0 0
    %1675 = vmatprep.subr.bf16.mxu0 0
    %1676 = vmatpush1.bf16.msra.mxu0 %v274
    %1677 = vmatprep.subr.bf16.mxu0 0
    %1678 = vmatpush1.bf16.msra.mxu0 %v273
    %1679 = vmatprep.subr.bf16.mxu0 0
    %1680 = vmatpush2.bf16.msra.mxu0 0
    %1681 = vmatprep.subr.bf16.mxu0 0
    %1682 = vmatpush2.bf16.msra.mxu0 0
    %1683 = vmatprep.subr.bf16.mxu0 0
    %1684 = vmatpush2.bf16.msra.mxu0 0
    %1685 = vmatprep.subr.bf16.mxu0 0
    %1686 = vmatpush2.bf16.msra.mxu0 0
    %1687 = vmatprep.subr.bf16.mxu0 0
    %1688 = vmatpush2.bf16.msra.mxu0 0
    %1689 = vmatprep.subr.bf16.mxu0 0
    %1690 = vmatpush2.bf16.msra.mxu0 0
    %1691 = vmatprep.subr.bf16.mxu0 0
    %1692 = vmatpush2.bf16.msra.mxu0 0
    %1693 = vmatprep.subr.bf16.mxu0 0
    %1694 = vmatpush2.bf16.msra.mxu0 0
    %1695 = vmatprep.mubr.bf16.mxu0 0
    %1696 = vmatmul.mubr.bf16.gmra.mxu0 %v1661
    %v1697 = vpop.f32.mrf.mxu0
    %v1698 = vadd.f32 0.0, %v1697
    %v1699 = vpop.f32.mrf.mxu0
    %v1700 = vpop.f32.mrf.mxu0
    %v1701 = vpop.f32.mrf.mxu0
    %1702 = vdwg.mxu0
    %1703 = vmatprep.subr.bf16.mxu0 0
    %1704 = vmatpush1.bf16.msra.mxu0 0
    %1705 = vmatprep.subr.bf16.mxu0 0
    %1706 = vmatpush1.bf16.msra.mxu0 0
    %1707 = vmatprep.subr.bf16.mxu0 0
    %1708 = vmatpush1.bf16.msra.mxu0 0
    %1709 = vmatprep.subr.bf16.mxu0 0
    %1710 = vmatpush1.bf16.msra.mxu0 0
    %1711 = vmatprep.subr.bf16.mxu0 0
    %1712 = vmatpush1.bf16.msra.mxu0 0
    %1713 = vmatprep.subr.bf16.mxu0 0
    %1714 = vmatpush1.bf16.msra.mxu0 0
    %1715 = vmatprep.subr.bf16.mxu0 0
    %1716 = vmatpush1.bf16.msra.mxu0 %v330
    %1717 = vmatprep.subr.bf16.mxu0 0
    %1718 = vmatpush1.bf16.msra.mxu0 %v329
    %1719 = vmatprep.subr.bf16.mxu0 0
    %1720 = vmatpush2.bf16.msra.mxu0 0
    %1721 = vmatprep.subr.bf16.mxu0 0
    %1722 = vmatpush2.bf16.msra.mxu0 0
    %1723 = vmatprep.subr.bf16.mxu0 0
    %1724 = vmatpush2.bf16.msra.mxu0 0
    %1725 = vmatprep.subr.bf16.mxu0 0
    %1726 = vmatpush2.bf16.msra.mxu0 0
    %1727 = vmatprep.subr.bf16.mxu0 0
    %1728 = vmatpush2.bf16.msra.mxu0 0
    %1729 = vmatprep.subr.bf16.mxu0 0
    %1730 = vmatpush2.bf16.msra.mxu0 0
    %1731 = vmatprep.subr.bf16.mxu0 0
    %1732 = vmatpush2.bf16.msra.mxu0 0
    %1733 = vmatprep.subr.bf16.mxu0 0
    %1734 = vmatpush2.bf16.msra.mxu0 0
    %1735 = vmatprep.mubr.bf16.mxu0 0
    %1736 = vmatmul.mubr.bf16.gmra.mxu0 %v1661
    %v1737 = vpop.f32.mrf.mxu0
    %v1738 = vadd.f32 0.0, %v1737
    %v1739 = vpop.f32.mrf.mxu0
    %v1740 = vpop.f32.mrf.mxu0
    %v1741 = vpop.f32.mrf.mxu0
    %1742 = vdwg.mxu0
    %v1744 = vrot.slane %v1698, 3
    %v1745 = vrot.slane %v1698, 4
    %v1746 = vrot.slane %v1698, 5
    %v1747 = vrot.slane %v1698, 6
    %v1752 = vadd.f32 %v97, %v1744
    %v1753 = vadd.f32 %v100, %v1745
    %v1754 = vadd.f32 %v105, %v1746
    %v1755 = vadd.f32 %v108, %v1747
    %v1756 = vxor.u32 %v1752, 2147483648
    %v1757 = vxor.u32 %v1753, 2147483648
    %v1758 = vxor.u32 %v1754, 2147483648
    %v1759 = vxor.u32 %v1755, 2147483648
    %v1760 = vmul.f32 %v1756, 1.442695
    %v1761 = vpow.pop %v1760
    %v1762 = vmul.f32 %v1757, 1.442695
    %v1763 = vpow.pop %v1762
    %v1764 = vmul.f32 %v1758, 1.442695
    %v1765 = vpow.pop %v1764
    %v1766 = vmul.f32 %v1759, 1.442695
    %v1767 = vpow.pop %v1766
    %v1768 = vadd.f32 %v1761, 1.0
    %v1769 = vadd.f32 %v1763, 1.0
    %v1770 = vadd.f32 %v1765, 1.0
    %v1771 = vadd.f32 %v1767, 1.0
    %v1772 = vrcp.pop %v1768
    %v1773 = vmul.f32 1.0, %v1772
    %v1774 = vrcp.pop %v1769
    %v1775 = vmul.f32 1.0, %v1774
    %v1776 = vrcp.pop %v1770
    %v1777 = vmul.f32 1.0, %v1776
    %v1778 = vrcp.pop %v1771
    %v1779 = vmul.f32 1.0, %v1778
    %v1781 = vrot.slane %v1738, 3
    %v1782 = vrot.slane %v1738, 4
    %v1783 = vrot.slane %v1738, 5
    %v1784 = vrot.slane %v1738, 6
    %v1789 = vadd.f32 %v163, %v1781
    %v1790 = vadd.f32 %v166, %v1782
    %v1791 = vadd.f32 %v171, %v1783
    %v1792 = vadd.f32 %v174, %v1784
    %v1793 = vxor.u32 %v1789, 2147483648
    %v1794 = vxor.u32 %v1790, 2147483648
    %v1795 = vxor.u32 %v1791, 2147483648
    %v1796 = vxor.u32 %v1792, 2147483648
    %v1797 = vmul.f32 %v1793, 1.442695
    %v1798 = vpow.pop %v1797
    %v1799 = vmul.f32 %v1794, 1.442695
    %v1800 = vpow.pop %v1799
    %v1801 = vmul.f32 %v1795, 1.442695
    %v1802 = vpow.pop %v1801
    %v1803 = vmul.f32 %v1796, 1.442695
    %v1804 = vpow.pop %v1803
    %v1805 = vadd.f32 %v1798, 1.0
    %v1806 = vadd.f32 %v1800, 1.0
    %v1807 = vadd.f32 %v1802, 1.0
    %v1808 = vadd.f32 %v1804, 1.0
    %v1809 = vrcp.pop %v1805
    %v1810 = vmul.f32 1.0, %v1809
    %v1811 = vrcp.pop %v1806
    %v1812 = vmul.f32 1.0, %v1811
    %v1813 = vrcp.pop %v1807
    %v1814 = vmul.f32 1.0, %v1813
    %v1815 = vrcp.pop %v1808
    %v1816 = vmul.f32 1.0, %v1815
    %1817 = vmatprep.subr.bf16.mxu0 0
    %1818 = vmatpush1.bf16.msra.mxu0 0
    %1819 = vmatprep.subr.bf16.mxu0 0
    %1820 = vmatpush1.bf16.msra.mxu0 0
    %1821 = vmatprep.subr.bf16.mxu0 0
    %1822 = vmatpush1.bf16.msra.mxu0 0
    %1823 = vmatprep.subr.bf16.mxu0 0
    %1824 = vmatpush1.bf16.msra.mxu0 0
    %1825 = vmatprep.subr.bf16.mxu0 0
    %1826 = vmatpush1.bf16.msra.mxu0 0
    %1827 = vmatprep.subr.bf16.mxu0 0
    %1828 = vmatpush1.bf16.msra.mxu0 0
    %1829 = vmatprep.subr.bf16.mxu0 0
    %1830 = vmatpush1.bf16.msra.mxu0 %v454
    %1831 = vmatprep.subr.bf16.mxu0 0
    %1832 = vmatpush1.bf16.msra.mxu0 %v453
    %1833 = vmatprep.subr.bf16.mxu0 0
    %1834 = vmatpush2.bf16.msra.mxu0 0
    %1835 = vmatprep.subr.bf16.mxu0 0
    %1836 = vmatpush2.bf16.msra.mxu0 0
    %1837 = vmatprep.subr.bf16.mxu0 0
    %1838 = vmatpush2.bf16.msra.mxu0 0
    %1839 = vmatprep.subr.bf16.mxu0 0
    %1840 = vmatpush2.bf16.msra.mxu0 0
    %1841 = vmatprep.subr.bf16.mxu0 0
    %1842 = vmatpush2.bf16.msra.mxu0 0
    %1843 = vmatprep.subr.bf16.mxu0 0
    %1844 = vmatpush2.bf16.msra.mxu0 0
    %1845 = vmatprep.subr.bf16.mxu0 0
    %1846 = vmatpush2.bf16.msra.mxu0 0
    %1847 = vmatprep.subr.bf16.mxu0 0
    %1848 = vmatpush2.bf16.msra.mxu0 0
    %1849 = vmatprep.mubr.bf16.mxu0 0
    %1850 = vmatmul.mubr.bf16.gmra.mxu0 %v1661
    %v1851 = vpop.f32.mrf.mxu0
    %v1852 = vadd.f32 %v263, %v1851
    %v1853 = vpop.f32.mrf.mxu0
    %v1854 = vpop.f32.mrf.mxu0
    %v1855 = vpop.f32.mrf.mxu0
    %1856 = vdwg.mxu0
    %v1858 = vrot.slane %v1852, 3
    %v1859 = vrot.slane %v1852, 4
    %v1860 = vrot.slane %v1852, 5
    %v1861 = vrot.slane %v1852, 6
    %v1866 = vmul.f32 %v1773, %v1858
    %v1867 = vmul.f32 %v1775, %v1859
    %v1868 = vmul.f32 %v1777, %v1860
    %v1869 = vmul.f32 %v1779, %v1861
    %v1870 = vadd.f32 %v229, %v1866
    %v1871 = vadd.f32 %v232, %v1867
    %v1872 = vadd.f32 %v237, %v1868
    %v1873 = vadd.f32 %v240, %v1869
    %v1874 = vtanh.pop %v1870
    %v1875 = vtanh.pop %v1871
    %v1876 = vtanh.pop %v1872
    %v1877 = vtanh.pop %v1873
    %v1878 = vsub.f32 1.0, %v1810
    %v1879 = vsub.f32 1.0, %v1812
    %v1880 = vsub.f32 1.0, %v1814
    %v1881 = vsub.f32 1.0, %v1816
    %v1882 = vmul.f32 %v1878, %v1874
    %v1883 = vmul.f32 %v1879, %v1875
    %v1884 = vmul.f32 %v1880, %v1876
    %v1885 = vmul.f32 %v1881, %v1877
    %v1886 = vrot.slane %v1621, 7
    %v1887 = vrot.slane %v1623, 7
    %v1888 = vrot.slane %v1624, 7
    %v1893 = vmul.f32 %v1810, %v1886
    %v1894 = vmul.f32 %v1812, %v1629
    %v1895 = vmul.f32 %v1814, %v1887
    %v1896 = vmul.f32 %v1816, %v1888
    %v1897 = vadd.f32 %v1882, %v1893
    %v1898 = vadd.f32 %v1883, %v1894
    %v1899 = vadd.f32 %v1884, %v1895
    %v1900 = vadd.f32 %v1885, %v1896
    %v1905 = vrot.slane %v1898, 7
    %v1906 = vsel %vm1359, %v1905, %v1897
    %v1907 = vrot.slane %v1899, 6
    %v1908 = vsel %vm1634, %v1907, %v1906
    %v1909 = vrot.slane %v1900, 5
    %s1912 = scalar_lea.vmem [#allocation2], 20
    %vm1913 = vcmask 261125
    %1914 = vst.msk [vmem:[%s1912 - $0x5] sm:$0xe0] %vm1913, %v1908
    %vm1915 = vcmask 253952
    %1916 = vst.msk [vmem:[%s1912 + $0x3] sm:$0x1] %vm1915, %v1909
    %v1917 = vpack.c.bf16 %v1897, %v1897
    %v1918 = vpack.c.bf16 %v1898, %v1898
    %v1919 = vpack.c.bf16 %v1899, %v1899
    %v1920 = vpack.c.bf16 %v1900, %v1900
    %v1925 = vunpack.c.l.b16 %v1917
    %v1926 = vunpack.c.l.b16 %v1918
    %v1927 = vunpack.c.l.b16 %v1919
    %v1928 = vunpack.c.l.b16 %v1920
    %v1929 = vrot.slane %v1925, 5
    %v1930 = vrot.slane %v1926, 4
    %v1931 = vsel %vm538, %v1930, %v1929
    %v1932 = vrot.slane %v1927, 3
    %v1933 = vsel %vm541, %v1932, %v1931
    %v1934 = vrot.slane %v1928, 2
    %v1935 = vsel %vm544, %v1934, %v1933
    %v1936 = vpack.c.b16 %v1935, %v1935
    %v1938 = vsel %vm277, %v1936, 0
    %1940 = vmatprep.subr.bf16.mxu0 0
    %1941 = vmatpush1.bf16.msra.mxu0 0
    %1942 = vmatprep.subr.bf16.mxu0 0
    %1943 = vmatpush1.bf16.msra.mxu0 0
    %1944 = vmatprep.subr.bf16.mxu0 0
    %1945 = vmatpush1.bf16.msra.mxu0 0
    %1946 = vmatprep.subr.bf16.mxu0 0
    %1947 = vmatpush1.bf16.msra.mxu0 0
    %1948 = vmatprep.subr.bf16.mxu0 0
    %1949 = vmatpush1.bf16.msra.mxu0 0
    %1950 = vmatprep.subr.bf16.mxu0 0
    %1951 = vmatpush1.bf16.msra.mxu0 0
    %1952 = vmatprep.subr.bf16.mxu0 0
    %1953 = vmatpush1.bf16.msra.mxu0 %v274
    %1954 = vmatprep.subr.bf16.mxu0 0
    %1955 = vmatpush1.bf16.msra.mxu0 %v273
    %1956 = vmatprep.subr.bf16.mxu0 0
    %1957 = vmatpush2.bf16.msra.mxu0 0
    %1958 = vmatprep.subr.bf16.mxu0 0
    %1959 = vmatpush2.bf16.msra.mxu0 0
    %1960 = vmatprep.subr.bf16.mxu0 0
    %1961 = vmatpush2.bf16.msra.mxu0 0
    %1962 = vmatprep.subr.bf16.mxu0 0
    %1963 = vmatpush2.bf16.msra.mxu0 0
    %1964 = vmatprep.subr.bf16.mxu0 0
    %1965 = vmatpush2.bf16.msra.mxu0 0
    %1966 = vmatprep.subr.bf16.mxu0 0
    %1967 = vmatpush2.bf16.msra.mxu0 0
    %1968 = vmatprep.subr.bf16.mxu0 0
    %1969 = vmatpush2.bf16.msra.mxu0 0
    %1970 = vmatprep.subr.bf16.mxu0 0
    %1971 = vmatpush2.bf16.msra.mxu0 0
    %1972 = vmatprep.mubr.bf16.mxu0 0
    %1973 = vmatmul.mubr.bf16.gmra.mxu0 %v1938
    %v1974 = vpop.f32.mrf.mxu0
    %v1975 = vadd.f32 0.0, %v1974
    %v1976 = vpop.f32.mrf.mxu0
    %v1977 = vpop.f32.mrf.mxu0
    %v1978 = vpop.f32.mrf.mxu0
    %1979 = vdwg.mxu0
    %1980 = vmatprep.subr.bf16.mxu0 0
    %1981 = vmatpush1.bf16.msra.mxu0 0
    %1982 = vmatprep.subr.bf16.mxu0 0
    %1983 = vmatpush1.bf16.msra.mxu0 0
    %1984 = vmatprep.subr.bf16.mxu0 0
    %1985 = vmatpush1.bf16.msra.mxu0 0
    %1986 = vmatprep.subr.bf16.mxu0 0
    %1987 = vmatpush1.bf16.msra.mxu0 0
    %1988 = vmatprep.subr.bf16.mxu0 0
    %1989 = vmatpush1.bf16.msra.mxu0 0
    %1990 = vmatprep.subr.bf16.mxu0 0
    %1991 = vmatpush1.bf16.msra.mxu0 0
    %1992 = vmatprep.subr.bf16.mxu0 0
    %1993 = vmatpush1.bf16.msra.mxu0 %v330
    %1994 = vmatprep.subr.bf16.mxu0 0
    %1995 = vmatpush1.bf16.msra.mxu0 %v329
    %1996 = vmatprep.subr.bf16.mxu0 0
    %1997 = vmatpush2.bf16.msra.mxu0 0
    %1998 = vmatprep.subr.bf16.mxu0 0
    %1999 = vmatpush2.bf16.msra.mxu0 0
    %2000 = vmatprep.subr.bf16.mxu0 0
    %2001 = vmatpush2.bf16.msra.mxu0 0
    %2002 = vmatprep.subr.bf16.mxu0 0
    %2003 = vmatpush2.bf16.msra.mxu0 0
    %2004 = vmatprep.subr.bf16.mxu0 0
    %2005 = vmatpush2.bf16.msra.mxu0 0
    %2006 = vmatprep.subr.bf16.mxu0 0
    %2007 = vmatpush2.bf16.msra.mxu0 0
    %2008 = vmatprep.subr.bf16.mxu0 0
    %2009 = vmatpush2.bf16.msra.mxu0 0
    %2010 = vmatprep.subr.bf16.mxu0 0
    %2011 = vmatpush2.bf16.msra.mxu0 0
    %2012 = vmatprep.mubr.bf16.mxu0 0
    %2013 = vmatmul.mubr.bf16.gmra.mxu0 %v1938
    %v2014 = vpop.f32.mrf.mxu0
    %v2015 = vadd.f32 0.0, %v2014
    %v2016 = vpop.f32.mrf.mxu0
    %v2017 = vpop.f32.mrf.mxu0
    %v2018 = vpop.f32.mrf.mxu0
    %2019 = vdwg.mxu0
    %v2021 = vrot.slane %v1975, 2
    %v2022 = vrot.slane %v1975, 3
    %v2023 = vrot.slane %v1975, 4
    %v2024 = vrot.slane %v1975, 5
    %v2029 = vadd.f32 %v97, %v2021
    %v2030 = vadd.f32 %v100, %v2022
    %v2031 = vadd.f32 %v105, %v2023
    %v2032 = vadd.f32 %v108, %v2024
    %v2033 = vxor.u32 %v2029, 2147483648
    %v2034 = vxor.u32 %v2030, 2147483648
    %v2035 = vxor.u32 %v2031, 2147483648
    %v2036 = vxor.u32 %v2032, 2147483648
    %v2037 = vmul.f32 %v2033, 1.442695
    %v2038 = vpow.pop %v2037
    %v2039 = vmul.f32 %v2034, 1.442695
    %v2040 = vpow.pop %v2039
    %v2041 = vmul.f32 %v2035, 1.442695
    %v2042 = vpow.pop %v2041
    %v2043 = vmul.f32 %v2036, 1.442695
    %v2044 = vpow.pop %v2043
    %v2045 = vadd.f32 %v2038, 1.0
    %v2046 = vadd.f32 %v2040, 1.0
    %v2047 = vadd.f32 %v2042, 1.0
    %v2048 = vadd.f32 %v2044, 1.0
    %v2049 = vrcp.pop %v2045
    %v2050 = vmul.f32 1.0, %v2049
    %v2051 = vrcp.pop %v2046
    %v2052 = vmul.f32 1.0, %v2051
    %v2053 = vrcp.pop %v2047
    %v2054 = vmul.f32 1.0, %v2053
    %v2055 = vrcp.pop %v2048
    %v2056 = vmul.f32 1.0, %v2055
    %v2058 = vrot.slane %v2015, 2
    %v2059 = vrot.slane %v2015, 3
    %v2060 = vrot.slane %v2015, 4
    %v2061 = vrot.slane %v2015, 5
    %v2066 = vadd.f32 %v163, %v2058
    %v2067 = vadd.f32 %v166, %v2059
    %v2068 = vadd.f32 %v171, %v2060
    %v2069 = vadd.f32 %v174, %v2061
    %v2070 = vxor.u32 %v2066, 2147483648
    %v2071 = vxor.u32 %v2067, 2147483648
    %v2072 = vxor.u32 %v2068, 2147483648
    %v2073 = vxor.u32 %v2069, 2147483648
    %v2074 = vmul.f32 %v2070, 1.442695
    %v2075 = vpow.pop %v2074
    %v2076 = vmul.f32 %v2071, 1.442695
    %v2077 = vpow.pop %v2076
    %v2078 = vmul.f32 %v2072, 1.442695
    %v2079 = vpow.pop %v2078
    %v2080 = vmul.f32 %v2073, 1.442695
    %v2081 = vpow.pop %v2080
    %v2082 = vadd.f32 %v2075, 1.0
    %v2083 = vadd.f32 %v2077, 1.0
    %v2084 = vadd.f32 %v2079, 1.0
    %v2085 = vadd.f32 %v2081, 1.0
    %v2086 = vrcp.pop %v2082
    %v2087 = vmul.f32 1.0, %v2086
    %v2088 = vrcp.pop %v2083
    %v2089 = vmul.f32 1.0, %v2088
    %v2090 = vrcp.pop %v2084
    %v2091 = vmul.f32 1.0, %v2090
    %v2092 = vrcp.pop %v2085
    %v2093 = vmul.f32 1.0, %v2092
    %2094 = vmatprep.subr.bf16.mxu0 0
    %2095 = vmatpush1.bf16.msra.mxu0 0
    %2096 = vmatprep.subr.bf16.mxu0 0
    %2097 = vmatpush1.bf16.msra.mxu0 0
    %2098 = vmatprep.subr.bf16.mxu0 0
    %2099 = vmatpush1.bf16.msra.mxu0 0
    %2100 = vmatprep.subr.bf16.mxu0 0
    %2101 = vmatpush1.bf16.msra.mxu0 0
    %2102 = vmatprep.subr.bf16.mxu0 0
    %2103 = vmatpush1.bf16.msra.mxu0 0
    %2104 = vmatprep.subr.bf16.mxu0 0
    %2105 = vmatpush1.bf16.msra.mxu0 0
    %2106 = vmatprep.subr.bf16.mxu0 0
    %2107 = vmatpush1.bf16.msra.mxu0 %v454
    %2108 = vmatprep.subr.bf16.mxu0 0
    %2109 = vmatpush1.bf16.msra.mxu0 %v453
    %2110 = vmatprep.subr.bf16.mxu0 0
    %2111 = vmatpush2.bf16.msra.mxu0 0
    %2112 = vmatprep.subr.bf16.mxu0 0
    %2113 = vmatpush2.bf16.msra.mxu0 0
    %2114 = vmatprep.subr.bf16.mxu0 0
    %2115 = vmatpush2.bf16.msra.mxu0 0
    %2116 = vmatprep.subr.bf16.mxu0 0
    %2117 = vmatpush2.bf16.msra.mxu0 0
    %2118 = vmatprep.subr.bf16.mxu0 0
    %2119 = vmatpush2.bf16.msra.mxu0 0
    %2120 = vmatprep.subr.bf16.mxu0 0
    %2121 = vmatpush2.bf16.msra.mxu0 0
    %2122 = vmatprep.subr.bf16.mxu0 0
    %2123 = vmatpush2.bf16.msra.mxu0 0
    %2124 = vmatprep.subr.bf16.mxu0 0
    %2125 = vmatpush2.bf16.msra.mxu0 0
    %2126 = vmatprep.mubr.bf16.mxu0 0
    %2127 = vmatmul.mubr.bf16.gmra.mxu0 %v1938
    %v2128 = vpop.f32.mrf.mxu0
    %v2129 = vadd.f32 %v263, %v2128
    %v2130 = vpop.f32.mrf.mxu0
    %v2131 = vpop.f32.mrf.mxu0
    %v2132 = vpop.f32.mrf.mxu0
    %2133 = vdwg.mxu0
    %v2135 = vrot.slane %v2129, 2
    %v2136 = vrot.slane %v2129, 3
    %v2137 = vrot.slane %v2129, 4
    %v2138 = vrot.slane %v2129, 5
    %v2143 = vmul.f32 %v2050, %v2135
    %v2144 = vmul.f32 %v2052, %v2136
    %v2145 = vmul.f32 %v2054, %v2137
    %v2146 = vmul.f32 %v2056, %v2138
    %v2147 = vadd.f32 %v229, %v2143
    %v2148 = vadd.f32 %v232, %v2144
    %v2149 = vadd.f32 %v237, %v2145
    %v2150 = vadd.f32 %v240, %v2146
    %v2151 = vtanh.pop %v2147
    %v2152 = vtanh.pop %v2148
    %v2153 = vtanh.pop %v2149
    %v2154 = vtanh.pop %v2150
    %v2155 = vsub.f32 1.0, %v2087
    %v2156 = vsub.f32 1.0, %v2089
    %v2157 = vsub.f32 1.0, %v2091
    %v2158 = vsub.f32 1.0, %v2093
    %v2159 = vmul.f32 %v2155, %v2151
    %v2160 = vmul.f32 %v2156, %v2152
    %v2161 = vmul.f32 %v2157, %v2153
    %v2162 = vmul.f32 %v2158, %v2154
    %v2163 = vrot.slane %v1897, 7
    %v2164 = vrot.slane %v1899, 7
    %v2165 = vrot.slane %v1900, 7
    %v2170 = vmul.f32 %v2087, %v2163
    %v2171 = vmul.f32 %v2089, %v1905
    %v2172 = vmul.f32 %v2091, %v2164
    %v2173 = vmul.f32 %v2093, %v2165
    %v2174 = vadd.f32 %v2159, %v2170
    %v2175 = vadd.f32 %v2160, %v2171
    %v2176 = vadd.f32 %v2161, %v2172
    %v2177 = vadd.f32 %v2162, %v2173
    %v2182 = vrot.slane %v2175, 7
    %v2183 = vsel %vm1634, %v2182, %v2174
    %v2184 = vrot.slane %v2176, 6
    %v2185 = vrot.slane %v2177, 5
    %v2186 = vsel %vm538, %v2185, %v2184
    %s2189 = scalar_lea.vmem [#allocation2], 24
    %vm2190 = vcmask 261126
    %2191 = vst.msk [vmem:[%s2189 - $0x6] sm:$0xc0] %vm2190, %v2183
    %vm2192 = vcmask 254976
    %2193 = vst.msk [vmem:[%s2189 + $0x2] sm:$0x3] %vm2192, %v2186
    %v2194 = vpack.c.bf16 %v2174, %v2174
    %v2195 = vpack.c.bf16 %v2175, %v2175
    %v2196 = vpack.c.bf16 %v2176, %v2176
    %v2197 = vpack.c.bf16 %v2177, %v2177
    %v2202 = vunpack.c.l.b16 %v2194
    %v2203 = vunpack.c.l.b16 %v2195
    %v2204 = vunpack.c.l.b16 %v2196
    %v2205 = vunpack.c.l.b16 %v2197
    %v2206 = vrot.slane %v2202, 6
    %v2207 = vrot.slane %v2203, 5
    %v2208 = vsel %vm538, %v2207, %v2206
    %v2209 = vrot.slane %v2204, 4
    %v2210 = vsel %vm541, %v2209, %v2208
    %v2211 = vrot.slane %v2205, 3
    %v2212 = vsel %vm544, %v2211, %v2210
    %v2213 = vpack.c.b16 %v2212, %v2212
    %v2215 = vsel %vm277, %v2213, 0
    %2217 = vmatprep.subr.bf16.mxu0 0
    %2218 = vmatpush1.bf16.msra.mxu0 0
    %2219 = vmatprep.subr.bf16.mxu0 0
    %2220 = vmatpush1.bf16.msra.mxu0 0
    %2221 = vmatprep.subr.bf16.mxu0 0
    %2222 = vmatpush1.bf16.msra.mxu0 0
    %2223 = vmatprep.subr.bf16.mxu0 0
    %2224 = vmatpush1.bf16.msra.mxu0 0
    %2225 = vmatprep.subr.bf16.mxu0 0
    %2226 = vmatpush1.bf16.msra.mxu0 0
    %2227 = vmatprep.subr.bf16.mxu0 0
    %2228 = vmatpush1.bf16.msra.mxu0 0
    %2229 = vmatprep.subr.bf16.mxu0 0
    %2230 = vmatpush1.bf16.msra.mxu0 %v274
    %2231 = vmatprep.subr.bf16.mxu0 0
    %2232 = vmatpush1.bf16.msra.mxu0 %v273
    %2233 = vmatprep.subr.bf16.mxu0 0
    %2234 = vmatpush2.bf16.msra.mxu0 0
    %2235 = vmatprep.subr.bf16.mxu0 0
    %2236 = vmatpush2.bf16.msra.mxu0 0
    %2237 = vmatprep.subr.bf16.mxu0 0
    %2238 = vmatpush2.bf16.msra.mxu0 0
    %2239 = vmatprep.subr.bf16.mxu0 0
    %2240 = vmatpush2.bf16.msra.mxu0 0
    %2241 = vmatprep.subr.bf16.mxu0 0
    %2242 = vmatpush2.bf16.msra.mxu0 0
    %2243 = vmatprep.subr.bf16.mxu0 0
    %2244 = vmatpush2.bf16.msra.mxu0 0
    %2245 = vmatprep.subr.bf16.mxu0 0
    %2246 = vmatpush2.bf16.msra.mxu0 0
    %2247 = vmatprep.subr.bf16.mxu0 0
    %2248 = vmatpush2.bf16.msra.mxu0 0
    %2249 = vmatprep.mubr.bf16.mxu0 0
    %2250 = vmatmul.mubr.bf16.gmra.mxu0 %v2215
    %v2251 = vpop.f32.mrf.mxu0
    %v2252 = vadd.f32 0.0, %v2251
    %v2253 = vpop.f32.mrf.mxu0
    %v2254 = vpop.f32.mrf.mxu0
    %v2255 = vpop.f32.mrf.mxu0
    %2256 = vdwg.mxu0
    %2257 = vmatprep.subr.bf16.mxu0 0
    %2258 = vmatpush1.bf16.msra.mxu0 0
    %2259 = vmatprep.subr.bf16.mxu0 0
    %2260 = vmatpush1.bf16.msra.mxu0 0
    %2261 = vmatprep.subr.bf16.mxu0 0
    %2262 = vmatpush1.bf16.msra.mxu0 0
    %2263 = vmatprep.subr.bf16.mxu0 0
    %2264 = vmatpush1.bf16.msra.mxu0 0
    %2265 = vmatprep.subr.bf16.mxu0 0
    %2266 = vmatpush1.bf16.msra.mxu0 0
    %2267 = vmatprep.subr.bf16.mxu0 0
    %2268 = vmatpush1.bf16.msra.mxu0 0
    %2269 = vmatprep.subr.bf16.mxu0 0
    %2270 = vmatpush1.bf16.msra.mxu0 %v330
    %2271 = vmatprep.subr.bf16.mxu0 0
    %2272 = vmatpush1.bf16.msra.mxu0 %v329
    %2273 = vmatprep.subr.bf16.mxu0 0
    %2274 = vmatpush2.bf16.msra.mxu0 0
    %2275 = vmatprep.subr.bf16.mxu0 0
    %2276 = vmatpush2.bf16.msra.mxu0 0
    %2277 = vmatprep.subr.bf16.mxu0 0
    %2278 = vmatpush2.bf16.msra.mxu0 0
    %2279 = vmatprep.subr.bf16.mxu0 0
    %2280 = vmatpush2.bf16.msra.mxu0 0
    %2281 = vmatprep.subr.bf16.mxu0 0
    %2282 = vmatpush2.bf16.msra.mxu0 0
    %2283 = vmatprep.subr.bf16.mxu0 0
    %2284 = vmatpush2.bf16.msra.mxu0 0
    %2285 = vmatprep.subr.bf16.mxu0 0
    %2286 = vmatpush2.bf16.msra.mxu0 0
    %2287 = vmatprep.subr.bf16.mxu0 0
    %2288 = vmatpush2.bf16.msra.mxu0 0
    %2289 = vmatprep.mubr.bf16.mxu0 0
    %2290 = vmatmul.mubr.bf16.gmra.mxu0 %v2215
    %v2291 = vpop.f32.mrf.mxu0
    %v2292 = vadd.f32 0.0, %v2291
    %v2293 = vpop.f32.mrf.mxu0
    %v2294 = vpop.f32.mrf.mxu0
    %v2295 = vpop.f32.mrf.mxu0
    %2296 = vdwg.mxu0
    %v2298 = vrot.slane %v2252, 1
    %v2299 = vrot.slane %v2252, 2
    %v2300 = vrot.slane %v2252, 3
    %v2301 = vrot.slane %v2252, 4
    %v2306 = vadd.f32 %v97, %v2298
    %v2307 = vadd.f32 %v100, %v2299
    %v2308 = vadd.f32 %v105, %v2300
    %v2309 = vadd.f32 %v108, %v2301
    %v2310 = vxor.u32 %v2306, 2147483648
    %v2311 = vxor.u32 %v2307, 2147483648
    %v2312 = vxor.u32 %v2308, 2147483648
    %v2313 = vxor.u32 %v2309, 2147483648
    %v2314 = vmul.f32 %v2310, 1.442695
    %v2315 = vpow.pop %v2314
    %v2316 = vmul.f32 %v2311, 1.442695
    %v2317 = vpow.pop %v2316
    %v2318 = vmul.f32 %v2312, 1.442695
    %v2319 = vpow.pop %v2318
    %v2320 = vmul.f32 %v2313, 1.442695
    %v2321 = vpow.pop %v2320
    %v2322 = vadd.f32 %v2315, 1.0
    %v2323 = vadd.f32 %v2317, 1.0
    %v2324 = vadd.f32 %v2319, 1.0
    %v2325 = vadd.f32 %v2321, 1.0
    %v2326 = vrcp.pop %v2322
    %v2327 = vmul.f32 1.0, %v2326
    %v2328 = vrcp.pop %v2323
    %v2329 = vmul.f32 1.0, %v2328
    %v2330 = vrcp.pop %v2324
    %v2331 = vmul.f32 1.0, %v2330
    %v2332 = vrcp.pop %v2325
    %v2333 = vmul.f32 1.0, %v2332
    %v2335 = vrot.slane %v2292, 1
    %v2336 = vrot.slane %v2292, 2
    %v2337 = vrot.slane %v2292, 3
    %v2338 = vrot.slane %v2292, 4
    %v2343 = vadd.f32 %v163, %v2335
    %v2344 = vadd.f32 %v166, %v2336
    %v2345 = vadd.f32 %v171, %v2337
    %v2346 = vadd.f32 %v174, %v2338
    %v2347 = vxor.u32 %v2343, 2147483648
    %v2348 = vxor.u32 %v2344, 2147483648
    %v2349 = vxor.u32 %v2345, 2147483648
    %v2350 = vxor.u32 %v2346, 2147483648
    %v2351 = vmul.f32 %v2347, 1.442695
    %v2352 = vpow.pop %v2351
    %v2353 = vmul.f32 %v2348, 1.442695
    %v2354 = vpow.pop %v2353
    %v2355 = vmul.f32 %v2349, 1.442695
    %v2356 = vpow.pop %v2355
    %v2357 = vmul.f32 %v2350, 1.442695
    %v2358 = vpow.pop %v2357
    %v2359 = vadd.f32 %v2352, 1.0
    %v2360 = vadd.f32 %v2354, 1.0
    %v2361 = vadd.f32 %v2356, 1.0
    %v2362 = vadd.f32 %v2358, 1.0
    %v2363 = vrcp.pop %v2359
    %v2364 = vmul.f32 1.0, %v2363
    %v2365 = vrcp.pop %v2360
    %v2366 = vmul.f32 1.0, %v2365
    %v2367 = vrcp.pop %v2361
    %v2368 = vmul.f32 1.0, %v2367
    %v2369 = vrcp.pop %v2362
    %v2370 = vmul.f32 1.0, %v2369
    %2371 = vmatprep.subr.bf16.mxu0 0
    %2372 = vmatpush1.bf16.msra.mxu0 0
    %2373 = vmatprep.subr.bf16.mxu0 0
    %2374 = vmatpush1.bf16.msra.mxu0 0
    %2375 = vmatprep.subr.bf16.mxu0 0
    %2376 = vmatpush1.bf16.msra.mxu0 0
    %2377 = vmatprep.subr.bf16.mxu0 0
    %2378 = vmatpush1.bf16.msra.mxu0 0
    %2379 = vmatprep.subr.bf16.mxu0 0
    %2380 = vmatpush1.bf16.msra.mxu0 0
    %2381 = vmatprep.subr.bf16.mxu0 0
    %2382 = vmatpush1.bf16.msra.mxu0 0
    %2383 = vmatprep.subr.bf16.mxu0 0
    %2384 = vmatpush1.bf16.msra.mxu0 %v454
    %2385 = vmatprep.subr.bf16.mxu0 0
    %2386 = vmatpush1.bf16.msra.mxu0 %v453
    %2387 = vmatprep.subr.bf16.mxu0 0
    %2388 = vmatpush2.bf16.msra.mxu0 0
    %2389 = vmatprep.subr.bf16.mxu0 0
    %2390 = vmatpush2.bf16.msra.mxu0 0
    %2391 = vmatprep.subr.bf16.mxu0 0
    %2392 = vmatpush2.bf16.msra.mxu0 0
    %2393 = vmatprep.subr.bf16.mxu0 0
    %2394 = vmatpush2.bf16.msra.mxu0 0
    %2395 = vmatprep.subr.bf16.mxu0 0
    %2396 = vmatpush2.bf16.msra.mxu0 0
    %2397 = vmatprep.subr.bf16.mxu0 0
    %2398 = vmatpush2.bf16.msra.mxu0 0
    %2399 = vmatprep.subr.bf16.mxu0 0
    %2400 = vmatpush2.bf16.msra.mxu0 0
    %2401 = vmatprep.subr.bf16.mxu0 0
    %2402 = vmatpush2.bf16.msra.mxu0 0
    %2403 = vmatprep.mubr.bf16.mxu0 0
    %2404 = vmatmul.mubr.bf16.gmra.mxu0 %v2215
    %v2405 = vpop.f32.mrf.mxu0
    %v2406 = vadd.f32 %v263, %v2405
    %v2407 = vpop.f32.mrf.mxu0
    %v2408 = vpop.f32.mrf.mxu0
    %v2409 = vpop.f32.mrf.mxu0
    %2410 = vdwg.mxu0
    %v2412 = vrot.slane %v2406, 1
    %v2413 = vrot.slane %v2406, 2
    %v2414 = vrot.slane %v2406, 3
    %v2415 = vrot.slane %v2406, 4
    %v2420 = vmul.f32 %v2327, %v2412
    %v2421 = vmul.f32 %v2329, %v2413
    %v2422 = vmul.f32 %v2331, %v2414
    %v2423 = vmul.f32 %v2333, %v2415
    %v2424 = vadd.f32 %v229, %v2420
    %v2425 = vadd.f32 %v232, %v2421
    %v2426 = vadd.f32 %v237, %v2422
    %v2427 = vadd.f32 %v240, %v2423
    %v2428 = vtanh.pop %v2424
    %v2429 = vtanh.pop %v2425
    %v2430 = vtanh.pop %v2426
    %v2431 = vtanh.pop %v2427
    %v2432 = vsub.f32 1.0, %v2364
    %v2433 = vsub.f32 1.0, %v2366
    %v2434 = vsub.f32 1.0, %v2368
    %v2435 = vsub.f32 1.0, %v2370
    %v2436 = vmul.f32 %v2432, %v2428
    %v2437 = vmul.f32 %v2433, %v2429
    %v2438 = vmul.f32 %v2434, %v2430
    %v2439 = vmul.f32 %v2435, %v2431
    %v2440 = vrot.slane %v2174, 7
    %v2441 = vrot.slane %v2176, 7
    %v2442 = vrot.slane %v2177, 7
    %v2447 = vmul.f32 %v2364, %v2440
    %v2448 = vmul.f32 %v2366, %v2182
    %v2449 = vmul.f32 %v2368, %v2441
    %v2450 = vmul.f32 %v2370, %v2442
    %v2451 = vadd.f32 %v2436, %v2447
    %v2452 = vadd.f32 %v2437, %v2448
    %v2453 = vadd.f32 %v2438, %v2449
    %v2454 = vadd.f32 %v2439, %v2450
    %v2459 = vrot.slane %v2452, 7
    %v2460 = vrot.slane %v2453, 6
    %v2461 = vsel %vm538, %v2460, %v2459
    %v2462 = vrot.slane %v2454, 5
    %v2463 = vsel %vm541, %v2462, %v2461
    %s2466 = scalar_lea.vmem [#allocation2], 28
    %vm2467 = vcmask 261127
    %2468 = vst.msk [vmem:[%s2466 - $0x7] sm:$0x80] %vm2467, %v2451
    %vm2469 = vcmask 256000
    %2470 = vst.msk [vmem:[%s2466 + $0x1] sm:$0x7] %vm2469, %v2463
    %v2471 = vld [vmem:[#allocation2] sm:$0xf]
    %v2472 = vld [vmem:[#allocation2 + $0x4] sm:$0xf]
    %v2473 = vld [vmem:[#allocation2 + $0x8] sm:$0xf]
    %v2474 = vld [vmem:[#allocation2 + $0xc] sm:$0xf]
    %v2475 = vld [vmem:[#allocation2 + $0x10] sm:$0xf]
    %v2476 = vld [vmem:[#allocation2 + $0x14] sm:$0xf]
    %v2477 = vld [vmem:[#allocation2 + $0x18] sm:$0xf]
    %v2478 = vld [vmem:[#allocation2 + $0x1c] sm:$0xf]
    %v2487 = vcombine.low %v2471, %v2472
    %v2488 = vcombine.low %v2473, %v2474
    %v2489 = vcombine.low %v2475, %v2476
    %v2490 = vcombine.low %v2477, %v2478
    %v2495 = vpack.c.bf16 %v2488, %v2487
    %v2496 = vpack.c.bf16 %v2490, %v2489
    %v2497 = vld [vmem:[%s4] sm:$0xf]
    %v2498 = vld [vmem:[%s4 + $0x4] sm:$0xf]
    %v2499 = vld [vmem:[%s4 + $0x8] sm:$0xf]
    %v2500 = vld [vmem:[%s4 + $0xc] sm:$0xf]
    %v2501 = vld [vmem:[%s6] sm:$0x1]
    %v2503 = vlaneseq
    %v2504 = vshrl.u32 %v2503, 7
    %v2505 = vsub.s32 0, %v2504
    %v2506 = vrot.slane %v2501, %v2505
    %v2512 = vunpack.c.l.b16 %v2497
    %v2513 = vunpack.c.l.b16 %v2498
    %v2514 = vunpack.c.l.b16 %v2499
    %v2515 = vunpack.c.l.b16 %v2500
    %v2516 = vpack.c.b16 %v2513, %v2512
    %v2517 = vpack.c.b16 %v2515, %v2514
    %v2521 = vsel %vm277, %v2495, 0
    %v2524 = vsel %vm277, %v2496, 0
    %2526 = vmatprep.subr.bf16.mxu0 0
    %2527 = vmatpush1.bf16.msra.mxu0 0
    %2528 = vmatprep.subr.bf16.mxu0 0
    %2529 = vmatpush1.bf16.msra.mxu0 0
    %2530 = vmatprep.subr.bf16.mxu0 0
    %2531 = vmatpush1.bf16.msra.mxu0 0
    %2532 = vmatprep.subr.bf16.mxu0 0
    %2533 = vmatpush1.bf16.msra.mxu0 0
    %2534 = vmatprep.subr.bf16.mxu0 0
    %2535 = vmatpush1.bf16.msra.mxu0 0
    %2536 = vmatprep.subr.bf16.mxu0 0
    %2537 = vmatpush1.bf16.msra.mxu0 0
    %2538 = vmatprep.subr.bf16.mxu0 0
    %2539 = vmatpush1.bf16.msra.mxu0 %v2517
    %2540 = vmatprep.subr.bf16.mxu0 0
    %2541 = vmatpush1.bf16.msra.mxu0 %v2516
    %2542 = vmatprep.subr.bf16.mxu0 0
    %2543 = vmatpush2.bf16.msra.mxu0 0
    %2544 = vmatprep.subr.bf16.mxu0 0
    %2545 = vmatpush2.bf16.msra.mxu0 0
    %2546 = vmatprep.subr.bf16.mxu0 0
    %2547 = vmatpush2.bf16.msra.mxu0 0
    %2548 = vmatprep.subr.bf16.mxu0 0
    %2549 = vmatpush2.bf16.msra.mxu0 0
    %2550 = vmatprep.subr.bf16.mxu0 0
    %2551 = vmatpush2.bf16.msra.mxu0 0
    %2552 = vmatprep.subr.bf16.mxu0 0
    %2553 = vmatpush2.bf16.msra.mxu0 0
    %2554 = vmatprep.subr.bf16.mxu0 0
    %2555 = vmatpush2.bf16.msra.mxu0 0
    %2556 = vmatprep.subr.bf16.mxu0 0
    %2557 = vmatpush2.bf16.msra.mxu0 0
    %2558 = vmatprep.mubr.bf16.mxu0 0
    %2559 = vmatmul.mubr.bf16.gmra.mxu0 %v2521
    %v2560 = vpop.f32.mrf.mxu0
    %v2561 = vadd.f32 %v2506, %v2560
    %v2562 = vpop.f32.mrf.mxu0
    %v2563 = vpop.f32.mrf.mxu0
    %v2564 = vadd.f32 %v2506, %v2563
    %v2565 = vpop.f32.mrf.mxu0
    %2566 = vmatprep.mubr.bf16.mxu0 0
    %2567 = vmatmul.mubr.bf16.gmra.mxu0 %v2524
    %v2568 = vpop.f32.mrf.mxu0
    %v2569 = vadd.f32 %v2506, %v2568
    %v2570 = vpop.f32.mrf.mxu0
    %v2571 = vpop.f32.mrf.mxu0
    %v2572 = vadd.f32 %v2506, %v2571
    %v2573 = vpop.f32.mrf.mxu0
    %2574 = vdwg.mxu0
    %s2575 = scalar_lea.vmem %s4, 16
    %v2576 = vld [vmem:[%s2575] sm:$0xf]
    %v2577 = vld [vmem:[%s2575 + $0x4] sm:$0xf]
    %v2578 = vld [vmem:[%s2575 + $0x8] sm:$0xf]
    %v2579 = vld [vmem:[%s2575 + $0xc] sm:$0xf]
    %s2580 = scalar_lea.vmem %s6, 1
    %v2581 = vld [vmem:[%s2580] sm:$0x1]
    %v2583 = vlaneseq
    %v2584 = vshrl.u32 %v2583, 7
    %v2585 = vsub.s32 0, %v2584
    %v2586 = vrot.slane %v2581, %v2585
    %v2592 = vunpack.c.l.b16 %v2576
    %v2593 = vunpack.c.l.b16 %v2577
    %v2594 = vunpack.c.l.b16 %v2578
    %v2595 = vunpack.c.l.b16 %v2579
    %v2596 = vpack.c.b16 %v2593, %v2592
    %v2597 = vpack.c.b16 %v2595, %v2594
    %2600 = vmatprep.subr.bf16.mxu0 0
    %2601 = vmatpush1.bf16.msra.mxu0 0
    %2602 = vmatprep.subr.bf16.mxu0 0
    %2603 = vmatpush1.bf16.msra.mxu0 0
    %2604 = vmatprep.subr.bf16.mxu0 0
    %2605 = vmatpush1.bf16.msra.mxu0 0
    %2606 = vmatprep.subr.bf16.mxu0 0
    %2607 = vmatpush1.bf16.msra.mxu0 0
    %2608 = vmatprep.subr.bf16.mxu0 0
    %2609 = vmatpush1.bf16.msra.mxu0 0
    %2610 = vmatprep.subr.bf16.mxu0 0
    %2611 = vmatpush1.bf16.msra.mxu0 0
    %2612 = vmatprep.subr.bf16.mxu0 0
    %2613 = vmatpush1.bf16.msra.mxu0 %v2597
    %2614 = vmatprep.subr.bf16.mxu0 0
    %2615 = vmatpush1.bf16.msra.mxu0 %v2596
    %2616 = vmatprep.subr.bf16.mxu0 0
    %2617 = vmatpush2.bf16.msra.mxu0 0
    %2618 = vmatprep.subr.bf16.mxu0 0
    %2619 = vmatpush2.bf16.msra.mxu0 0
    %2620 = vmatprep.subr.bf16.mxu0 0
    %2621 = vmatpush2.bf16.msra.mxu0 0
    %2622 = vmatprep.subr.bf16.mxu0 0
    %2623 = vmatpush2.bf16.msra.mxu0 0
    %2624 = vmatprep.subr.bf16.mxu0 0
    %2625 = vmatpush2.bf16.msra.mxu0 0
    %2626 = vmatprep.subr.bf16.mxu0 0
    %2627 = vmatpush2.bf16.msra.mxu0 0
    %2628 = vmatprep.subr.bf16.mxu0 0
    %2629 = vmatpush2.bf16.msra.mxu0 0
    %2630 = vmatprep.subr.bf16.mxu0 0
    %2631 = vmatpush2.bf16.msra.mxu0 0
    %2632 = vmatprep.mubr.bf16.mxu0 0
    %2633 = vmatmul.mubr.bf16.gmra.mxu0 %v2521
    %v2634 = vpop.f32.mrf.mxu0
    %v2635 = vadd.f32 %v2586, %v2634
    %v2636 = vpop.f32.mrf.mxu0
    %v2637 = vpop.f32.mrf.mxu0
    %v2638 = vadd.f32 %v2586, %v2637
    %v2639 = vpop.f32.mrf.mxu0
    %2640 = vmatprep.mubr.bf16.mxu0 0
    %2641 = vmatmul.mubr.bf16.gmra.mxu0 %v2524
    %v2642 = vpop.f32.mrf.mxu0
    %v2643 = vadd.f32 %v2586, %v2642
    %v2644 = vpop.f32.mrf.mxu0
    %v2645 = vpop.f32.mrf.mxu0
    %v2646 = vadd.f32 %v2586, %v2645
    %v2647 = vpop.f32.mrf.mxu0
    %2648 = vdwg.mxu0
    %s2649 = scalar_lea.vmem %s4, 32
    %v2650 = vld [vmem:[%s2649] sm:$0xf]
    %v2651 = vld [vmem:[%s2649 + $0x4] sm:$0xf]
    %v2652 = vld [vmem:[%s2649 + $0x8] sm:$0xf]
    %v2653 = vld [vmem:[%s2649 + $0xc] sm:$0xf]
    %s2654 = scalar_lea.vmem %s6, 2
    %v2655 = vld [vmem:[%s2654] sm:$0x1]
    %v2657 = vlaneseq
    %v2658 = vshrl.u32 %v2657, 7
    %v2659 = vsub.s32 0, %v2658
    %v2660 = vrot.slane %v2655, %v2659
    %v2666 = vunpack.c.l.b16 %v2650
    %v2667 = vunpack.c.l.b16 %v2651
    %v2668 = vunpack.c.l.b16 %v2652
    %v2669 = vunpack.c.l.b16 %v2653
    %v2670 = vpack.c.b16 %v2667, %v2666
    %v2671 = vpack.c.b16 %v2669, %v2668
    %2674 = vmatprep.subr.bf16.mxu0 0
    %2675 = vmatpush1.bf16.msra.mxu0 0
    %2676 = vmatprep.subr.bf16.mxu0 0
    %2677 = vmatpush1.bf16.msra.mxu0 0
    %2678 = vmatprep.subr.bf16.mxu0 0
    %2679 = vmatpush1.bf16.msra.mxu0 0
    %2680 = vmatprep.subr.bf16.mxu0 0
    %2681 = vmatpush1.bf16.msra.mxu0 0
    %2682 = vmatprep.subr.bf16.mxu0 0
    %2683 = vmatpush1.bf16.msra.mxu0 0
    %2684 = vmatprep.subr.bf16.mxu0 0
    %2685 = vmatpush1.bf16.msra.mxu0 0
    %2686 = vmatprep.subr.bf16.mxu0 0
    %2687 = vmatpush1.bf16.msra.mxu0 %v2671
    %2688 = vmatprep.subr.bf16.mxu0 0
    %2689 = vmatpush1.bf16.msra.mxu0 %v2670
    %2690 = vmatprep.subr.bf16.mxu0 0
    %2691 = vmatpush2.bf16.msra.mxu0 0
    %2692 = vmatprep.subr.bf16.mxu0 0
    %2693 = vmatpush2.bf16.msra.mxu0 0
    %2694 = vmatprep.subr.bf16.mxu0 0
    %2695 = vmatpush2.bf16.msra.mxu0 0
    %2696 = vmatprep.subr.bf16.mxu0 0
    %2697 = vmatpush2.bf16.msra.mxu0 0
    %2698 = vmatprep.subr.bf16.mxu0 0
    %2699 = vmatpush2.bf16.msra.mxu0 0
    %2700 = vmatprep.subr.bf16.mxu0 0
    %2701 = vmatpush2.bf16.msra.mxu0 0
    %2702 = vmatprep.subr.bf16.mxu0 0
    %2703 = vmatpush2.bf16.msra.mxu0 0
    %2704 = vmatprep.subr.bf16.mxu0 0
    %2705 = vmatpush2.bf16.msra.mxu0 0
    %2706 = vmatprep.mubr.bf16.mxu0 0
    %2707 = vmatmul.mubr.bf16.gmra.mxu0 %v2521
    %v2708 = vpop.f32.mrf.mxu0
    %v2709 = vadd.f32 %v2660, %v2708
    %v2710 = vpop.f32.mrf.mxu0
    %v2711 = vpop.f32.mrf.mxu0
    %v2712 = vadd.f32 %v2660, %v2711
    %v2713 = vpop.f32.mrf.mxu0
    %2714 = vmatprep.mubr.bf16.mxu0 0
    %2715 = vmatmul.mubr.bf16.gmra.mxu0 %v2524
    %v2716 = vpop.f32.mrf.mxu0
    %v2717 = vadd.f32 %v2660, %v2716
    %v2718 = vpop.f32.mrf.mxu0
    %v2719 = vpop.f32.mrf.mxu0
    %v2720 = vadd.f32 %v2660, %v2719
    %v2721 = vpop.f32.mrf.mxu0
    %2722 = vdwg.mxu0
    %v2727 = vcombine.high %v2561, %v2561
    %v2728 = vcombine.high %v2564, %v2564
    %v2729 = vcombine.high %v2569, %v2569
    %v2730 = vcombine.high %v2572, %v2572
    %v2739 = vcombine.high %v2635, %v2635
    %v2740 = vcombine.high %v2638, %v2638
    %v2741 = vcombine.high %v2643, %v2643
    %v2742 = vcombine.high %v2646, %v2646
    %v2751 = vcombine.high %v2709, %v2709
    %v2752 = vcombine.high %v2712, %v2712
    %v2753 = vcombine.high %v2717, %v2717
    %v2754 = vcombine.high %v2720, %v2720
    %v2759 = vld [vmem:[%s5] sm:$0xf]
    %v2760 = vld [vmem:[%s5 + $0x4] sm:$0xf]
    %v2761 = vld [vmem:[%s5 + $0x8] sm:$0xf]
    %v2762 = vld [vmem:[%s5 + $0xc] sm:$0xf]
    %s2763 = scalar_lea.vmem %s5, 16
    %v2764 = vld [vmem:[%s2763] sm:$0xf]
    %v2765 = vld [vmem:[%s2763 + $0x4] sm:$0xf]
    %v2766 = vld [vmem:[%s2763 + $0x8] sm:$0xf]
    %v2767 = vld [vmem:[%s2763 + $0xc] sm:$0xf]
    %s2768 = scalar_lea.vmem %s5, 32
    %v2769 = vld [vmem:[%s2768] sm:$0xf]
    %v2770 = vld [vmem:[%s2768 + $0x4] sm:$0xf]
    %v2771 = vld [vmem:[%s2768 + $0x8] sm:$0xf]
    %v2772 = vld [vmem:[%s2768 + $0xc] sm:$0xf]
    %s2773 = scalar_lea.vmem %s6, 3
    %v2774 = vld [vmem:[%s2773] sm:$0x1]
    %v2776 = vlaneseq
    %v2777 = vshrl.u32 %v2776, 7
    %v2778 = vsub.s32 0, %v2777
    %v2779 = vrot.slane %v2774, %v2778
    %v2785 = vunpack.c.l.b16 %v2759
    %v2786 = vunpack.c.l.b16 %v2760
    %v2787 = vunpack.c.l.b16 %v2761
    %v2788 = vunpack.c.l.b16 %v2762
    %v2789 = vpack.c.b16 %v2786, %v2785
    %v2790 = vpack.c.b16 %v2788, %v2787
    %2793 = vmatprep.subr.bf16.mxu0 0
    %2794 = vmatpush1.bf16.msra.mxu0 0
    %2795 = vmatprep.subr.bf16.mxu0 0
    %2796 = vmatpush1.bf16.msra.mxu0 0
    %2797 = vmatprep.subr.bf16.mxu0 0
    %2798 = vmatpush1.bf16.msra.mxu0 0
    %2799 = vmatprep.subr.bf16.mxu0 0
    %2800 = vmatpush1.bf16.msra.mxu0 0
    %2801 = vmatprep.subr.bf16.mxu0 0
    %2802 = vmatpush1.bf16.msra.mxu0 0
    %2803 = vmatprep.subr.bf16.mxu0 0
    %2804 = vmatpush1.bf16.msra.mxu0 0
    %2805 = vmatprep.subr.bf16.mxu0 0
    %2806 = vmatpush1.bf16.msra.mxu0 %v2790
    %2807 = vmatprep.subr.bf16.mxu0 0
    %2808 = vmatpush1.bf16.msra.mxu0 %v2789
    %2809 = vmatprep.subr.bf16.mxu0 0
    %2810 = vmatpush2.bf16.msra.mxu0 0
    %2811 = vmatprep.subr.bf16.mxu0 0
    %2812 = vmatpush2.bf16.msra.mxu0 0
    %2813 = vmatprep.subr.bf16.mxu0 0
    %2814 = vmatpush2.bf16.msra.mxu0 0
    %2815 = vmatprep.subr.bf16.mxu0 0
    %2816 = vmatpush2.bf16.msra.mxu0 0
    %2817 = vmatprep.subr.bf16.mxu0 0
    %2818 = vmatpush2.bf16.msra.mxu0 0
    %2819 = vmatprep.subr.bf16.mxu0 0
    %2820 = vmatpush2.bf16.msra.mxu0 0
    %2821 = vmatprep.subr.bf16.mxu0 0
    %2822 = vmatpush2.bf16.msra.mxu0 0
    %2823 = vmatprep.subr.bf16.mxu0 0
    %2824 = vmatpush2.bf16.msra.mxu0 0
    %2825 = vmatprep.mubr.bf16.mxu0 0
    %2826 = vmatmul.mubr.bf16.gmra.mxu0 %v279
    %v2827 = vpop.f32.mrf.mxu0
    %v2828 = vadd.f32 0.0, %v2827
    %v2829 = vpop.f32.mrf.mxu0
    %v2830 = vpop.f32.mrf.mxu0
    %v2831 = vpop.f32.mrf.mxu0
    %2832 = vdwg.mxu0
    %v2837 = vunpack.c.l.b16 %v2764
    %v2838 = vunpack.c.l.b16 %v2765
    %v2839 = vunpack.c.l.b16 %v2766
    %v2840 = vunpack.c.l.b16 %v2767
    %v2841 = vpack.c.b16 %v2838, %v2837
    %v2842 = vpack.c.b16 %v2840, %v2839
    %2845 = vmatprep.subr.bf16.mxu0 0
    %2846 = vmatpush1.bf16.msra.mxu0 0
    %2847 = vmatprep.subr.bf16.mxu0 0
    %2848 = vmatpush1.bf16.msra.mxu0 0
    %2849 = vmatprep.subr.bf16.mxu0 0
    %2850 = vmatpush1.bf16.msra.mxu0 0
    %2851 = vmatprep.subr.bf16.mxu0 0
    %2852 = vmatpush1.bf16.msra.mxu0 0
    %2853 = vmatprep.subr.bf16.mxu0 0
    %2854 = vmatpush1.bf16.msra.mxu0 0
    %2855 = vmatprep.subr.bf16.mxu0 0
    %2856 = vmatpush1.bf16.msra.mxu0 0
    %2857 = vmatprep.subr.bf16.mxu0 0
    %2858 = vmatpush1.bf16.msra.mxu0 %v2842
    %2859 = vmatprep.subr.bf16.mxu0 0
    %2860 = vmatpush1.bf16.msra.mxu0 %v2841
    %2861 = vmatprep.subr.bf16.mxu0 0
    %2862 = vmatpush2.bf16.msra.mxu0 0
    %2863 = vmatprep.subr.bf16.mxu0 0
    %2864 = vmatpush2.bf16.msra.mxu0 0
    %2865 = vmatprep.subr.bf16.mxu0 0
    %2866 = vmatpush2.bf16.msra.mxu0 0
    %2867 = vmatprep.subr.bf16.mxu0 0
    %2868 = vmatpush2.bf16.msra.mxu0 0
    %2869 = vmatprep.subr.bf16.mxu0 0
    %2870 = vmatpush2.bf16.msra.mxu0 0
    %2871 = vmatprep.subr.bf16.mxu0 0
    %2872 = vmatpush2.bf16.msra.mxu0 0
    %2873 = vmatprep.subr.bf16.mxu0 0
    %2874 = vmatpush2.bf16.msra.mxu0 0
    %2875 = vmatprep.subr.bf16.mxu0 0
    %2876 = vmatpush2.bf16.msra.mxu0 0
    %2877 = vmatprep.mubr.bf16.mxu0 0
    %2878 = vmatmul.mubr.bf16.gmra.mxu0 %v279
    %v2879 = vpop.f32.mrf.mxu0
    %v2880 = vadd.f32 0.0, %v2879
    %v2881 = vpop.f32.mrf.mxu0
    %v2882 = vpop.f32.mrf.mxu0
    %v2883 = vpop.f32.mrf.mxu0
    %2884 = vdwg.mxu0
    %v2885 = vadd.f32 %v2561, %v2828
    %v2886 = vxor.u32 %v2885, 2147483648
    %v2887 = vmul.f32 %v2886, 1.442695
    %v2888 = vpow.pop %v2887
    %v2889 = vadd.f32 %v2888, 1.0
    %v2890 = vrcp.pop %v2889
    %v2891 = vmul.f32 1.0, %v2890
    %v2892 = vadd.f32 %v2635, %v2880
    %v2893 = vxor.u32 %v2892, 2147483648
    %v2894 = vmul.f32 %v2893, 1.442695
    %v2895 = vpow.pop %v2894
    %v2896 = vadd.f32 %v2895, 1.0
    %v2897 = vrcp.pop %v2896
    %v2898 = vmul.f32 1.0, %v2897
    %v2903 = vunpack.c.l.b16 %v2769
    %v2904 = vunpack.c.l.b16 %v2770
    %v2905 = vunpack.c.l.b16 %v2771
    %v2906 = vunpack.c.l.b16 %v2772
    %v2907 = vpack.c.b16 %v2904, %v2903
    %v2908 = vpack.c.b16 %v2906, %v2905
    %2911 = vmatprep.subr.bf16.mxu0 0
    %2912 = vmatpush1.bf16.msra.mxu0 0
    %2913 = vmatprep.subr.bf16.mxu0 0
    %2914 = vmatpush1.bf16.msra.mxu0 0
    %2915 = vmatprep.subr.bf16.mxu0 0
    %2916 = vmatpush1.bf16.msra.mxu0 0
    %2917 = vmatprep.subr.bf16.mxu0 0
    %2918 = vmatpush1.bf16.msra.mxu0 0
    %2919 = vmatprep.subr.bf16.mxu0 0
    %2920 = vmatpush1.bf16.msra.mxu0 0
    %2921 = vmatprep.subr.bf16.mxu0 0
    %2922 = vmatpush1.bf16.msra.mxu0 0
    %2923 = vmatprep.subr.bf16.mxu0 0
    %2924 = vmatpush1.bf16.msra.mxu0 %v2908
    %2925 = vmatprep.subr.bf16.mxu0 0
    %2926 = vmatpush1.bf16.msra.mxu0 %v2907
    %2927 = vmatprep.subr.bf16.mxu0 0
    %2928 = vmatpush2.bf16.msra.mxu0 0
    %2929 = vmatprep.subr.bf16.mxu0 0
    %2930 = vmatpush2.bf16.msra.mxu0 0
    %2931 = vmatprep.subr.bf16.mxu0 0
    %2932 = vmatpush2.bf16.msra.mxu0 0
    %2933 = vmatprep.subr.bf16.mxu0 0
    %2934 = vmatpush2.bf16.msra.mxu0 0
    %2935 = vmatprep.subr.bf16.mxu0 0
    %2936 = vmatpush2.bf16.msra.mxu0 0
    %2937 = vmatprep.subr.bf16.mxu0 0
    %2938 = vmatpush2.bf16.msra.mxu0 0
    %2939 = vmatprep.subr.bf16.mxu0 0
    %2940 = vmatpush2.bf16.msra.mxu0 0
    %2941 = vmatprep.subr.bf16.mxu0 0
    %2942 = vmatpush2.bf16.msra.mxu0 0
    %2943 = vmatprep.mubr.bf16.mxu0 0
    %2944 = vmatmul.mubr.bf16.gmra.mxu0 %v279
    %v2945 = vpop.f32.mrf.mxu0
    %v2946 = vadd.f32 %v2779, %v2945
    %v2947 = vpop.f32.mrf.mxu0
    %v2948 = vpop.f32.mrf.mxu0
    %v2949 = vpop.f32.mrf.mxu0
    %2950 = vdwg.mxu0
    %v2951 = vmul.f32 %v2891, %v2946
    %v2952 = vadd.f32 %v2709, %v2951
    %v2953 = vtanh.pop %v2952
    %v2954 = vsub.f32 1.0, %v2898
    %v2955 = vmul.f32 %v2954, %v2953
    %v2956 = vmul.f32 %v2898, 0.0
    %v2957 = vadd.f32 %v2955, %v2956
    %v2958 = vpack.c.bf16 %v2957, %v2957
    %v2960 = vsel %vm277, %v2958, 0
    %2962 = vmatprep.subr.bf16.mxu0 0
    %2963 = vmatpush1.bf16.msra.mxu0 0
    %2964 = vmatprep.subr.bf16.mxu0 0
    %2965 = vmatpush1.bf16.msra.mxu0 0
    %2966 = vmatprep.subr.bf16.mxu0 0
    %2967 = vmatpush1.bf16.msra.mxu0 0
    %2968 = vmatprep.subr.bf16.mxu0 0
    %2969 = vmatpush1.bf16.msra.mxu0 0
    %2970 = vmatprep.subr.bf16.mxu0 0
    %2971 = vmatpush1.bf16.msra.mxu0 0
    %2972 = vmatprep.subr.bf16.mxu0 0
    %2973 = vmatpush1.bf16.msra.mxu0 0
    %2974 = vmatprep.subr.bf16.mxu0 0
    %2975 = vmatpush1.bf16.msra.mxu0 %v2790
    %2976 = vmatprep.subr.bf16.mxu0 0
    %2977 = vmatpush1.bf16.msra.mxu0 %v2789
    %2978 = vmatprep.subr.bf16.mxu0 0
    %2979 = vmatpush2.bf16.msra.mxu0 0
    %2980 = vmatprep.subr.bf16.mxu0 0
    %2981 = vmatpush2.bf16.msra.mxu0 0
    %2982 = vmatprep.subr.bf16.mxu0 0
    %2983 = vmatpush2.bf16.msra.mxu0 0
    %2984 = vmatprep.subr.bf16.mxu0 0
    %2985 = vmatpush2.bf16.msra.mxu0 0
    %2986 = vmatprep.subr.bf16.mxu0 0
    %2987 = vmatpush2.bf16.msra.mxu0 0
    %2988 = vmatprep.subr.bf16.mxu0 0
    %2989 = vmatpush2.bf16.msra.mxu0 0
    %2990 = vmatprep.subr.bf16.mxu0 0
    %2991 = vmatpush2.bf16.msra.mxu0 0
    %2992 = vmatprep.subr.bf16.mxu0 0
    %2993 = vmatpush2.bf16.msra.mxu0 0
    %2994 = vmatprep.mubr.bf16.mxu0 0
    %2995 = vmatmul.mubr.bf16.gmra.mxu0 %v2960
    %v2996 = vpop.f32.mrf.mxu0
    %v2997 = vadd.f32 0.0, %v2996
    %v2998 = vpop.f32.mrf.mxu0
    %v2999 = vpop.f32.mrf.mxu0
    %v3000 = vpop.f32.mrf.mxu0
    %3001 = vdwg.mxu0
    %3002 = vmatprep.subr.bf16.mxu0 0
    %3003 = vmatpush1.bf16.msra.mxu0 0
    %3004 = vmatprep.subr.bf16.mxu0 0
    %3005 = vmatpush1.bf16.msra.mxu0 0
    %3006 = vmatprep.subr.bf16.mxu0 0
    %3007 = vmatpush1.bf16.msra.mxu0 0
    %3008 = vmatprep.subr.bf16.mxu0 0
    %3009 = vmatpush1.bf16.msra.mxu0 0
    %3010 = vmatprep.subr.bf16.mxu0 0
    %3011 = vmatpush1.bf16.msra.mxu0 0
    %3012 = vmatprep.subr.bf16.mxu0 0
    %3013 = vmatpush1.bf16.msra.mxu0 0
    %3014 = vmatprep.subr.bf16.mxu0 0
    %3015 = vmatpush1.bf16.msra.mxu0 %v2842
    %3016 = vmatprep.subr.bf16.mxu0 0
    %3017 = vmatpush1.bf16.msra.mxu0 %v2841
    %3018 = vmatprep.subr.bf16.mxu0 0
    %3019 = vmatpush2.bf16.msra.mxu0 0
    %3020 = vmatprep.subr.bf16.mxu0 0
    %3021 = vmatpush2.bf16.msra.mxu0 0
    %3022 = vmatprep.subr.bf16.mxu0 0
    %3023 = vmatpush2.bf16.msra.mxu0 0
    %3024 = vmatprep.subr.bf16.mxu0 0
    %3025 = vmatpush2.bf16.msra.mxu0 0
    %3026 = vmatprep.subr.bf16.mxu0 0
    %3027 = vmatpush2.bf16.msra.mxu0 0
    %3028 = vmatprep.subr.bf16.mxu0 0
    %3029 = vmatpush2.bf16.msra.mxu0 0
    %3030 = vmatprep.subr.bf16.mxu0 0
    %3031 = vmatpush2.bf16.msra.mxu0 0
    %3032 = vmatprep.subr.bf16.mxu0 0
    %3033 = vmatpush2.bf16.msra.mxu0 0
    %3034 = vmatprep.mubr.bf16.mxu0 0
    %3035 = vmatmul.mubr.bf16.gmra.mxu0 %v2960
    %v3036 = vpop.f32.mrf.mxu0
    %v3037 = vadd.f32 0.0, %v3036
    %v3038 = vpop.f32.mrf.mxu0
    %v3039 = vpop.f32.mrf.mxu0
    %v3040 = vpop.f32.mrf.mxu0
    %3041 = vdwg.mxu0
    %v3042 = vadd.f32 %v2727, %v2997
    %v3043 = vxor.u32 %v3042, 2147483648
    %v3044 = vmul.f32 %v3043, 1.442695
    %v3045 = vpow.pop %v3044
    %v3046 = vadd.f32 %v3045, 1.0
    %v3047 = vrcp.pop %v3046
    %v3048 = vmul.f32 1.0, %v3047
    %v3049 = vadd.f32 %v2739, %v3037
    %v3050 = vxor.u32 %v3049, 2147483648
    %v3051 = vmul.f32 %v3050, 1.442695
    %v3052 = vpow.pop %v3051
    %v3053 = vadd.f32 %v3052, 1.0
    %v3054 = vrcp.pop %v3053
    %v3055 = vmul.f32 1.0, %v3054
    %3056 = vmatprep.subr.bf16.mxu0 0
    %3057 = vmatpush1.bf16.msra.mxu0 0
    %3058 = vmatprep.subr.bf16.mxu0 0
    %3059 = vmatpush1.bf16.msra.mxu0 0
    %3060 = vmatprep.subr.bf16.mxu0 0
    %3061 = vmatpush1.bf16.msra.mxu0 0
    %3062 = vmatprep.subr.bf16.mxu0 0
    %3063 = vmatpush1.bf16.msra.mxu0 0
    %3064 = vmatprep.subr.bf16.mxu0 0
    %3065 = vmatpush1.bf16.msra.mxu0 0
    %3066 = vmatprep.subr.bf16.mxu0 0
    %3067 = vmatpush1.bf16.msra.mxu0 0
    %3068 = vmatprep.subr.bf16.mxu0 0
    %3069 = vmatpush1.bf16.msra.mxu0 %v2908
    %3070 = vmatprep.subr.bf16.mxu0 0
    %3071 = vmatpush1.bf16.msra.mxu0 %v2907
    %3072 = vmatprep.subr.bf16.mxu0 0
    %3073 = vmatpush2.bf16.msra.mxu0 0
    %3074 = vmatprep.subr.bf16.mxu0 0
    %3075 = vmatpush2.bf16.msra.mxu0 0
    %3076 = vmatprep.subr.bf16.mxu0 0
    %3077 = vmatpush2.bf16.msra.mxu0 0
    %3078 = vmatprep.subr.bf16.mxu0 0
    %3079 = vmatpush2.bf16.msra.mxu0 0
    %3080 = vmatprep.subr.bf16.mxu0 0
    %3081 = vmatpush2.bf16.msra.mxu0 0
    %3082 = vmatprep.subr.bf16.mxu0 0
    %3083 = vmatpush2.bf16.msra.mxu0 0
    %3084 = vmatprep.subr.bf16.mxu0 0
    %3085 = vmatpush2.bf16.msra.mxu0 0
    %3086 = vmatprep.subr.bf16.mxu0 0
    %3087 = vmatpush2.bf16.msra.mxu0 0
    %3088 = vmatprep.mubr.bf16.mxu0 0
    %3089 = vmatmul.mubr.bf16.gmra.mxu0 %v2960
    %v3090 = vpop.f32.mrf.mxu0
    %v3091 = vadd.f32 %v2779, %v3090
    %v3092 = vpop.f32.mrf.mxu0
    %v3093 = vpop.f32.mrf.mxu0
    %v3094 = vpop.f32.mrf.mxu0
    %3095 = vdwg.mxu0
    %v3096 = vmul.f32 %v3048, %v3091
    %v3097 = vadd.f32 %v2751, %v3096
    %v3098 = vtanh.pop %v3097
    %v3099 = vsub.f32 1.0, %v3055
    %v3100 = vmul.f32 %v3099, %v3098
    %v3101 = vmul.f32 %v3055, %v2957
    %v3102 = vadd.f32 %v3100, %v3101
    %v3103 = vpack.c.bf16 %v3102, %v3102
    %v3105 = vsel %vm277, %v3103, 0
    %3107 = vmatprep.subr.bf16.mxu0 0
    %3108 = vmatpush1.bf16.msra.mxu0 0
    %3109 = vmatprep.subr.bf16.mxu0 0
    %3110 = vmatpush1.bf16.msra.mxu0 0
    %3111 = vmatprep.subr.bf16.mxu0 0
    %3112 = vmatpush1.bf16.msra.mxu0 0
    %3113 = vmatprep.subr.bf16.mxu0 0
    %3114 = vmatpush1.bf16.msra.mxu0 0
    %3115 = vmatprep.subr.bf16.mxu0 0
    %3116 = vmatpush1.bf16.msra.mxu0 0
    %3117 = vmatprep.subr.bf16.mxu0 0
    %3118 = vmatpush1.bf16.msra.mxu0 0
    %3119 = vmatprep.subr.bf16.mxu0 0
    %3120 = vmatpush1.bf16.msra.mxu0 %v2790
    %3121 = vmatprep.subr.bf16.mxu0 0
    %3122 = vmatpush1.bf16.msra.mxu0 %v2789
    %3123 = vmatprep.subr.bf16.mxu0 0
    %3124 = vmatpush2.bf16.msra.mxu0 0
    %3125 = vmatprep.subr.bf16.mxu0 0
    %3126 = vmatpush2.bf16.msra.mxu0 0
    %3127 = vmatprep.subr.bf16.mxu0 0
    %3128 = vmatpush2.bf16.msra.mxu0 0
    %3129 = vmatprep.subr.bf16.mxu0 0
    %3130 = vmatpush2.bf16.msra.mxu0 0
    %3131 = vmatprep.subr.bf16.mxu0 0
    %3132 = vmatpush2.bf16.msra.mxu0 0
    %3133 = vmatprep.subr.bf16.mxu0 0
    %3134 = vmatpush2.bf16.msra.mxu0 0
    %3135 = vmatprep.subr.bf16.mxu0 0
    %3136 = vmatpush2.bf16.msra.mxu0 0
    %3137 = vmatprep.subr.bf16.mxu0 0
    %3138 = vmatpush2.bf16.msra.mxu0 0
    %3139 = vmatprep.mubr.bf16.mxu0 0
    %3140 = vmatmul.mubr.bf16.gmra.mxu0 %v3105
    %v3141 = vpop.f32.mrf.mxu0
    %v3142 = vadd.f32 0.0, %v3141
    %v3143 = vpop.f32.mrf.mxu0
    %v3144 = vpop.f32.mrf.mxu0
    %v3145 = vpop.f32.mrf.mxu0
    %3146 = vdwg.mxu0
    %3147 = vmatprep.subr.bf16.mxu0 0
    %3148 = vmatpush1.bf16.msra.mxu0 0
    %3149 = vmatprep.subr.bf16.mxu0 0
    %3150 = vmatpush1.bf16.msra.mxu0 0
    %3151 = vmatprep.subr.bf16.mxu0 0
    %3152 = vmatpush1.bf16.msra.mxu0 0
    %3153 = vmatprep.subr.bf16.mxu0 0
    %3154 = vmatpush1.bf16.msra.mxu0 0
    %3155 = vmatprep.subr.bf16.mxu0 0
    %3156 = vmatpush1.bf16.msra.mxu0 0
    %3157 = vmatprep.subr.bf16.mxu0 0
    %3158 = vmatpush1.bf16.msra.mxu0 0
    %3159 = vmatprep.subr.bf16.mxu0 0
    %3160 = vmatpush1.bf16.msra.mxu0 %v2842
    %3161 = vmatprep.subr.bf16.mxu0 0
    %3162 = vmatpush1.bf16.msra.mxu0 %v2841
    %3163 = vmatprep.subr.bf16.mxu0 0
    %3164 = vmatpush2.bf16.msra.mxu0 0
    %3165 = vmatprep.subr.bf16.mxu0 0
    %3166 = vmatpush2.bf16.msra.mxu0 0
    %3167 = vmatprep.subr.bf16.mxu0 0
    %3168 = vmatpush2.bf16.msra.mxu0 0
    %3169 = vmatprep.subr.bf16.mxu0 0
    %3170 = vmatpush2.bf16.msra.mxu0 0
    %3171 = vmatprep.subr.bf16.mxu0 0
    %3172 = vmatpush2.bf16.msra.mxu0 0
    %3173 = vmatprep.subr.bf16.mxu0 0
    %3174 = vmatpush2.bf16.msra.mxu0 0
    %3175 = vmatprep.subr.bf16.mxu0 0
    %3176 = vmatpush2.bf16.msra.mxu0 0
    %3177 = vmatprep.subr.bf16.mxu0 0
    %3178 = vmatpush2.bf16.msra.mxu0 0
    %3179 = vmatprep.mubr.bf16.mxu0 0
    %3180 = vmatmul.mubr.bf16.gmra.mxu0 %v3105
    %v3181 = vpop.f32.mrf.mxu0
    %v3182 = vadd.f32 0.0, %v3181
    %v3183 = vpop.f32.mrf.mxu0
    %v3184 = vpop.f32.mrf.mxu0
    %v3185 = vpop.f32.mrf.mxu0
    %3186 = vdwg.mxu0
    %v3187 = vadd.f32 %v2564, %v3142
    %v3188 = vxor.u32 %v3187, 2147483648
    %v3189 = vmul.f32 %v3188, 1.442695
    %v3190 = vpow.pop %v3189
    %v3191 = vadd.f32 %v3190, 1.0
    %v3192 = vrcp.pop %v3191
    %v3193 = vmul.f32 1.0, %v3192
    %v3194 = vadd.f32 %v2638, %v3182
    %v3195 = vxor.u32 %v3194, 2147483648
    %v3196 = vmul.f32 %v3195, 1.442695
    %v3197 = vpow.pop %v3196
    %v3198 = vadd.f32 %v3197, 1.0
    %v3199 = vrcp.pop %v3198
    %v3200 = vmul.f32 1.0, %v3199
    %3201 = vmatprep.subr.bf16.mxu0 0
    %3202 = vmatpush1.bf16.msra.mxu0 0
    %3203 = vmatprep.subr.bf16.mxu0 0
    %3204 = vmatpush1.bf16.msra.mxu0 0
    %3205 = vmatprep.subr.bf16.mxu0 0
    %3206 = vmatpush1.bf16.msra.mxu0 0
    %3207 = vmatprep.subr.bf16.mxu0 0
    %3208 = vmatpush1.bf16.msra.mxu0 0
    %3209 = vmatprep.subr.bf16.mxu0 0
    %3210 = vmatpush1.bf16.msra.mxu0 0
    %3211 = vmatprep.subr.bf16.mxu0 0
    %3212 = vmatpush1.bf16.msra.mxu0 0
    %3213 = vmatprep.subr.bf16.mxu0 0
    %3214 = vmatpush1.bf16.msra.mxu0 %v2908
    %3215 = vmatprep.subr.bf16.mxu0 0
    %3216 = vmatpush1.bf16.msra.mxu0 %v2907
    %3217 = vmatprep.subr.bf16.mxu0 0
    %3218 = vmatpush2.bf16.msra.mxu0 0
    %3219 = vmatprep.subr.bf16.mxu0 0
    %3220 = vmatpush2.bf16.msra.mxu0 0
    %3221 = vmatprep.subr.bf16.mxu0 0
    %3222 = vmatpush2.bf16.msra.mxu0 0
    %3223 = vmatprep.subr.bf16.mxu0 0
    %3224 = vmatpush2.bf16.msra.mxu0 0
    %3225 = vmatprep.subr.bf16.mxu0 0
    %3226 = vmatpush2.bf16.msra.mxu0 0
    %3227 = vmatprep.subr.bf16.mxu0 0
    %3228 = vmatpush2.bf16.msra.mxu0 0
    %3229 = vmatprep.subr.bf16.mxu0 0
    %3230 = vmatpush2.bf16.msra.mxu0 0
    %3231 = vmatprep.subr.bf16.mxu0 0
    %3232 = vmatpush2.bf16.msra.mxu0 0
    %3233 = vmatprep.mubr.bf16.mxu0 0
    %3234 = vmatmul.mubr.bf16.gmra.mxu0 %v3105
    %v3235 = vpop.f32.mrf.mxu0
    %v3236 = vadd.f32 %v2779, %v3235
    %v3237 = vpop.f32.mrf.mxu0
    %v3238 = vpop.f32.mrf.mxu0
    %v3239 = vpop.f32.mrf.mxu0
    %3240 = vdwg.mxu0
    %v3241 = vmul.f32 %v3193, %v3236
    %v3242 = vadd.f32 %v2712, %v3241
    %v3243 = vtanh.pop %v3242
    %v3244 = vsub.f32 1.0, %v3200
    %v3245 = vmul.f32 %v3244, %v3243
    %v3246 = vmul.f32 %v3200, %v3102
    %v3247 = vadd.f32 %v3245, %v3246
    %v3248 = vpack.c.bf16 %v3247, %v3247
    %v3250 = vsel %vm277, %v3248, 0
    %3252 = vmatprep.subr.bf16.mxu0 0
    %3253 = vmatpush1.bf16.msra.mxu0 0
    %3254 = vmatprep.subr.bf16.mxu0 0
    %3255 = vmatpush1.bf16.msra.mxu0 0
    %3256 = vmatprep.subr.bf16.mxu0 0
    %3257 = vmatpush1.bf16.msra.mxu0 0
    %3258 = vmatprep.subr.bf16.mxu0 0
    %3259 = vmatpush1.bf16.msra.mxu0 0
    %3260 = vmatprep.subr.bf16.mxu0 0
    %3261 = vmatpush1.bf16.msra.mxu0 0
    %3262 = vmatprep.subr.bf16.mxu0 0
    %3263 = vmatpush1.bf16.msra.mxu0 0
    %3264 = vmatprep.subr.bf16.mxu0 0
    %3265 = vmatpush1.bf16.msra.mxu0 %v2790
    %3266 = vmatprep.subr.bf16.mxu0 0
    %3267 = vmatpush1.bf16.msra.mxu0 %v2789
    %3268 = vmatprep.subr.bf16.mxu0 0
    %3269 = vmatpush2.bf16.msra.mxu0 0
    %3270 = vmatprep.subr.bf16.mxu0 0
    %3271 = vmatpush2.bf16.msra.mxu0 0
    %3272 = vmatprep.subr.bf16.mxu0 0
    %3273 = vmatpush2.bf16.msra.mxu0 0
    %3274 = vmatprep.subr.bf16.mxu0 0
    %3275 = vmatpush2.bf16.msra.mxu0 0
    %3276 = vmatprep.subr.bf16.mxu0 0
    %3277 = vmatpush2.bf16.msra.mxu0 0
    %3278 = vmatprep.subr.bf16.mxu0 0
    %3279 = vmatpush2.bf16.msra.mxu0 0
    %3280 = vmatprep.subr.bf16.mxu0 0
    %3281 = vmatpush2.bf16.msra.mxu0 0
    %3282 = vmatprep.subr.bf16.mxu0 0
    %3283 = vmatpush2.bf16.msra.mxu0 0
    %3284 = vmatprep.mubr.bf16.mxu0 0
    %3285 = vmatmul.mubr.bf16.gmra.mxu0 %v3250
    %v3286 = vpop.f32.mrf.mxu0
    %v3287 = vadd.f32 0.0, %v3286
    %v3288 = vpop.f32.mrf.mxu0
    %v3289 = vpop.f32.mrf.mxu0
    %v3290 = vpop.f32.mrf.mxu0
    %3291 = vdwg.mxu0
    %3292 = vmatprep.subr.bf16.mxu0 0
    %3293 = vmatpush1.bf16.msra.mxu0 0
    %3294 = vmatprep.subr.bf16.mxu0 0
    %3295 = vmatpush1.bf16.msra.mxu0 0
    %3296 = vmatprep.subr.bf16.mxu0 0
    %3297 = vmatpush1.bf16.msra.mxu0 0
    %3298 = vmatprep.subr.bf16.mxu0 0
    %3299 = vmatpush1.bf16.msra.mxu0 0
    %3300 = vmatprep.subr.bf16.mxu0 0
    %3301 = vmatpush1.bf16.msra.mxu0 0
    %3302 = vmatprep.subr.bf16.mxu0 0
    %3303 = vmatpush1.bf16.msra.mxu0 0
    %3304 = vmatprep.subr.bf16.mxu0 0
    %3305 = vmatpush1.bf16.msra.mxu0 %v2842
    %3306 = vmatprep.subr.bf16.mxu0 0
    %3307 = vmatpush1.bf16.msra.mxu0 %v2841
    %3308 = vmatprep.subr.bf16.mxu0 0
    %3309 = vmatpush2.bf16.msra.mxu0 0
    %3310 = vmatprep.subr.bf16.mxu0 0
    %3311 = vmatpush2.bf16.msra.mxu0 0
    %3312 = vmatprep.subr.bf16.mxu0 0
    %3313 = vmatpush2.bf16.msra.mxu0 0
    %3314 = vmatprep.subr.bf16.mxu0 0
    %3315 = vmatpush2.bf16.msra.mxu0 0
    %3316 = vmatprep.subr.bf16.mxu0 0
    %3317 = vmatpush2.bf16.msra.mxu0 0
    %3318 = vmatprep.subr.bf16.mxu0 0
    %3319 = vmatpush2.bf16.msra.mxu0 0
    %3320 = vmatprep.subr.bf16.mxu0 0
    %3321 = vmatpush2.bf16.msra.mxu0 0
    %3322 = vmatprep.subr.bf16.mxu0 0
    %3323 = vmatpush2.bf16.msra.mxu0 0
    %3324 = vmatprep.mubr.bf16.mxu0 0
    %3325 = vmatmul.mubr.bf16.gmra.mxu0 %v3250
    %v3326 = vpop.f32.mrf.mxu0
    %v3327 = vadd.f32 0.0, %v3326
    %v3328 = vpop.f32.mrf.mxu0
    %v3329 = vpop.f32.mrf.mxu0
    %v3330 = vpop.f32.mrf.mxu0
    %3331 = vdwg.mxu0
    %v3332 = vadd.f32 %v2728, %v3287
    %v3333 = vxor.u32 %v3332, 2147483648
    %v3334 = vmul.f32 %v3333, 1.442695
    %v3335 = vpow.pop %v3334
    %v3336 = vadd.f32 %v3335, 1.0
    %v3337 = vrcp.pop %v3336
    %v3338 = vmul.f32 1.0, %v3337
    %v3339 = vadd.f32 %v2740, %v3327
    %v3340 = vxor.u32 %v3339, 2147483648
    %v3341 = vmul.f32 %v3340, 1.442695
    %v3342 = vpow.pop %v3341
    %v3343 = vadd.f32 %v3342, 1.0
    %v3344 = vrcp.pop %v3343
    %v3345 = vmul.f32 1.0, %v3344
    %3346 = vmatprep.subr.bf16.mxu0 0
    %3347 = vmatpush1.bf16.msra.mxu0 0
    %3348 = vmatprep.subr.bf16.mxu0 0
    %3349 = vmatpush1.bf16.msra.mxu0 0
    %3350 = vmatprep.subr.bf16.mxu0 0
    %3351 = vmatpush1.bf16.msra.mxu0 0
    %3352 = vmatprep.subr.bf16.mxu0 0
    %3353 = vmatpush1.bf16.msra.mxu0 0
    %3354 = vmatprep.subr.bf16.mxu0 0
    %3355 = vmatpush1.bf16.msra.mxu0 0
    %3356 = vmatprep.subr.bf16.mxu0 0
    %3357 = vmatpush1.bf16.msra.mxu0 0
    %3358 = vmatprep.subr.bf16.mxu0 0
    %3359 = vmatpush1.bf16.msra.mxu0 %v2908
    %3360 = vmatprep.subr.bf16.mxu0 0
    %3361 = vmatpush1.bf16.msra.mxu0 %v2907
    %3362 = vmatprep.subr.bf16.mxu0 0
    %3363 = vmatpush2.bf16.msra.mxu0 0
    %3364 = vmatprep.subr.bf16.mxu0 0
    %3365 = vmatpush2.bf16.msra.mxu0 0
    %3366 = vmatprep.subr.bf16.mxu0 0
    %3367 = vmatpush2.bf16.msra.mxu0 0
    %3368 = vmatprep.subr.bf16.mxu0 0
    %3369 = vmatpush2.bf16.msra.mxu0 0
    %3370 = vmatprep.subr.bf16.mxu0 0
    %3371 = vmatpush2.bf16.msra.mxu0 0
    %3372 = vmatprep.subr.bf16.mxu0 0
    %3373 = vmatpush2.bf16.msra.mxu0 0
    %3374 = vmatprep.subr.bf16.mxu0 0
    %3375 = vmatpush2.bf16.msra.mxu0 0
    %3376 = vmatprep.subr.bf16.mxu0 0
    %3377 = vmatpush2.bf16.msra.mxu0 0
    %3378 = vmatprep.mubr.bf16.mxu0 0
    %3379 = vmatmul.mubr.bf16.gmra.mxu0 %v3250
    %v3380 = vpop.f32.mrf.mxu0
    %v3381 = vadd.f32 %v2779, %v3380
    %v3382 = vpop.f32.mrf.mxu0
    %v3383 = vpop.f32.mrf.mxu0
    %v3384 = vpop.f32.mrf.mxu0
    %3385 = vdwg.mxu0
    %v3386 = vmul.f32 %v3338, %v3381
    %v3387 = vadd.f32 %v2752, %v3386
    %v3388 = vtanh.pop %v3387
    %v3389 = vsub.f32 1.0, %v3345
    %v3390 = vmul.f32 %v3389, %v3388
    %v3391 = vmul.f32 %v3345, %v3247
    %v3392 = vadd.f32 %v3390, %v3391
    %v3393 = vpack.c.bf16 %v3392, %v3392
    %v3395 = vsel %vm277, %v3393, 0
    %3397 = vmatprep.subr.bf16.mxu0 0
    %3398 = vmatpush1.bf16.msra.mxu0 0
    %3399 = vmatprep.subr.bf16.mxu0 0
    %3400 = vmatpush1.bf16.msra.mxu0 0
    %3401 = vmatprep.subr.bf16.mxu0 0
    %3402 = vmatpush1.bf16.msra.mxu0 0
    %3403 = vmatprep.subr.bf16.mxu0 0
    %3404 = vmatpush1.bf16.msra.mxu0 0
    %3405 = vmatprep.subr.bf16.mxu0 0
    %3406 = vmatpush1.bf16.msra.mxu0 0
    %3407 = vmatprep.subr.bf16.mxu0 0
    %3408 = vmatpush1.bf16.msra.mxu0 0
    %3409 = vmatprep.subr.bf16.mxu0 0
    %3410 = vmatpush1.bf16.msra.mxu0 %v2790
    %3411 = vmatprep.subr.bf16.mxu0 0
    %3412 = vmatpush1.bf16.msra.mxu0 %v2789
    %3413 = vmatprep.subr.bf16.mxu0 0
    %3414 = vmatpush2.bf16.msra.mxu0 0
    %3415 = vmatprep.subr.bf16.mxu0 0
    %3416 = vmatpush2.bf16.msra.mxu0 0
    %3417 = vmatprep.subr.bf16.mxu0 0
    %3418 = vmatpush2.bf16.msra.mxu0 0
    %3419 = vmatprep.subr.bf16.mxu0 0
    %3420 = vmatpush2.bf16.msra.mxu0 0
    %3421 = vmatprep.subr.bf16.mxu0 0
    %3422 = vmatpush2.bf16.msra.mxu0 0
    %3423 = vmatprep.subr.bf16.mxu0 0
    %3424 = vmatpush2.bf16.msra.mxu0 0
    %3425 = vmatprep.subr.bf16.mxu0 0
    %3426 = vmatpush2.bf16.msra.mxu0 0
    %3427 = vmatprep.subr.bf16.mxu0 0
    %3428 = vmatpush2.bf16.msra.mxu0 0
    %3429 = vmatprep.mubr.bf16.mxu0 0
    %3430 = vmatmul.mubr.bf16.gmra.mxu0 %v3395
    %v3431 = vpop.f32.mrf.mxu0
    %v3432 = vadd.f32 0.0, %v3431
    %v3433 = vpop.f32.mrf.mxu0
    %v3434 = vpop.f32.mrf.mxu0
    %v3435 = vpop.f32.mrf.mxu0
    %3436 = vdwg.mxu0
    %3437 = vmatprep.subr.bf16.mxu0 0
    %3438 = vmatpush1.bf16.msra.mxu0 0
    %3439 = vmatprep.subr.bf16.mxu0 0
    %3440 = vmatpush1.bf16.msra.mxu0 0
    %3441 = vmatprep.subr.bf16.mxu0 0
    %3442 = vmatpush1.bf16.msra.mxu0 0
    %3443 = vmatprep.subr.bf16.mxu0 0
    %3444 = vmatpush1.bf16.msra.mxu0 0
    %3445 = vmatprep.subr.bf16.mxu0 0
    %3446 = vmatpush1.bf16.msra.mxu0 0
    %3447 = vmatprep.subr.bf16.mxu0 0
    %3448 = vmatpush1.bf16.msra.mxu0 0
    %3449 = vmatprep.subr.bf16.mxu0 0
    %3450 = vmatpush1.bf16.msra.mxu0 %v2842
    %3451 = vmatprep.subr.bf16.mxu0 0
    %3452 = vmatpush1.bf16.msra.mxu0 %v2841
    %3453 = vmatprep.subr.bf16.mxu0 0
    %3454 = vmatpush2.bf16.msra.mxu0 0
    %3455 = vmatprep.subr.bf16.mxu0 0
    %3456 = vmatpush2.bf16.msra.mxu0 0
    %3457 = vmatprep.subr.bf16.mxu0 0
    %3458 = vmatpush2.bf16.msra.mxu0 0
    %3459 = vmatprep.subr.bf16.mxu0 0
    %3460 = vmatpush2.bf16.msra.mxu0 0
    %3461 = vmatprep.subr.bf16.mxu0 0
    %3462 = vmatpush2.bf16.msra.mxu0 0
    %3463 = vmatprep.subr.bf16.mxu0 0
    %3464 = vmatpush2.bf16.msra.mxu0 0
    %3465 = vmatprep.subr.bf16.mxu0 0
    %3466 = vmatpush2.bf16.msra.mxu0 0
    %3467 = vmatprep.subr.bf16.mxu0 0
    %3468 = vmatpush2.bf16.msra.mxu0 0
    %3469 = vmatprep.mubr.bf16.mxu0 0
    %3470 = vmatmul.mubr.bf16.gmra.mxu0 %v3395
    %v3471 = vpop.f32.mrf.mxu0
    %v3472 = vadd.f32 0.0, %v3471
    %v3473 = vpop.f32.mrf.mxu0
    %v3474 = vpop.f32.mrf.mxu0
    %v3475 = vpop.f32.mrf.mxu0
    %3476 = vdwg.mxu0
    %v3477 = vadd.f32 %v2569, %v3432
    %v3478 = vxor.u32 %v3477, 2147483648
    %v3479 = vmul.f32 %v3478, 1.442695
    %v3480 = vpow.pop %v3479
    %v3481 = vadd.f32 %v3480, 1.0
    %v3482 = vrcp.pop %v3481
    %v3483 = vmul.f32 1.0, %v3482
    %v3484 = vadd.f32 %v2643, %v3472
    %v3485 = vxor.u32 %v3484, 2147483648
    %v3486 = vmul.f32 %v3485, 1.442695
    %v3487 = vpow.pop %v3486
    %v3488 = vadd.f32 %v3487, 1.0
    %v3489 = vrcp.pop %v3488
    %v3490 = vmul.f32 1.0, %v3489
    %3491 = vmatprep.subr.bf16.mxu0 0
    %3492 = vmatpush1.bf16.msra.mxu0 0
    %3493 = vmatprep.subr.bf16.mxu0 0
    %3494 = vmatpush1.bf16.msra.mxu0 0
    %3495 = vmatprep.subr.bf16.mxu0 0
    %3496 = vmatpush1.bf16.msra.mxu0 0
    %3497 = vmatprep.subr.bf16.mxu0 0
    %3498 = vmatpush1.bf16.msra.mxu0 0
    %3499 = vmatprep.subr.bf16.mxu0 0
    %3500 = vmatpush1.bf16.msra.mxu0 0
    %3501 = vmatprep.subr.bf16.mxu0 0
    %3502 = vmatpush1.bf16.msra.mxu0 0
    %3503 = vmatprep.subr.bf16.mxu0 0
    %3504 = vmatpush1.bf16.msra.mxu0 %v2908
    %3505 = vmatprep.subr.bf16.mxu0 0
    %3506 = vmatpush1.bf16.msra.mxu0 %v2907
    %3507 = vmatprep.subr.bf16.mxu0 0
    %3508 = vmatpush2.bf16.msra.mxu0 0
    %3509 = vmatprep.subr.bf16.mxu0 0
    %3510 = vmatpush2.bf16.msra.mxu0 0
    %3511 = vmatprep.subr.bf16.mxu0 0
    %3512 = vmatpush2.bf16.msra.mxu0 0
    %3513 = vmatprep.subr.bf16.mxu0 0
    %3514 = vmatpush2.bf16.msra.mxu0 0
    %3515 = vmatprep.subr.bf16.mxu0 0
    %3516 = vmatpush2.bf16.msra.mxu0 0
    %3517 = vmatprep.subr.bf16.mxu0 0
    %3518 = vmatpush2.bf16.msra.mxu0 0
    %3519 = vmatprep.subr.bf16.mxu0 0
    %3520 = vmatpush2.bf16.msra.mxu0 0
    %3521 = vmatprep.subr.bf16.mxu0 0
    %3522 = vmatpush2.bf16.msra.mxu0 0
    %3523 = vmatprep.mubr.bf16.mxu0 0
    %3524 = vmatmul.mubr.bf16.gmra.mxu0 %v3395
    %v3525 = vpop.f32.mrf.mxu0
    %v3526 = vadd.f32 %v2779, %v3525
    %v3527 = vpop.f32.mrf.mxu0
    %v3528 = vpop.f32.mrf.mxu0
    %v3529 = vpop.f32.mrf.mxu0
    %3530 = vdwg.mxu0
    %v3531 = vmul.f32 %v3483, %v3526
    %v3532 = vadd.f32 %v2717, %v3531
    %v3533 = vtanh.pop %v3532
    %v3534 = vsub.f32 1.0, %v3490
    %v3535 = vmul.f32 %v3534, %v3533
    %v3536 = vmul.f32 %v3490, %v3392
    %v3537 = vadd.f32 %v3535, %v3536
    %v3538 = vpack.c.bf16 %v3537, %v3537
    %v3540 = vsel %vm277, %v3538, 0
    %3542 = vmatprep.subr.bf16.mxu0 0
    %3543 = vmatpush1.bf16.msra.mxu0 0
    %3544 = vmatprep.subr.bf16.mxu0 0
    %3545 = vmatpush1.bf16.msra.mxu0 0
    %3546 = vmatprep.subr.bf16.mxu0 0
    %3547 = vmatpush1.bf16.msra.mxu0 0
    %3548 = vmatprep.subr.bf16.mxu0 0
    %3549 = vmatpush1.bf16.msra.mxu0 0
    %3550 = vmatprep.subr.bf16.mxu0 0
    %3551 = vmatpush1.bf16.msra.mxu0 0
    %3552 = vmatprep.subr.bf16.mxu0 0
    %3553 = vmatpush1.bf16.msra.mxu0 0
    %3554 = vmatprep.subr.bf16.mxu0 0
    %3555 = vmatpush1.bf16.msra.mxu0 %v2790
    %3556 = vmatprep.subr.bf16.mxu0 0
    %3557 = vmatpush1.bf16.msra.mxu0 %v2789
    %3558 = vmatprep.subr.bf16.mxu0 0
    %3559 = vmatpush2.bf16.msra.mxu0 0
    %3560 = vmatprep.subr.bf16.mxu0 0
    %3561 = vmatpush2.bf16.msra.mxu0 0
    %3562 = vmatprep.subr.bf16.mxu0 0
    %3563 = vmatpush2.bf16.msra.mxu0 0
    %3564 = vmatprep.subr.bf16.mxu0 0
    %3565 = vmatpush2.bf16.msra.mxu0 0
    %3566 = vmatprep.subr.bf16.mxu0 0
    %3567 = vmatpush2.bf16.msra.mxu0 0
    %3568 = vmatprep.subr.bf16.mxu0 0
    %3569 = vmatpush2.bf16.msra.mxu0 0
    %3570 = vmatprep.subr.bf16.mxu0 0
    %3571 = vmatpush2.bf16.msra.mxu0 0
    %3572 = vmatprep.subr.bf16.mxu0 0
    %3573 = vmatpush2.bf16.msra.mxu0 0
    %3574 = vmatprep.mubr.bf16.mxu0 0
    %3575 = vmatmul.mubr.bf16.gmra.mxu0 %v3540
    %v3576 = vpop.f32.mrf.mxu0
    %v3577 = vadd.f32 0.0, %v3576
    %v3578 = vpop.f32.mrf.mxu0
    %v3579 = vpop.f32.mrf.mxu0
    %v3580 = vpop.f32.mrf.mxu0
    %3581 = vdwg.mxu0
    %3582 = vmatprep.subr.bf16.mxu0 0
    %3583 = vmatpush1.bf16.msra.mxu0 0
    %3584 = vmatprep.subr.bf16.mxu0 0
    %3585 = vmatpush1.bf16.msra.mxu0 0
    %3586 = vmatprep.subr.bf16.mxu0 0
    %3587 = vmatpush1.bf16.msra.mxu0 0
    %3588 = vmatprep.subr.bf16.mxu0 0
    %3589 = vmatpush1.bf16.msra.mxu0 0
    %3590 = vmatprep.subr.bf16.mxu0 0
    %3591 = vmatpush1.bf16.msra.mxu0 0
    %3592 = vmatprep.subr.bf16.mxu0 0
    %3593 = vmatpush1.bf16.msra.mxu0 0
    %3594 = vmatprep.subr.bf16.mxu0 0
    %3595 = vmatpush1.bf16.msra.mxu0 %v2842
    %3596 = vmatprep.subr.bf16.mxu0 0
    %3597 = vmatpush1.bf16.msra.mxu0 %v2841
    %3598 = vmatprep.subr.bf16.mxu0 0
    %3599 = vmatpush2.bf16.msra.mxu0 0
    %3600 = vmatprep.subr.bf16.mxu0 0
    %3601 = vmatpush2.bf16.msra.mxu0 0
    %3602 = vmatprep.subr.bf16.mxu0 0
    %3603 = vmatpush2.bf16.msra.mxu0 0
    %3604 = vmatprep.subr.bf16.mxu0 0
    %3605 = vmatpush2.bf16.msra.mxu0 0
    %3606 = vmatprep.subr.bf16.mxu0 0
    %3607 = vmatpush2.bf16.msra.mxu0 0
    %3608 = vmatprep.subr.bf16.mxu0 0
    %3609 = vmatpush2.bf16.msra.mxu0 0
    %3610 = vmatprep.subr.bf16.mxu0 0
    %3611 = vmatpush2.bf16.msra.mxu0 0
    %3612 = vmatprep.subr.bf16.mxu0 0
    %3613 = vmatpush2.bf16.msra.mxu0 0
    %3614 = vmatprep.mubr.bf16.mxu0 0
    %3615 = vmatmul.mubr.bf16.gmra.mxu0 %v3540
    %v3616 = vpop.f32.mrf.mxu0
    %v3617 = vadd.f32 0.0, %v3616
    %v3618 = vpop.f32.mrf.mxu0
    %v3619 = vpop.f32.mrf.mxu0
    %v3620 = vpop.f32.mrf.mxu0
    %3621 = vdwg.mxu0
    %v3622 = vadd.f32 %v2729, %v3577
    %v3623 = vxor.u32 %v3622, 2147483648
    %v3624 = vmul.f32 %v3623, 1.442695
    %v3625 = vpow.pop %v3624
    %v3626 = vadd.f32 %v3625, 1.0
    %v3627 = vrcp.pop %v3626
    %v3628 = vmul.f32 1.0, %v3627
    %v3629 = vadd.f32 %v2741, %v3617
    %v3630 = vxor.u32 %v3629, 2147483648
    %v3631 = vmul.f32 %v3630, 1.442695
    %v3632 = vpow.pop %v3631
    %v3633 = vadd.f32 %v3632, 1.0
    %v3634 = vrcp.pop %v3633
    %v3635 = vmul.f32 1.0, %v3634
    %3636 = vmatprep.subr.bf16.mxu0 0
    %3637 = vmatpush1.bf16.msra.mxu0 0
    %3638 = vmatprep.subr.bf16.mxu0 0
    %3639 = vmatpush1.bf16.msra.mxu0 0
    %3640 = vmatprep.subr.bf16.mxu0 0
    %3641 = vmatpush1.bf16.msra.mxu0 0
    %3642 = vmatprep.subr.bf16.mxu0 0
    %3643 = vmatpush1.bf16.msra.mxu0 0
    %3644 = vmatprep.subr.bf16.mxu0 0
    %3645 = vmatpush1.bf16.msra.mxu0 0
    %3646 = vmatprep.subr.bf16.mxu0 0
    %3647 = vmatpush1.bf16.msra.mxu0 0
    %3648 = vmatprep.subr.bf16.mxu0 0
    %3649 = vmatpush1.bf16.msra.mxu0 %v2908
    %3650 = vmatprep.subr.bf16.mxu0 0
    %3651 = vmatpush1.bf16.msra.mxu0 %v2907
    %3652 = vmatprep.subr.bf16.mxu0 0
    %3653 = vmatpush2.bf16.msra.mxu0 0
    %3654 = vmatprep.subr.bf16.mxu0 0
    %3655 = vmatpush2.bf16.msra.mxu0 0
    %3656 = vmatprep.subr.bf16.mxu0 0
    %3657 = vmatpush2.bf16.msra.mxu0 0
    %3658 = vmatprep.subr.bf16.mxu0 0
    %3659 = vmatpush2.bf16.msra.mxu0 0
    %3660 = vmatprep.subr.bf16.mxu0 0
    %3661 = vmatpush2.bf16.msra.mxu0 0
    %3662 = vmatprep.subr.bf16.mxu0 0
    %3663 = vmatpush2.bf16.msra.mxu0 0
    %3664 = vmatprep.subr.bf16.mxu0 0
    %3665 = vmatpush2.bf16.msra.mxu0 0
    %3666 = vmatprep.subr.bf16.mxu0 0
    %3667 = vmatpush2.bf16.msra.mxu0 0
    %3668 = vmatprep.mubr.bf16.mxu0 0
    %3669 = vmatmul.mubr.bf16.gmra.mxu0 %v3540
    %v3670 = vpop.f32.mrf.mxu0
    %v3671 = vadd.f32 %v2779, %v3670
    %v3672 = vpop.f32.mrf.mxu0
    %v3673 = vpop.f32.mrf.mxu0
    %v3674 = vpop.f32.mrf.mxu0
    %3675 = vdwg.mxu0
    %v3676 = vmul.f32 %v3628, %v3671
    %v3677 = vadd.f32 %v2753, %v3676
    %v3678 = vtanh.pop %v3677
    %v3679 = vsub.f32 1.0, %v3635
    %v3680 = vmul.f32 %v3679, %v3678
    %v3681 = vmul.f32 %v3635, %v3537
    %v3682 = vadd.f32 %v3680, %v3681
    %v3683 = vpack.c.bf16 %v3682, %v3682
    %v3685 = vsel %vm277, %v3683, 0
    %3687 = vmatprep.subr.bf16.mxu0 0
    %3688 = vmatpush1.bf16.msra.mxu0 0
    %3689 = vmatprep.subr.bf16.mxu0 0
    %3690 = vmatpush1.bf16.msra.mxu0 0
    %3691 = vmatprep.subr.bf16.mxu0 0
    %3692 = vmatpush1.bf16.msra.mxu0 0
    %3693 = vmatprep.subr.bf16.mxu0 0
    %3694 = vmatpush1.bf16.msra.mxu0 0
    %3695 = vmatprep.subr.bf16.mxu0 0
    %3696 = vmatpush1.bf16.msra.mxu0 0
    %3697 = vmatprep.subr.bf16.mxu0 0
    %3698 = vmatpush1.bf16.msra.mxu0 0
    %3699 = vmatprep.subr.bf16.mxu0 0
    %3700 = vmatpush1.bf16.msra.mxu0 %v2790
    %3701 = vmatprep.subr.bf16.mxu0 0
    %3702 = vmatpush1.bf16.msra.mxu0 %v2789
    %3703 = vmatprep.subr.bf16.mxu0 0
    %3704 = vmatpush2.bf16.msra.mxu0 0
    %3705 = vmatprep.subr.bf16.mxu0 0
    %3706 = vmatpush2.bf16.msra.mxu0 0
    %3707 = vmatprep.subr.bf16.mxu0 0
    %3708 = vmatpush2.bf16.msra.mxu0 0
    %3709 = vmatprep.subr.bf16.mxu0 0
    %3710 = vmatpush2.bf16.msra.mxu0 0
    %3711 = vmatprep.subr.bf16.mxu0 0
    %3712 = vmatpush2.bf16.msra.mxu0 0
    %3713 = vmatprep.subr.bf16.mxu0 0
    %3714 = vmatpush2.bf16.msra.mxu0 0
    %3715 = vmatprep.subr.bf16.mxu0 0
    %3716 = vmatpush2.bf16.msra.mxu0 0
    %3717 = vmatprep.subr.bf16.mxu0 0
    %3718 = vmatpush2.bf16.msra.mxu0 0
    %3719 = vmatprep.mubr.bf16.mxu0 0
    %3720 = vmatmul.mubr.bf16.gmra.mxu0 %v3685
    %v3721 = vpop.f32.mrf.mxu0
    %v3722 = vadd.f32 0.0, %v3721
    %v3723 = vpop.f32.mrf.mxu0
    %v3724 = vpop.f32.mrf.mxu0
    %v3725 = vpop.f32.mrf.mxu0
    %3726 = vdwg.mxu0
    %3727 = vmatprep.subr.bf16.mxu0 0
    %3728 = vmatpush1.bf16.msra.mxu0 0
    %3729 = vmatprep.subr.bf16.mxu0 0
    %3730 = vmatpush1.bf16.msra.mxu0 0
    %3731 = vmatprep.subr.bf16.mxu0 0
    %3732 = vmatpush1.bf16.msra.mxu0 0
    %3733 = vmatprep.subr.bf16.mxu0 0
    %3734 = vmatpush1.bf16.msra.mxu0 0
    %3735 = vmatprep.subr.bf16.mxu0 0
    %3736 = vmatpush1.bf16.msra.mxu0 0
    %3737 = vmatprep.subr.bf16.mxu0 0
    %3738 = vmatpush1.bf16.msra.mxu0 0
    %3739 = vmatprep.subr.bf16.mxu0 0
    %3740 = vmatpush1.bf16.msra.mxu0 %v2842
    %3741 = vmatprep.subr.bf16.mxu0 0
    %3742 = vmatpush1.bf16.msra.mxu0 %v2841
    %3743 = vmatprep.subr.bf16.mxu0 0
    %3744 = vmatpush2.bf16.msra.mxu0 0
    %3745 = vmatprep.subr.bf16.mxu0 0
    %3746 = vmatpush2.bf16.msra.mxu0 0
    %3747 = vmatprep.subr.bf16.mxu0 0
    %3748 = vmatpush2.bf16.msra.mxu0 0
    %3749 = vmatprep.subr.bf16.mxu0 0
    %3750 = vmatpush2.bf16.msra.mxu0 0
    %3751 = vmatprep.subr.bf16.mxu0 0
    %3752 = vmatpush2.bf16.msra.mxu0 0
    %3753 = vmatprep.subr.bf16.mxu0 0
    %3754 = vmatpush2.bf16.msra.mxu0 0
    %3755 = vmatprep.subr.bf16.mxu0 0
    %3756 = vmatpush2.bf16.msra.mxu0 0
    %3757 = vmatprep.subr.bf16.mxu0 0
    %3758 = vmatpush2.bf16.msra.mxu0 0
    %3759 = vmatprep.mubr.bf16.mxu0 0
    %3760 = vmatmul.mubr.bf16.gmra.mxu0 %v3685
    %v3761 = vpop.f32.mrf.mxu0
    %v3762 = vadd.f32 0.0, %v3761
    %v3763 = vpop.f32.mrf.mxu0
    %v3764 = vpop.f32.mrf.mxu0
    %v3765 = vpop.f32.mrf.mxu0
    %3766 = vdwg.mxu0
    %v3767 = vadd.f32 %v2572, %v3722
    %v3768 = vxor.u32 %v3767, 2147483648
    %v3769 = vmul.f32 %v3768, 1.442695
    %v3770 = vpow.pop %v3769
    %v3771 = vadd.f32 %v3770, 1.0
    %v3772 = vrcp.pop %v3771
    %v3773 = vmul.f32 1.0, %v3772
    %v3774 = vadd.f32 %v2646, %v3762
    %v3775 = vxor.u32 %v3774, 2147483648
    %v3776 = vmul.f32 %v3775, 1.442695
    %v3777 = vpow.pop %v3776
    %v3778 = vadd.f32 %v3777, 1.0
    %v3779 = vrcp.pop %v3778
    %v3780 = vmul.f32 1.0, %v3779
    %3781 = vmatprep.subr.bf16.mxu0 0
    %3782 = vmatpush1.bf16.msra.mxu0 0
    %3783 = vmatprep.subr.bf16.mxu0 0
    %3784 = vmatpush1.bf16.msra.mxu0 0
    %3785 = vmatprep.subr.bf16.mxu0 0
    %3786 = vmatpush1.bf16.msra.mxu0 0
    %3787 = vmatprep.subr.bf16.mxu0 0
    %3788 = vmatpush1.bf16.msra.mxu0 0
    %3789 = vmatprep.subr.bf16.mxu0 0
    %3790 = vmatpush1.bf16.msra.mxu0 0
    %3791 = vmatprep.subr.bf16.mxu0 0
    %3792 = vmatpush1.bf16.msra.mxu0 0
    %3793 = vmatprep.subr.bf16.mxu0 0
    %3794 = vmatpush1.bf16.msra.mxu0 %v2908
    %3795 = vmatprep.subr.bf16.mxu0 0
    %3796 = vmatpush1.bf16.msra.mxu0 %v2907
    %3797 = vmatprep.subr.bf16.mxu0 0
    %3798 = vmatpush2.bf16.msra.mxu0 0
    %3799 = vmatprep.subr.bf16.mxu0 0
    %3800 = vmatpush2.bf16.msra.mxu0 0
    %3801 = vmatprep.subr.bf16.mxu0 0
    %3802 = vmatpush2.bf16.msra.mxu0 0
    %3803 = vmatprep.subr.bf16.mxu0 0
    %3804 = vmatpush2.bf16.msra.mxu0 0
    %3805 = vmatprep.subr.bf16.mxu0 0
    %3806 = vmatpush2.bf16.msra.mxu0 0
    %3807 = vmatprep.subr.bf16.mxu0 0
    %3808 = vmatpush2.bf16.msra.mxu0 0
    %3809 = vmatprep.subr.bf16.mxu0 0
    %3810 = vmatpush2.bf16.msra.mxu0 0
    %3811 = vmatprep.subr.bf16.mxu0 0
    %3812 = vmatpush2.bf16.msra.mxu0 0
    %3813 = vmatprep.mubr.bf16.mxu0 0
    %3814 = vmatmul.mubr.bf16.gmra.mxu0 %v3685
    %v3815 = vpop.f32.mrf.mxu0
    %v3816 = vadd.f32 %v2779, %v3815
    %v3817 = vpop.f32.mrf.mxu0
    %v3818 = vpop.f32.mrf.mxu0
    %v3819 = vpop.f32.mrf.mxu0
    %3820 = vdwg.mxu0
    %v3821 = vmul.f32 %v3773, %v3816
    %v3822 = vadd.f32 %v2720, %v3821
    %v3823 = vtanh.pop %v3822
    %v3824 = vsub.f32 1.0, %v3780
    %v3825 = vmul.f32 %v3824, %v3823
    %v3826 = vmul.f32 %v3780, %v3682
    %v3827 = vadd.f32 %v3825, %v3826
    %v3828 = vpack.c.bf16 %v3827, %v3827
    %v3830 = vsel %vm277, %v3828, 0
    %3832 = vmatprep.subr.bf16.mxu0 0
    %3833 = vmatpush1.bf16.msra.mxu0 0
    %3834 = vmatprep.subr.bf16.mxu0 0
    %3835 = vmatpush1.bf16.msra.mxu0 0
    %3836 = vmatprep.subr.bf16.mxu0 0
    %3837 = vmatpush1.bf16.msra.mxu0 0
    %3838 = vmatprep.subr.bf16.mxu0 0
    %3839 = vmatpush1.bf16.msra.mxu0 0
    %3840 = vmatprep.subr.bf16.mxu0 0
    %3841 = vmatpush1.bf16.msra.mxu0 0
    %3842 = vmatprep.subr.bf16.mxu0 0
    %3843 = vmatpush1.bf16.msra.mxu0 0
    %3844 = vmatprep.subr.bf16.mxu0 0
    %3845 = vmatpush1.bf16.msra.mxu0 %v2790
    %3846 = vmatprep.subr.bf16.mxu0 0
    %3847 = vmatpush1.bf16.msra.mxu0 %v2789
    %3848 = vmatprep.subr.bf16.mxu0 0
    %3849 = vmatpush2.bf16.msra.mxu0 0
    %3850 = vmatprep.subr.bf16.mxu0 0
    %3851 = vmatpush2.bf16.msra.mxu0 0
    %3852 = vmatprep.subr.bf16.mxu0 0
    %3853 = vmatpush2.bf16.msra.mxu0 0
    %3854 = vmatprep.subr.bf16.mxu0 0
    %3855 = vmatpush2.bf16.msra.mxu0 0
    %3856 = vmatprep.subr.bf16.mxu0 0
    %3857 = vmatpush2.bf16.msra.mxu0 0
    %3858 = vmatprep.subr.bf16.mxu0 0
    %3859 = vmatpush2.bf16.msra.mxu0 0
    %3860 = vmatprep.subr.bf16.mxu0 0
    %3861 = vmatpush2.bf16.msra.mxu0 0
    %3862 = vmatprep.subr.bf16.mxu0 0
    %3863 = vmatpush2.bf16.msra.mxu0 0
    %3864 = vmatprep.mubr.bf16.mxu0 0
    %3865 = vmatmul.mubr.bf16.gmra.mxu0 %v3830
    %v3866 = vpop.f32.mrf.mxu0
    %v3867 = vadd.f32 0.0, %v3866
    %v3868 = vpop.f32.mrf.mxu0
    %v3869 = vpop.f32.mrf.mxu0
    %v3870 = vpop.f32.mrf.mxu0
    %3871 = vdwg.mxu0
    %3872 = vmatprep.subr.bf16.mxu0 0
    %3873 = vmatpush1.bf16.msra.mxu0 0
    %3874 = vmatprep.subr.bf16.mxu0 0
    %3875 = vmatpush1.bf16.msra.mxu0 0
    %3876 = vmatprep.subr.bf16.mxu0 0
    %3877 = vmatpush1.bf16.msra.mxu0 0
    %3878 = vmatprep.subr.bf16.mxu0 0
    %3879 = vmatpush1.bf16.msra.mxu0 0
    %3880 = vmatprep.subr.bf16.mxu0 0
    %3881 = vmatpush1.bf16.msra.mxu0 0
    %3882 = vmatprep.subr.bf16.mxu0 0
    %3883 = vmatpush1.bf16.msra.mxu0 0
    %3884 = vmatprep.subr.bf16.mxu0 0
    %3885 = vmatpush1.bf16.msra.mxu0 %v2842
    %3886 = vmatprep.subr.bf16.mxu0 0
    %3887 = vmatpush1.bf16.msra.mxu0 %v2841
    %3888 = vmatprep.subr.bf16.mxu0 0
    %3889 = vmatpush2.bf16.msra.mxu0 0
    %3890 = vmatprep.subr.bf16.mxu0 0
    %3891 = vmatpush2.bf16.msra.mxu0 0
    %3892 = vmatprep.subr.bf16.mxu0 0
    %3893 = vmatpush2.bf16.msra.mxu0 0
    %3894 = vmatprep.subr.bf16.mxu0 0
    %3895 = vmatpush2.bf16.msra.mxu0 0
    %3896 = vmatprep.subr.bf16.mxu0 0
    %3897 = vmatpush2.bf16.msra.mxu0 0
    %3898 = vmatprep.subr.bf16.mxu0 0
    %3899 = vmatpush2.bf16.msra.mxu0 0
    %3900 = vmatprep.subr.bf16.mxu0 0
    %3901 = vmatpush2.bf16.msra.mxu0 0
    %3902 = vmatprep.subr.bf16.mxu0 0
    %3903 = vmatpush2.bf16.msra.mxu0 0
    %3904 = vmatprep.mubr.bf16.mxu0 0
    %3905 = vmatmul.mubr.bf16.gmra.mxu0 %v3830
    %v3906 = vpop.f32.mrf.mxu0
    %v3907 = vadd.f32 0.0, %v3906
    %v3908 = vpop.f32.mrf.mxu0
    %v3909 = vpop.f32.mrf.mxu0
    %v3910 = vpop.f32.mrf.mxu0
    %3911 = vdwg.mxu0
    %v3912 = vadd.f32 %v2730, %v3867
    %v3913 = vxor.u32 %v3912, 2147483648
    %v3914 = vmul.f32 %v3913, 1.442695
    %v3915 = vpow.pop %v3914
    %v3916 = vadd.f32 %v3915, 1.0
    %v3917 = vrcp.pop %v3916
    %v3918 = vmul.f32 1.0, %v3917
    %v3919 = vadd.f32 %v2742, %v3907
    %v3920 = vxor.u32 %v3919, 2147483648
    %v3921 = vmul.f32 %v3920, 1.442695
    %v3922 = vpow.pop %v3921
    %v3923 = vadd.f32 %v3922, 1.0
    %v3924 = vrcp.pop %v3923
    %v3925 = vmul.f32 1.0, %v3924
    %3926 = vmatprep.subr.bf16.mxu0 0
    %3927 = vmatpush1.bf16.msra.mxu0 0
    %3928 = vmatprep.subr.bf16.mxu0 0
    %3929 = vmatpush1.bf16.msra.mxu0 0
    %3930 = vmatprep.subr.bf16.mxu0 0
    %3931 = vmatpush1.bf16.msra.mxu0 0
    %3932 = vmatprep.subr.bf16.mxu0 0
    %3933 = vmatpush1.bf16.msra.mxu0 0
    %3934 = vmatprep.subr.bf16.mxu0 0
    %3935 = vmatpush1.bf16.msra.mxu0 0
    %3936 = vmatprep.subr.bf16.mxu0 0
    %3937 = vmatpush1.bf16.msra.mxu0 0
    %3938 = vmatprep.subr.bf16.mxu0 0
    %3939 = vmatpush1.bf16.msra.mxu0 %v2908
    %3940 = vmatprep.subr.bf16.mxu0 0
    %3941 = vmatpush1.bf16.msra.mxu0 %v2907
    %3942 = vmatprep.subr.bf16.mxu0 0
    %3943 = vmatpush2.bf16.msra.mxu0 0
    %3944 = vmatprep.subr.bf16.mxu0 0
    %3945 = vmatpush2.bf16.msra.mxu0 0
    %3946 = vmatprep.subr.bf16.mxu0 0
    %3947 = vmatpush2.bf16.msra.mxu0 0
    %3948 = vmatprep.subr.bf16.mxu0 0
    %3949 = vmatpush2.bf16.msra.mxu0 0
    %3950 = vmatprep.subr.bf16.mxu0 0
    %3951 = vmatpush2.bf16.msra.mxu0 0
    %3952 = vmatprep.subr.bf16.mxu0 0
    %3953 = vmatpush2.bf16.msra.mxu0 0
    %3954 = vmatprep.subr.bf16.mxu0 0
    %3955 = vmatpush2.bf16.msra.mxu0 0
    %3956 = vmatprep.subr.bf16.mxu0 0
    %3957 = vmatpush2.bf16.msra.mxu0 0
    %3958 = vmatprep.mubr.bf16.mxu0 0
    %3959 = vmatmul.mubr.bf16.gmra.mxu0 %v3830
    %v3960 = vpop.f32.mrf.mxu0
    %v3961 = vadd.f32 %v2779, %v3960
    %v3962 = vpop.f32.mrf.mxu0
    %v3963 = vpop.f32.mrf.mxu0
    %v3964 = vpop.f32.mrf.mxu0
    %3965 = vdwg.mxu0
    %v3966 = vmul.f32 %v3918, %v3961
    %v3967 = vadd.f32 %v2754, %v3966
    %v3968 = vtanh.pop %v3967
    %v3969 = vsub.f32 1.0, %v3925
    %v3970 = vmul.f32 %v3969, %v3968
    %v3971 = vmul.f32 %v3925, %v3827
    %v3972 = vadd.f32 %v3970, %v3971
    %v3973 = vpack.c.bf16 %v3972, %v3972
    %v3974 = vld [vmem:[%s7] sm:$0xf]
    %v3975 = vld [vmem:[%s7 + $0x4] sm:$0xf]
    %v3976 = vld [vmem:[%s7 + $0x8] sm:$0xf]
    %v3977 = vld [vmem:[%s7 + $0xc] sm:$0xf]
    %v3978 = vld [vmem:[%s8] sm:$0x1]
    %v3980 = vlaneseq
    %v3981 = vshrl.u32 %v3980, 7
    %v3982 = vsub.s32 0, %v3981
    %v3983 = vrot.slane %v3978, %v3982
    %v3989 = vunpack.c.l.b16 %v3974
    %v3990 = vunpack.c.l.b16 %v3975
    %v3991 = vunpack.c.l.b16 %v3976
    %v3992 = vunpack.c.l.b16 %v3977
    %v3993 = vpack.c.b16 %v3990, %v3989
    %v3994 = vpack.c.b16 %v3992, %v3991
    %v3998 = vsel %vm277, %v3973, 0
    %4000 = vmatprep.subr.bf16.mxu0 0
    %4001 = vmatpush1.bf16.msra.mxu0 0
    %4002 = vmatprep.subr.bf16.mxu0 0
    %4003 = vmatpush1.bf16.msra.mxu0 0
    %4004 = vmatprep.subr.bf16.mxu0 0
    %4005 = vmatpush1.bf16.msra.mxu0 0
    %4006 = vmatprep.subr.bf16.mxu0 0
    %4007 = vmatpush1.bf16.msra.mxu0 0
    %4008 = vmatprep.subr.bf16.mxu0 0
    %4009 = vmatpush1.bf16.msra.mxu0 0
    %4010 = vmatprep.subr.bf16.mxu0 0
    %4011 = vmatpush1.bf16.msra.mxu0 0
    %4012 = vmatprep.subr.bf16.mxu0 0
    %4013 = vmatpush1.bf16.msra.mxu0 %v3994
    %4014 = vmatprep.subr.bf16.mxu0 0
    %4015 = vmatpush1.bf16.msra.mxu0 %v3993
    %4016 = vmatprep.subr.bf16.mxu0 0
    %4017 = vmatpush2.bf16.msra.mxu0 0
    %4018 = vmatprep.subr.bf16.mxu0 0
    %4019 = vmatpush2.bf16.msra.mxu0 0
    %4020 = vmatprep.subr.bf16.mxu0 0
    %4021 = vmatpush2.bf16.msra.mxu0 0
    %4022 = vmatprep.subr.bf16.mxu0 0
    %4023 = vmatpush2.bf16.msra.mxu0 0
    %4024 = vmatprep.subr.bf16.mxu0 0
    %4025 = vmatpush2.bf16.msra.mxu0 0
    %4026 = vmatprep.subr.bf16.mxu0 0
    %4027 = vmatpush2.bf16.msra.mxu0 0
    %4028 = vmatprep.subr.bf16.mxu0 0
    %4029 = vmatpush2.bf16.msra.mxu0 0
    %4030 = vmatprep.subr.bf16.mxu0 0
    %4031 = vmatpush2.bf16.msra.mxu0 0
    %4032 = vmatprep.mubr.bf16.mxu0 0
    %4033 = vmatmul.mubr.bf16.gmra.mxu0 %v3998
    %v4034 = vpop.f32.mrf.mxu0
    %v4035 = vadd.f32 %v3983, %v4034
    %v4036 = vpop.f32.mrf.mxu0
    %v4037 = vpop.f32.mrf.mxu0
    %v4038 = vpop.f32.mrf.mxu0
    %4039 = vdwg.mxu0
    %vm4040 = vcmask 76800
    %v4041 = vsel %vm4040, %v4035, -inf
    %4042 = vmax.xlane.f32.xlu0 %v4041
    %v4043 = vpop.xlane.xlu0 %4042
    %v4044 = vsub.f32 %v4035, %v4043
    %v4045 = vmul.f32 %v4044, 1.442695
    %v4046 = vpow.pop %v4045
    %v4047 = vsel %vm4040, %v4046, 0.0
    %4048 = vadd.xlane.f32.xlu0 %v4047
    %v4049 = vpop.xlane.xlu0 %4048
    %v4050 = vlog2.pop %v4049
    %v4051 = vmul.f32 %v4050, 0.6931472
    %v4052 = vsub.f32 %v4044, %v4051
    %4053 = vst.msk [vmem:[#allocation3] sm:$0xf] %vm4040, %v4052
    // Predicated region
    $region38: #{mnist_classifier_forward.1} parent=1 // pred_check
      _
    $region39: #{mnist_classifier_forward.1} parent=1 // pred_check_branch
      %4055 = sbr.rel (0) target = $region41
    $region40: #{mnist_classifier_forward.1} parent=1 // pred_region
      %s4057 = ssub.s32 64, 64
      %4058 = vsyncadd [#allocation4], %s4057
      %s4060 = sshll.u32 [#allocation3], 4
      %s4061 = int_to_ptr.vmem [resolvable:$true] %s4060
      %4063 = dma.vmem_to_hbm [thread:$0]  %s4061, 64, %s9, [#allocation4]
    $region41: #{mnist_classifier_forward.1} parent=1 // pred_fallthru
      _
    // Predicated region
    $region42: #{mnist_classifier_forward.1} parent=1 // pred_check
      _
    $region43: #{mnist_classifier_forward.1} parent=1 // pred_check_branch
      %4065 = sbr.rel (0) target = $region45
    $region44: #{mnist_classifier_forward.1} parent=1 // pred_region
      %4066 = dma.done [#allocation4], 64
    $region45: #{mnist_classifier_forward.1} parent=1 // pred_fallthru
      _
    %4067 = vsyncpa [#allocation4], 1

</llo_original>
